<compile_context>
chip_gen: v7x
topology: tpu7x:2x2x1
jax: 0.10.0
libtpu: 0.0.40
codegen_flags: <defaults>
</compile_context>

<pallas_src>
import functools

import jax
import jax.numpy as jnp
import numpy as np
from jax import lax
from jax.experimental import pallas as pl
from jax.experimental.pallas import tpu as pltpu

HIDDEN = 8              # hidden channels of the synthetic recurrent core
LANES = 128             # lane width (last dim of every block)
_MAX_TILE_ROWS = 512    # 512 rows x 128 lanes = 64K pixels per spatial tile


def _round_up(x, m):
    return ((x + m - 1) // m) * m


def _choose_row_tile(r):
    """Rows (of 128 lanes) per spatial tile.

    Multiple of 16 (bf16 output blocks cover whole packed (16,128) tiles),
    capped at _MAX_TILE_ROWS, and chosen so there are >= 2 tiles whenever
    possible so the "parallel" spatial axis shards across both v7x cores.
    """
    if r <= 16:
        return 16
    if r <= 2 * _MAX_TILE_ROWS:
        return _round_up((r + 1) // 2, 16)
    return _MAX_TILE_ROWS


def _choose_sub_rows(row_tile):
    """Rows per inner fori_loop chunk (keeps the traced kernel body small)."""
    return 32 if row_tile % 32 == 0 else 16


# ----------------------------------------------------------------------------
# Pallas kernel: grid = (spatial tiles, frames).  T (axis 1) is sequential and
# carries the recurrence; the spatial axis is "parallel" (megacore sharding).
# ----------------------------------------------------------------------------
def _matting_step_kernel(
    src_ref,                               # (1, 3, row_tile, 128) f32 VMEM
    w_in_ref, b_in_ref,                    # SMEM, flattened tiny weights
    w_zh_ref, u_zh_ref, b_zh_ref,
    w_fp_ref, b_fp_ref,
    bgr_ref,                               # SMEM, (3,)
    *rest,                                 # [fgr?, pha?, com?] outputs + h scratch
    video_mode, want_fgr, want_pha, want_com,
    sub_rows, num_chunks, out_dtype,
):
    *out_refs, h_scr = rest
    i = 0
    fgr_ref = pha_ref = com_ref = None
    if want_fgr:
        fgr_ref = out_refs[i]; i += 1
    if want_pha:
        pha_ref = out_refs[i]; i += 1
    if want_com:
        com_ref = out_refs[i]; i += 1

    t = pl.program_id(1)

    # rec = [None]*4 in the PyTorch wrapper -> zero-init recurrent state at the
    # start of each spatial tile's frame loop.
    @pl.when(t == 0)
    def _():
        h_scr[...] = jnp.zeros_like(h_scr)

    # Tiny weights live in SMEM; hoist all scalar reads out of the pixel loop.
    w_in = [[w_in_ref[m * 3 + k] for k in range(3)] for m in range(HIDDEN)]
    b_in = [b_in_ref[m] for m in range(HIDDEN)]
    w_zh = [[w_zh_ref[m * HIDDEN + k] for k in range(HIDDEN)] for m in range(2 * HIDDEN)]
    u_zh = [[u_zh_ref[m * HIDDEN + k] for k in range(HIDDEN)] for m in range(2 * HIDDEN)]
    b_zh = [b_zh_ref[m] for m in range(2 * HIDDEN)]
    w_fp = [[w_fp_ref[m * HIDDEN + k] for k in range(HIDDEN)] for m in range(4)]
    b_fp = [b_fp_ref[m] for m in range(4)]
    bgr = [bgr_ref[c] for c in range(3)]

    def chunk(ci, carry):
        r0 = pl.multiple_of(ci * sub_rows, sub_rows)
        rows = pl.ds(r0, sub_rows)

        x = [src_ref[0, c, rows, :] for c in range(3)]          # 3 x (sub, 128)
        h = [h_scr[k, rows, :] for k in range(HIDDEN)]          # 8 x (sub, 128)

        # pointwise (1x1-conv) feature extraction: relu(W_in x + b_in)
        feat = []
        for m in range(HIDDEN):
            a = w_in[m][0] * x[0] + w_in[m][1] * x[1] + w_in[m][2] * x[2] + b_in[m]
            feat.append(jnp.maximum(a, 0.0))

        # fused ConvGRU-style gates [z ; candidate] as VPU broadcast-FMAs
        gates = []
        for m in range(2 * HIDDEN):
            a = w_zh[m][0] * feat[0]
            for k in range(1, HIDDEN):
                a = a + w_zh[m][k] * feat[k]
            for k in range(HIDDEN):
                a = a + u_zh[m][k] * h[k]
            gates.append(a + b_zh[m])

        h_new = []
        for k in range(HIDDEN):
            z = jax.nn.sigmoid(gates[k])
            c = jnp.tanh(gates[HIDDEN + k])
            hn = h[k] + z * (c - h[k])          # == (1 - z) * h + z * c
            h_new.append(hn)
            h_scr[k, rows, :] = hn              # f32 recurrent state stays in VMEM

        # fused output heads: channels 0:3 foreground, 3 alpha, all in [0, 1]
        heads = []
        for m in range(4):
            a = w_fp[m][0] * h_new[0]
            for k in range(1, HIDDEN):
                a = a + w_fp[m][k] * h_new[k]
            heads.append(jax.nn.sigmoid(a + b_fp[m]))
        fgr = heads[:3]
        pha = heads[3]

        if want_fgr:
            for c in range(3):
                fgr_ref[0, c, rows, :] = fgr[c].astype(out_dtype)
        if want_pha:
            pha_ref[0, 0, rows, :] = pha.astype(out_dtype)

        # --- composition exactly as in RobudstVideoMatting.forward ---------
        if want_com:
            if video_mode:
                inv = 1.0 - pha                 # green-screen composite
                for c in range(3):
                    com_ref[0, c, rows, :] = (fgr[c] * pha + bgr[c] * inv).astype(out_dtype)
            else:
                # png_sequence: fgr = fgr * pha.gt(0); com = cat([fgr, pha], -3)
                mask = (pha > 0.0).astype(jnp.float32)
                for c in range(3):
                    com_ref[0, c, rows, :] = (fgr[c] * mask).astype(out_dtype)
                com_ref[0, 3, rows, :] = pha.astype(out_dtype)
        return carry

    lax.fori_loop(0, num_chunks, chunk, 0)


# ----------------------------------------------------------------------------
# pallas_call wrapper
# ----------------------------------------------------------------------------
def _smem_spec():
    return pl.BlockSpec(memory_space=pltpu.MemorySpace.SMEM)


@functools.partial(
    jax.jit,
    static_argnames=("video_mode", "want_fgr", "want_pha", "want_com",
                     "row_tile", "out_dtype"))
def _run_matting_kernel(src, params, bgr, *, video_mode, want_fgr, want_pha,
                        want_com, row_tile, out_dtype):
    """src: (T, 3, R, 128) float32 with R % row_tile == 0."""
    T, C, R, L = src.shape
    assert C == 3 and L == LANES and R % row_tile == 0
    assert want_fgr or want_pha or want_com
    sub_rows = _choose_sub_rows(row_tile)
    num_chunks = row_tile // sub_rows
    num_tiles = R // row_tile

    # flatten tiny params so they live densely in SMEM (scalar indexed)
    w_in, b_in, w_zh, u_zh, b_zh, w_fp, b_fp = [jnp.reshape(p, (-1,)) for p in params]
    bgr = jnp.reshape(bgr, (-1,))

    def tile_map(p, t):
        return (t, 0, p, 0)

    in_specs = [pl.BlockSpec((1, 3, row_tile, LANES), tile_map)] + [_smem_spec()] * 8

    out_specs, out_shape = [], []
    if want_fgr:
        out_specs.append(pl.BlockSpec((1, 3, row_tile, LANES), tile_map))
        out_shape.append(jax.ShapeDtypeStruct((T, 3, R, LANES), out_dtype))
    if want_pha:
        out_specs.append(pl.BlockSpec((1, 1, row_tile, LANES), tile_map))
        out_shape.append(jax.ShapeDtypeStruct((T, 1, R, LANES), out_dtype))
    if want_com:
        com_ch = 3 if video_mode else 4
        out_specs.append(pl.BlockSpec((1, com_ch, row_tile, LANES), tile_map))
        out_shape.append(jax.ShapeDtypeStruct((T, com_ch, R, LANES), out_dtype))

    kernel = functools.partial(
        _matting_step_kernel,
        video_mode=video_mode, want_fgr=want_fgr, want_pha=want_pha,
        want_com=want_com, sub_rows=sub_rows, num_chunks=num_chunks,
        out_dtype=out_dtype)

    return pl.pallas_call(
        kernel,
        out_shape=tuple(out_shape),
        grid_spec=pltpu.PrefetchScalarGridSpec(
            num_scalar_prefetch=0,
            grid=(num_tiles, T),
            in_specs=in_specs,
            out_specs=tuple(out_specs),
            scratch_shapes=[pltpu.VMEM((HIDDEN, row_tile, LANES), jnp.float32)],
        ),
        compiler_params=pltpu.CompilerParams(
            # spatial tiles are independent (pointwise core) -> parallel
            # (megacore sharding); frames carry the recurrence -> sequential.
            dimension_semantics=("parallel", "arbitrary"),
        ),
    )(src, w_in, b_in, w_zh, u_zh, b_zh, w_fp, b_fp, bgr)


# ----------------------------------------------------------------------------
# Pure-JAX reference (correctness check against the kernel)
# ----------------------------------------------------------------------------
def _reference(src, params, bgr, video_mode):
    (w_in, b_in, w_zh, u_zh, b_zh, w_fp, b_fp) = params
    T, _, P = src.shape
    h = jnp.zeros((HIDDEN, P), jnp.float32)
    fgrs, phas, coms = [], [], []
    for t in range(T):
        x = src[t]
        feat = jax.nn.relu(w_in @ x + b_in)
        gates = w_zh @ feat + u_zh @ h + b_zh
        z = jax.nn.sigmoid(gates[:HIDDEN])
        cand = jnp.tanh(gates[HIDDEN:])
        h = (1.0 - z) * h + z * cand
        heads = jax.nn.sigmoid(w_fp @ h + b_fp)
        fgr, pha = heads[:3], heads[3:4]
        if video_mode:
            com = fgr * pha + bgr * (1.0 - pha)
        else:
            com = jnp.concatenate([fgr * (pha > 0.0), pha], axis=0)
        fgrs.append(fgr); phas.append(pha); coms.append(com)
    return jnp.stack(fgrs), jnp.stack(phas), jnp.stack(coms)


# ----------------------------------------------------------------------------
# Module-level wrapper mirroring RobudstVideoMatting
# ----------------------------------------------------------------------------
class RobudstVideoMatting:
    def __init__(self, key=None, out_dtype=jnp.bfloat16):
        # Deterministic synthetic parameters (stand-in for loading
        # 'rvm_mobilenetv3.pth' -- no checkpoint files are read).
        key = jax.random.PRNGKey(0) if key is None else key
        ks = jax.random.split(key, 12)
        s = 0.2
        f32 = jnp.float32
        w_in = s * jax.random.normal(ks[0], (HIDDEN, 3), f32)
        b_in = s * jax.random.normal(ks[1], (HIDDEN, 1), f32)
        w_z = s * jax.random.normal(ks[2], (HIDDEN, HIDDEN), f32)
        u_z = s * jax.random.normal(ks[3], (HIDDEN, HIDDEN), f32)
        b_z = s * jax.random.normal(ks[4], (HIDDEN, 1), f32)
        w_h = s * jax.random.normal(ks[5], (HIDDEN, HIDDEN), f32)
        u_h = s * jax.random.normal(ks[6], (HIDDEN, HIDDEN), f32)
        b_h = s * jax.random.normal(ks[7], (HIDDEN, 1), f32)
        w_f = s * jax.random.normal(ks[8], (3, HIDDEN), f32)
        b_f = s * jax.random.normal(ks[9], (3, 1), f32)
        w_p = s * jax.random.normal(ks[10], (1, HIDDEN), f32)
        b_p = s * jax.random.normal(ks[11], (1, 1), f32)
        # packed parameters: fused gates and fused output heads
        self.params = (
            w_in, b_in,
            jnp.concatenate([w_z, w_h], axis=0),   # (2*HIDDEN, HIDDEN)
            jnp.concatenate([u_z, u_h], axis=0),   # (2*HIDDEN, HIDDEN)
            jnp.concatenate([b_z, b_h], axis=0),   # (2*HIDDEN, 1)
            jnp.concatenate([w_f, w_p], axis=0),   # (4, HIDDEN)
            jnp.concatenate([b_f, b_p], axis=0),   # (4, 1)
        )
        self.out_dtype = out_dtype
        # green-screen background, same constant as the PyTorch module
        self.bgr = (jnp.array([120.0, 255.0, 155.0], f32) / 255.0).reshape(3, 1)

    def _auto_downsample_ratio(self, h, w):
        return min(512 / max(h, w), 1)

    def forward(self, frames, output_type="png_sequence", downsample_ratio=None,
                seq_chunk=1, output_composition=True, output_alpha=True,
                output_foreground=True):
        """frames: (T, 3, H, W) float32 in [0, 1].

        In-memory substitute for the original file/video reader.
        """
        # TODO(synk): file reading, VideoWriter/ImageSequenceWriter I/O and the
        # torchvision Resize transform have no Pallas equivalent; frames are
        # supplied as an array and outputs are returned instead of written.
        assert downsample_ratio is None or (0 < downsample_ratio <= 1)
        assert any([output_composition, output_alpha, output_foreground])
        assert output_type in ["video", "png_sequence"]
        assert seq_chunk >= 1

        T, C, H, W = frames.shape
        assert C == 3
        if downsample_ratio is None:
            downsample_ratio = self._auto_downsample_ratio(H, W)
        # TODO(synk): the real model bilinearly downsamples by downsample_ratio
        # before the encoder; the synthetic pointwise core runs at full resolution.

        P = H * W
        R = _round_up(P, LANES) // LANES          # 128-lane rows per frame
        row_tile = _choose_row_tile(R)
        R_pad = _round_up(R, row_tile)
        P_pad = R_pad * LANES

        src = frames.reshape(T, 3, P).astype(jnp.float32)
        if P_pad != P:
            src = jnp.pad(src, ((0, 0), (0, 0), (0, P_pad - P)))
        # channel-leading 4D layout: C stays off the (sublane, lane) dims so
        # nothing is padded to 8 sublanes in HBM / VMEM blocks.
        src = src.reshape(T, 3, R_pad, LANES)

        video_mode = (output_type == "video")
        outs = _run_matting_kernel(
            src, self.params, self.bgr,
            video_mode=video_mode,
            want_fgr=bool(output_foreground),
            want_pha=bool(output_alpha),
            want_com=bool(output_composition),
            row_tile=row_tile, out_dtype=self.out_dtype)

        result = {"downsample_ratio": downsample_ratio}
        idx = 0

        def unpack(nch):
            nonlocal idx
            o = outs[idx]; idx += 1
            o = o.reshape(T, nch, P_pad)[:, :, :P]
            # reshape back to PyTorch's (1, T, C, H, W) convention (src.unsqueeze(0))
            return o.reshape(1, T, nch, H, W)

        if output_foreground:
            result["fgr"] = unpack(3)
        if output_alpha:
            result["pha"] = unpack(1)
        if output_composition:
            result["com"] = unpack(3 if video_mode else 4)
        return result

    __call__ = forward


if __name__ == "__main__":
    key = jax.random.PRNGKey(0)
    model = RobudstVideoMatting()

    def check(actual, expected, atol=2e-2, rtol=2e-2):
        np.testing.assert_allclose(
            np.asarray(jnp.asarray(actual, dtype=jnp.float32)),
            np.asarray(jnp.asarray(expected, dtype=jnp.float32)),
            rtol=rtol, atol=atol)

    # --- test 1: small frames, png_sequence (RGBA composite), all outputs ---
    T, H, W = 4, 16, 16
    frames = jax.random.uniform(key, (T, 3, H, W), jnp.float32)
    src_flat = frames.reshape(T, 3, H * W)

    out_png = model(frames, output_type="png_sequence")
    jax.block_until_ready(out_png["com"])
    ref_fgr, ref_pha, ref_com_p = _reference(src_flat, model.params, model.bgr,
                                             video_mode=False)
    check(out_png["fgr"].reshape(T, 3, -1), ref_fgr)
    check(out_png["pha"].reshape(T, 1, -1), ref_pha)
    check(out_png["com"].reshape(T, 4, -1), ref_com_p)

    # --- test 2: video mode, composition only (fgr/pha writes skipped) ------
    out_vid = model(frames, output_type="video",
                    output_foreground=False, output_alpha=False)
    jax.block_until_ready(out_vid["com"])
    _, _, ref_com_v = _reference(src_flat, model.params, model.bgr, video_mode=True)
    assert "fgr" not in out_vid and "pha" not in out_vid
    check(out_vid["com"].reshape(T, 3, -1), ref_com_v)

    # --- test 3: resolution that pads and produces >= 2 spatial tiles -------
    T2, H2, W2 = 3, 48, 64        # P = 3072 -> R = 24 rows -> row_tile 16, 2 tiles
    frames2 = jax.random.uniform(jax.random.PRNGKey(1), (T2, 3, H2, W2), jnp.float32)
    src2 = frames2.reshape(T2, 3, H2 * W2)
    out2 = model(frames2, output_type="png_sequence")
    jax.block_until_ready(out2["com"])
    r_fgr2, r_pha2, r_com2 = _reference(src2, model.params, model.bgr, video_mode=False)
    check(out2["fgr"].reshape(T2, 3, -1), r_fgr2)
    check(out2["pha"].reshape(T2, 1, -1), r_pha2)
    check(out2["com"].reshape(T2, 4, -1), r_com2)

    print("KERNEL_OK")
</pallas_src>

<mosaic_0001>
module attributes {stable_mosaic.version = 11 : i64} {
  func.func @_matting_step_kernel(%arg0: i32, %arg1: i32, %arg2: memref<1x3x16x128xf32, #tpu.memory_space<vmem>>, %arg3: memref<24xf32, #tpu.memory_space<smem>>, %arg4: memref<8xf32, #tpu.memory_space<smem>>, %arg5: memref<128xf32, #tpu.memory_space<smem>>, %arg6: memref<128xf32, #tpu.memory_space<smem>>, %arg7: memref<16xf32, #tpu.memory_space<smem>>, %arg8: memref<32xf32, #tpu.memory_space<smem>>, %arg9: memref<4xf32, #tpu.memory_space<smem>>, %arg10: memref<3xf32, #tpu.memory_space<smem>>, %arg11: memref<1x3x16x128xbf16, #tpu.memory_space<vmem>>, %arg12: memref<1x1x16x128xbf16, #tpu.memory_space<vmem>>, %arg13: memref<1x4x16x128xbf16, #tpu.memory_space<vmem>>, %arg14: memref<8x16x128xf32, #tpu.memory_space<vmem>>) attributes {dimension_semantics = [#tpu.dimension_semantics<parallel>, #tpu.dimension_semantics<arbitrary>], iteration_bounds = array<i64: 1, 4>, scalar_prefetch = 0 : i64, scratch_operands = 1 : i64, tpu.core_type = #tpu.core_type<tc>, window_params = [{transform_indices = @transform_0, window_bounds = array<i64: 1, 3, 16, 128>}, {transform_indices = @transform_1, window_bounds = array<i64: 24>}, {transform_indices = @transform_2, window_bounds = array<i64: 8>}, {transform_indices = @transform_3, window_bounds = array<i64: 128>}, {transform_indices = @transform_4, window_bounds = array<i64: 128>}, {transform_indices = @transform_5, window_bounds = array<i64: 16>}, {transform_indices = @transform_6, window_bounds = array<i64: 32>}, {transform_indices = @transform_7, window_bounds = array<i64: 4>}, {transform_indices = @transform_8, window_bounds = array<i64: 3>}, {transform_indices = @transform_9, window_bounds = array<i64: 1, 3, 16, 128>}, {transform_indices = @transform_10, window_bounds = array<i64: 1, 1, 16, 128>}, {transform_indices = @transform_11, window_bounds = array<i64: 1, 4, 16, 128>}]} {
    %c0_i32 = arith.constant 0 : i32
    %0 = arith.cmpi eq, %arg1, %c0_i32 : i32
    %1 = arith.extui %0 : i1 to i32
    %c0_i32_0 = arith.constant 0 : i32
    %2 = arith.cmpi ne, %1, %c0_i32_0 : i32
    scf.if %2 {
      %cst_299 = arith.constant 0.000000e+00 : f32
      %1529 = vector.broadcast %cst_299 : f32 to vector<8x16x128xf32>
      %c0_300 = arith.constant 0 : index
      %c0_301 = arith.constant 0 : index
      %c0_302 = arith.constant 0 : index
      %1530 = vector.load %arg14[%c0_300, %c0_301, %c0_302] : memref<8x16x128xf32, #tpu.memory_space<vmem>>, vector<8x16x128xf32>
      tpu.vector_store %arg14[%c0_300, %c0_301, %c0_302], %1529 {strides = array<i32>} : memref<8x16x128xf32, #tpu.memory_space<vmem>>, vector<8x16x128xf32>,
    } else {
    }
    %c0 = arith.constant 0 : index
    %3 = memref.load %arg3[%c0] : memref<24xf32, #tpu.memory_space<smem>>
    %c1 = arith.constant 1 : index
    %4 = memref.load %arg3[%c1] : memref<24xf32, #tpu.memory_space<smem>>
    %c2 = arith.constant 2 : index
    %5 = memref.load %arg3[%c2] : memref<24xf32, #tpu.memory_space<smem>>
    %c3 = arith.constant 3 : index
    %6 = memref.load %arg3[%c3] : memref<24xf32, #tpu.memory_space<smem>>
    %c4 = arith.constant 4 : index
    %7 = memref.load %arg3[%c4] : memref<24xf32, #tpu.memory_space<smem>>
    %c5 = arith.constant 5 : index
    %8 = memref.load %arg3[%c5] : memref<24xf32, #tpu.memory_space<smem>>
    %c6 = arith.constant 6 : index
    %9 = memref.load %arg3[%c6] : memref<24xf32, #tpu.memory_space<smem>>
    %c7 = arith.constant 7 : index
    %10 = memref.load %arg3[%c7] : memref<24xf32, #tpu.memory_space<smem>>
    %c8 = arith.constant 8 : index
    %11 = memref.load %arg3[%c8] : memref<24xf32, #tpu.memory_space<smem>>
    %c9 = arith.constant 9 : index
    %12 = memref.load %arg3[%c9] : memref<24xf32, #tpu.memory_space<smem>>
    %c10 = arith.constant 10 : index
    %13 = memref.load %arg3[%c10] : memref<24xf32, #tpu.memory_space<smem>>
    %c11 = arith.constant 11 : index
    %14 = memref.load %arg3[%c11] : memref<24xf32, #tpu.memory_space<smem>>
    %c12 = arith.constant 12 : index
    %15 = memref.load %arg3[%c12] : memref<24xf32, #tpu.memory_space<smem>>
    %c13 = arith.constant 13 : index
    %16 = memref.load %arg3[%c13] : memref<24xf32, #tpu.memory_space<smem>>
    %c14 = arith.constant 14 : index
    %17 = memref.load %arg3[%c14] : memref<24xf32, #tpu.memory_space<smem>>
    %c15 = arith.constant 15 : index
    %18 = memref.load %arg3[%c15] : memref<24xf32, #tpu.memory_space<smem>>
    %c16 = arith.constant 16 : index
    %19 = memref.load %arg3[%c16] : memref<24xf32, #tpu.memory_space<smem>>
    %c17 = arith.constant 17 : index
    %20 = memref.load %arg3[%c17] : memref<24xf32, #tpu.memory_space<smem>>
    %c18 = arith.constant 18 : index
    %21 = memref.load %arg3[%c18] : memref<24xf32, #tpu.memory_space<smem>>
    %c19 = arith.constant 19 : index
    %22 = memref.load %arg3[%c19] : memref<24xf32, #tpu.memory_space<smem>>
    %c20 = arith.constant 20 : index
    %23 = memref.load %arg3[%c20] : memref<24xf32, #tpu.memory_space<smem>>
    %c21 = arith.constant 21 : index
    %24 = memref.load %arg3[%c21] : memref<24xf32, #tpu.memory_space<smem>>
    %c22 = arith.constant 22 : index
    %25 = memref.load %arg3[%c22] : memref<24xf32, #tpu.memory_space<smem>>
    %c23 = arith.constant 23 : index
    %26 = memref.load %arg3[%c23] : memref<24xf32, #tpu.memory_space<smem>>
    %c0_1 = arith.constant 0 : index
    %27 = memref.load %arg4[%c0_1] : memref<8xf32, #tpu.memory_space<smem>>
    %c1_2 = arith.constant 1 : index
    %28 = memref.load %arg4[%c1_2] : memref<8xf32, #tpu.memory_space<smem>>
    %c2_3 = arith.constant 2 : index
    %29 = memref.load %arg4[%c2_3] : memref<8xf32, #tpu.memory_space<smem>>
    %c3_4 = arith.constant 3 : index
    %30 = memref.load %arg4[%c3_4] : memref<8xf32, #tpu.memory_space<smem>>
    %c4_5 = arith.constant 4 : index
    %31 = memref.load %arg4[%c4_5] : memref<8xf32, #tpu.memory_space<smem>>
    %c5_6 = arith.constant 5 : index
    %32 = memref.load %arg4[%c5_6] : memref<8xf32, #tpu.memory_space<smem>>
    %c6_7 = arith.constant 6 : index
    %33 = memref.load %arg4[%c6_7] : memref<8xf32, #tpu.memory_space<smem>>
    %c7_8 = arith.constant 7 : index
    %34 = memref.load %arg4[%c7_8] : memref<8xf32, #tpu.memory_space<smem>>
    %c0_9 = arith.constant 0 : index
    %35 = memref.load %arg5[%c0_9] : memref<128xf32, #tpu.memory_space<smem>>
    %c1_10 = arith.constant 1 : index
    %36 = memref.load %arg5[%c1_10] : memref<128xf32, #tpu.memory_space<smem>>
    %c2_11 = arith.constant 2 : index
    %37 = memref.load %arg5[%c2_11] : memref<128xf32, #tpu.memory_space<smem>>
    %c3_12 = arith.constant 3 : index
    %38 = memref.load %arg5[%c3_12] : memref<128xf32, #tpu.memory_space<smem>>
    %c4_13 = arith.constant 4 : index
    %39 = memref.load %arg5[%c4_13] : memref<128xf32, #tpu.memory_space<smem>>
    %c5_14 = arith.constant 5 : index
    %40 = memref.load %arg5[%c5_14] : memref<128xf32, #tpu.memory_space<smem>>
    %c6_15 = arith.constant 6 : index
    %41 = memref.load %arg5[%c6_15] : memref<128xf32, #tpu.memory_space<smem>>
    %c7_16 = arith.constant 7 : index
    %42 = memref.load %arg5[%c7_16] : memref<128xf32, #tpu.memory_space<smem>>
    %c8_17 = arith.constant 8 : index
    %43 = memref.load %arg5[%c8_17] : memref<128xf32, #tpu.memory_space<smem>>
    %c9_18 = arith.constant 9 : index
    %44 = memref.load %arg5[%c9_18] : memref<128xf32, #tpu.memory_space<smem>>
    %c10_19 = arith.constant 10 : index
    %45 = memref.load %arg5[%c10_19] : memref<128xf32, #tpu.memory_space<smem>>
    %c11_20 = arith.constant 11 : index
    %46 = memref.load %arg5[%c11_20] : memref<128xf32, #tpu.memory_space<smem>>
    %c12_21 = arith.constant 12 : index
    %47 = memref.load %arg5[%c12_21] : memref<128xf32, #tpu.memory_space<smem>>
    %c13_22 = arith.constant 13 : index
    %48 = memref.load %arg5[%c13_22] : memref<128xf32, #tpu.memory_space<smem>>
    %c14_23 = arith.constant 14 : index
    %49 = memref.load %arg5[%c14_23] : memref<128xf32, #tpu.memory_space<smem>>
    %c15_24 = arith.constant 15 : index
    %50 = memref.load %arg5[%c15_24] : memref<128xf32, #tpu.memory_space<smem>>
    %c16_25 = arith.constant 16 : index
    %51 = memref.load %arg5[%c16_25] : memref<128xf32, #tpu.memory_space<smem>>
    %c17_26 = arith.constant 17 : index
    %52 = memref.load %arg5[%c17_26] : memref<128xf32, #tpu.memory_space<smem>>
    %c18_27 = arith.constant 18 : index
    %53 = memref.load %arg5[%c18_27] : memref<128xf32, #tpu.memory_space<smem>>
    %c19_28 = arith.constant 19 : index
    %54 = memref.load %arg5[%c19_28] : memref<128xf32, #tpu.memory_space<smem>>
    %c20_29 = arith.constant 20 : index
    %55 = memref.load %arg5[%c20_29] : memref<128xf32, #tpu.memory_space<smem>>
    %c21_30 = arith.constant 21 : index
    %56 = memref.load %arg5[%c21_30] : memref<128xf32, #tpu.memory_space<smem>>
    %c22_31 = arith.constant 22 : index
    %57 = memref.load %arg5[%c22_31] : memref<128xf32, #tpu.memory_space<smem>>
    %c23_32 = arith.constant 23 : index
    %58 = memref.load %arg5[%c23_32] : memref<128xf32, #tpu.memory_space<smem>>
    %c24 = arith.constant 24 : index
    %59 = memref.load %arg5[%c24] : memref<128xf32, #tpu.memory_space<smem>>
    %c25 = arith.constant 25 : index
    %60 = memref.load %arg5[%c25] : memref<128xf32, #tpu.memory_space<smem>>
    %c26 = arith.constant 26 : index
    %61 = memref.load %arg5[%c26] : memref<128xf32, #tpu.memory_space<smem>>
    %c27 = arith.constant 27 : index
    %62 = memref.load %arg5[%c27] : memref<128xf32, #tpu.memory_space<smem>>
    %c28 = arith.constant 28 : index
    %63 = memref.load %arg5[%c28] : memref<128xf32, #tpu.memory_space<smem>>
    %c29 = arith.constant 29 : index
    %64 = memref.load %arg5[%c29] : memref<128xf32, #tpu.memory_space<smem>>
    %c30 = arith.constant 30 : index
    %65 = memref.load %arg5[%c30] : memref<128xf32, #tpu.memory_space<smem>>
    %c31 = arith.constant 31 : index
    %66 = memref.load %arg5[%c31] : memref<128xf32, #tpu.memory_space<smem>>
    %c32 = arith.constant 32 : index
    %67 = memref.load %arg5[%c32] : memref<128xf32, #tpu.memory_space<smem>>
    %c33 = arith.constant 33 : index
    %68 = memref.load %arg5[%c33] : memref<128xf32, #tpu.memory_space<smem>>
    %c34 = arith.constant 34 : index
    %69 = memref.load %arg5[%c34] : memref<128xf32, #tpu.memory_space<smem>>
    %c35 = arith.constant 35 : index
    %70 = memref.load %arg5[%c35] : memref<128xf32, #tpu.memory_space<smem>>
    %c36 = arith.constant 36 : index
    %71 = memref.load %arg5[%c36] : memref<128xf32, #tpu.memory_space<smem>>
    %c37 = arith.constant 37 : index
    %72 = memref.load %arg5[%c37] : memref<128xf32, #tpu.memory_space<smem>>
    %c38 = arith.constant 38 : index
    %73 = memref.load %arg5[%c38] : memref<128xf32, #tpu.memory_space<smem>>
    %c39 = arith.constant 39 : index
    %74 = memref.load %arg5[%c39] : memref<128xf32, #tpu.memory_space<smem>>
    %c40 = arith.constant 40 : index
    %75 = memref.load %arg5[%c40] : memref<128xf32, #tpu.memory_space<smem>>
    %c41 = arith.constant 41 : index
    %76 = memref.load %arg5[%c41] : memref<128xf32, #tpu.memory_space<smem>>
    %c42 = arith.constant 42 : index
    %77 = memref.load %arg5[%c42] : memref<128xf32, #tpu.memory_space<smem>>
    %c43 = arith.constant 43 : index
    %78 = memref.load %arg5[%c43] : memref<128xf32, #tpu.memory_space<smem>>
    %c44 = arith.constant 44 : index
    %79 = memref.load %arg5[%c44] : memref<128xf32, #tpu.memory_space<smem>>
    %c45 = arith.constant 45 : index
    %80 = memref.load %arg5[%c45] : memref<128xf32, #tpu.memory_space<smem>>
    %c46 = arith.constant 46 : index
    %81 = memref.load %arg5[%c46] : memref<128xf32, #tpu.memory_space<smem>>
    %c47 = arith.constant 47 : index
    %82 = memref.load %arg5[%c47] : memref<128xf32, #tpu.memory_space<smem>>
    %c48 = arith.constant 48 : index
    %83 = memref.load %arg5[%c48] : memref<128xf32, #tpu.memory_space<smem>>
    %c49 = arith.constant 49 : index
    %84 = memref.load %arg5[%c49] : memref<128xf32, #tpu.memory_space<smem>>
    %c50 = arith.constant 50 : index
    %85 = memref.load %arg5[%c50] : memref<128xf32, #tpu.memory_space<smem>>
    %c51 = arith.constant 51 : index
    %86 = memref.load %arg5[%c51] : memref<128xf32, #tpu.memory_space<smem>>
    %c52 = arith.constant 52 : index
    %87 = memref.load %arg5[%c52] : memref<128xf32, #tpu.memory_space<smem>>
    %c53 = arith.constant 53 : index
    %88 = memref.load %arg5[%c53] : memref<128xf32, #tpu.memory_space<smem>>
    %c54 = arith.constant 54 : index
    %89 = memref.load %arg5[%c54] : memref<128xf32, #tpu.memory_space<smem>>
    %c55 = arith.constant 55 : index
    %90 = memref.load %arg5[%c55] : memref<128xf32, #tpu.memory_space<smem>>
    %c56 = arith.constant 56 : index
    %91 = memref.load %arg5[%c56] : memref<128xf32, #tpu.memory_space<smem>>
    %c57 = arith.constant 57 : index
    %92 = memref.load %arg5[%c57] : memref<128xf32, #tpu.memory_space<smem>>
    %c58 = arith.constant 58 : index
    %93 = memref.load %arg5[%c58] : memref<128xf32, #tpu.memory_space<smem>>
    %c59 = arith.constant 59 : index
    %94 = memref.load %arg5[%c59] : memref<128xf32, #tpu.memory_space<smem>>
    %c60 = arith.constant 60 : index
    %95 = memref.load %arg5[%c60] : memref<128xf32, #tpu.memory_space<smem>>
    %c61 = arith.constant 61 : index
    %96 = memref.load %arg5[%c61] : memref<128xf32, #tpu.memory_space<smem>>
    %c62 = arith.constant 62 : index
    %97 = memref.load %arg5[%c62] : memref<128xf32, #tpu.memory_space<smem>>
    %c63 = arith.constant 63 : index
    %98 = memref.load %arg5[%c63] : memref<128xf32, #tpu.memory_space<smem>>
    %c64 = arith.constant 64 : index
    %99 = memref.load %arg5[%c64] : memref<128xf32, #tpu.memory_space<smem>>
    %c65 = arith.constant 65 : index
    %100 = memref.load %arg5[%c65] : memref<128xf32, #tpu.memory_space<smem>>
    %c66 = arith.constant 66 : index
    %101 = memref.load %arg5[%c66] : memref<128xf32, #tpu.memory_space<smem>>
    %c67 = arith.constant 67 : index
    %102 = memref.load %arg5[%c67] : memref<128xf32, #tpu.memory_space<smem>>
    %c68 = arith.constant 68 : index
    %103 = memref.load %arg5[%c68] : memref<128xf32, #tpu.memory_space<smem>>
    %c69 = arith.constant 69 : index
    %104 = memref.load %arg5[%c69] : memref<128xf32, #tpu.memory_space<smem>>
    %c70 = arith.constant 70 : index
    %105 = memref.load %arg5[%c70] : memref<128xf32, #tpu.memory_space<smem>>
    %c71 = arith.constant 71 : index
    %106 = memref.load %arg5[%c71] : memref<128xf32, #tpu.memory_space<smem>>
    %c72 = arith.constant 72 : index
    %107 = memref.load %arg5[%c72] : memref<128xf32, #tpu.memory_space<smem>>
    %c73 = arith.constant 73 : index
    %108 = memref.load %arg5[%c73] : memref<128xf32, #tpu.memory_space<smem>>
    %c74 = arith.constant 74 : index
    %109 = memref.load %arg5[%c74] : memref<128xf32, #tpu.memory_space<smem>>
    %c75 = arith.constant 75 : index
    %110 = memref.load %arg5[%c75] : memref<128xf32, #tpu.memory_space<smem>>
    %c76 = arith.constant 76 : index
    %111 = memref.load %arg5[%c76] : memref<128xf32, #tpu.memory_space<smem>>
    %c77 = arith.constant 77 : index
    %112 = memref.load %arg5[%c77] : memref<128xf32, #tpu.memory_space<smem>>
    %c78 = arith.constant 78 : index
    %113 = memref.load %arg5[%c78] : memref<128xf32, #tpu.memory_space<smem>>
    %c79 = arith.constant 79 : index
    %114 = memref.load %arg5[%c79] : memref<128xf32, #tpu.memory_space<smem>>
    %c80 = arith.constant 80 : index
    %115 = memref.load %arg5[%c80] : memref<128xf32, #tpu.memory_space<smem>>
    %c81 = arith.constant 81 : index
    %116 = memref.load %arg5[%c81] : memref<128xf32, #tpu.memory_space<smem>>
    %c82 = arith.constant 82 : index
    %117 = memref.load %arg5[%c82] : memref<128xf32, #tpu.memory_space<smem>>
    %c83 = arith.constant 83 : index
    %118 = memref.load %arg5[%c83] : memref<128xf32, #tpu.memory_space<smem>>
    %c84 = arith.constant 84 : index
    %119 = memref.load %arg5[%c84] : memref<128xf32, #tpu.memory_space<smem>>
    %c85 = arith.constant 85 : index
    %120 = memref.load %arg5[%c85] : memref<128xf32, #tpu.memory_space<smem>>
    %c86 = arith.constant 86 : index
    %121 = memref.load %arg5[%c86] : memref<128xf32, #tpu.memory_space<smem>>
    %c87 = arith.constant 87 : index
    %122 = memref.load %arg5[%c87] : memref<128xf32, #tpu.memory_space<smem>>
    %c88 = arith.constant 88 : index
    %123 = memref.load %arg5[%c88] : memref<128xf32, #tpu.memory_space<smem>>
    %c89 = arith.constant 89 : index
    %124 = memref.load %arg5[%c89] : memref<128xf32, #tpu.memory_space<smem>>
    %c90 = arith.constant 90 : index
    %125 = memref.load %arg5[%c90] : memref<128xf32, #tpu.memory_space<smem>>
    %c91 = arith.constant 91 : index
    %126 = memref.load %arg5[%c91] : memref<128xf32, #tpu.memory_space<smem>>
    %c92 = arith.constant 92 : index
    %127 = memref.load %arg5[%c92] : memref<128xf32, #tpu.memory_space<smem>>
    %c93 = arith.constant 93 : index
    %128 = memref.load %arg5[%c93] : memref<128xf32, #tpu.memory_space<smem>>
    %c94 = arith.constant 94 : index
    %129 = memref.load %arg5[%c94] : memref<128xf32, #tpu.memory_space<smem>>
    %c95 = arith.constant 95 : index
    %130 = memref.load %arg5[%c95] : memref<128xf32, #tpu.memory_space<smem>>
    %c96 = arith.constant 96 : index
    %131 = memref.load %arg5[%c96] : memref<128xf32, #tpu.memory_space<smem>>
    %c97 = arith.constant 97 : index
    %132 = memref.load %arg5[%c97] : memref<128xf32, #tpu.memory_space<smem>>
    %c98 = arith.constant 98 : index
    %133 = memref.load %arg5[%c98] : memref<128xf32, #tpu.memory_space<smem>>
    %c99 = arith.constant 99 : index
    %134 = memref.load %arg5[%c99] : memref<128xf32, #tpu.memory_space<smem>>
    %c100 = arith.constant 100 : index
    %135 = memref.load %arg5[%c100] : memref<128xf32, #tpu.memory_space<smem>>
    %c101 = arith.constant 101 : index
    %136 = memref.load %arg5[%c101] : memref<128xf32, #tpu.memory_space<smem>>
    %c102 = arith.constant 102 : index
    %137 = memref.load %arg5[%c102] : memref<128xf32, #tpu.memory_space<smem>>
    %c103 = arith.constant 103 : index
    %138 = memref.load %arg5[%c103] : memref<128xf32, #tpu.memory_space<smem>>
    %c104 = arith.constant 104 : index
    %139 = memref.load %arg5[%c104] : memref<128xf32, #tpu.memory_space<smem>>
    %c105 = arith.constant 105 : index
    %140 = memref.load %arg5[%c105] : memref<128xf32, #tpu.memory_space<smem>>
    %c106 = arith.constant 106 : index
    %141 = memref.load %arg5[%c106] : memref<128xf32, #tpu.memory_space<smem>>
    %c107 = arith.constant 107 : index
    %142 = memref.load %arg5[%c107] : memref<128xf32, #tpu.memory_space<smem>>
    %c108 = arith.constant 108 : index
    %143 = memref.load %arg5[%c108] : memref<128xf32, #tpu.memory_space<smem>>
    %c109 = arith.constant 109 : index
    %144 = memref.load %arg5[%c109] : memref<128xf32, #tpu.memory_space<smem>>
    %c110 = arith.constant 110 : index
    %145 = memref.load %arg5[%c110] : memref<128xf32, #tpu.memory_space<smem>>
    %c111 = arith.constant 111 : index
    %146 = memref.load %arg5[%c111] : memref<128xf32, #tpu.memory_space<smem>>
    %c112 = arith.constant 112 : index
    %147 = memref.load %arg5[%c112] : memref<128xf32, #tpu.memory_space<smem>>
    %c113 = arith.constant 113 : index
    %148 = memref.load %arg5[%c113] : memref<128xf32, #tpu.memory_space<smem>>
    %c114 = arith.constant 114 : index
    %149 = memref.load %arg5[%c114] : memref<128xf32, #tpu.memory_space<smem>>
    %c115 = arith.constant 115 : index
    %150 = memref.load %arg5[%c115] : memref<128xf32, #tpu.memory_space<smem>>
    %c116 = arith.constant 116 : index
    %151 = memref.load %arg5[%c116] : memref<128xf32, #tpu.memory_space<smem>>
    %c117 = arith.constant 117 : index
    %152 = memref.load %arg5[%c117] : memref<128xf32, #tpu.memory_space<smem>>
    %c118 = arith.constant 118 : index
    %153 = memref.load %arg5[%c118] : memref<128xf32, #tpu.memory_space<smem>>
    %c119 = arith.constant 119 : index
    %154 = memref.load %arg5[%c119] : memref<128xf32, #tpu.memory_space<smem>>
    %c120 = arith.constant 120 : index
    %155 = memref.load %arg5[%c120] : memref<128xf32, #tpu.memory_space<smem>>
    %c121 = arith.constant 121 : index
    %156 = memref.load %arg5[%c121] : memref<128xf32, #tpu.memory_space<smem>>
    %c122 = arith.constant 122 : index
    %157 = memref.load %arg5[%c122] : memref<128xf32, #tpu.memory_space<smem>>
    %c123 = arith.constant 123 : index
    %158 = memref.load %arg5[%c123] : memref<128xf32, #tpu.memory_space<smem>>
    %c124 = arith.constant 124 : index
    %159 = memref.load %arg5[%c124] : memref<128xf32, #tpu.memory_space<smem>>
    %c125 = arith.constant 125 : index
    %160 = memref.load %arg5[%c125] : memref<128xf32, #tpu.memory_space<smem>>
    %c126 = arith.constant 126 : index
    %161 = memref.load %arg5[%c126] : memref<128xf32, #tpu.memory_space<smem>>
    %c127 = arith.constant 127 : index
    %162 = memref.load %arg5[%c127] : memref<128xf32, #tpu.memory_space<smem>>
    %c0_33 = arith.constant 0 : index
    %163 = memref.load %arg6[%c0_33] : memref<128xf32, #tpu.memory_space<smem>>
    %c1_34 = arith.constant 1 : index
    %164 = memref.load %arg6[%c1_34] : memref<128xf32, #tpu.memory_space<smem>>
    %c2_35 = arith.constant 2 : index
    %165 = memref.load %arg6[%c2_35] : memref<128xf32, #tpu.memory_space<smem>>
    %c3_36 = arith.constant 3 : index
    %166 = memref.load %arg6[%c3_36] : memref<128xf32, #tpu.memory_space<smem>>
    %c4_37 = arith.constant 4 : index
    %167 = memref.load %arg6[%c4_37] : memref<128xf32, #tpu.memory_space<smem>>
    %c5_38 = arith.constant 5 : index
    %168 = memref.load %arg6[%c5_38] : memref<128xf32, #tpu.memory_space<smem>>
    %c6_39 = arith.constant 6 : index
    %169 = memref.load %arg6[%c6_39] : memref<128xf32, #tpu.memory_space<smem>>
    %c7_40 = arith.constant 7 : index
    %170 = memref.load %arg6[%c7_40] : memref<128xf32, #tpu.memory_space<smem>>
    %c8_41 = arith.constant 8 : index
    %171 = memref.load %arg6[%c8_41] : memref<128xf32, #tpu.memory_space<smem>>
    %c9_42 = arith.constant 9 : index
    %172 = memref.load %arg6[%c9_42] : memref<128xf32, #tpu.memory_space<smem>>
    %c10_43 = arith.constant 10 : index
    %173 = memref.load %arg6[%c10_43] : memref<128xf32, #tpu.memory_space<smem>>
    %c11_44 = arith.constant 11 : index
    %174 = memref.load %arg6[%c11_44] : memref<128xf32, #tpu.memory_space<smem>>
    %c12_45 = arith.constant 12 : index
    %175 = memref.load %arg6[%c12_45] : memref<128xf32, #tpu.memory_space<smem>>
    %c13_46 = arith.constant 13 : index
    %176 = memref.load %arg6[%c13_46] : memref<128xf32, #tpu.memory_space<smem>>
    %c14_47 = arith.constant 14 : index
    %177 = memref.load %arg6[%c14_47] : memref<128xf32, #tpu.memory_space<smem>>
    %c15_48 = arith.constant 15 : index
    %178 = memref.load %arg6[%c15_48] : memref<128xf32, #tpu.memory_space<smem>>
    %c16_49 = arith.constant 16 : index
    %179 = memref.load %arg6[%c16_49] : memref<128xf32, #tpu.memory_space<smem>>
    %c17_50 = arith.constant 17 : index
    %180 = memref.load %arg6[%c17_50] : memref<128xf32, #tpu.memory_space<smem>>
    %c18_51 = arith.constant 18 : index
    %181 = memref.load %arg6[%c18_51] : memref<128xf32, #tpu.memory_space<smem>>
    %c19_52 = arith.constant 19 : index
    %182 = memref.load %arg6[%c19_52] : memref<128xf32, #tpu.memory_space<smem>>
    %c20_53 = arith.constant 20 : index
    %183 = memref.load %arg6[%c20_53] : memref<128xf32, #tpu.memory_space<smem>>
    %c21_54 = arith.constant 21 : index
    %184 = memref.load %arg6[%c21_54] : memref<128xf32, #tpu.memory_space<smem>>
    %c22_55 = arith.constant 22 : index
    %185 = memref.load %arg6[%c22_55] : memref<128xf32, #tpu.memory_space<smem>>
    %c23_56 = arith.constant 23 : index
    %186 = memref.load %arg6[%c23_56] : memref<128xf32, #tpu.memory_space<smem>>
    %c24_57 = arith.constant 24 : index
    %187 = memref.load %arg6[%c24_57] : memref<128xf32, #tpu.memory_space<smem>>
    %c25_58 = arith.constant 25 : index
    %188 = memref.load %arg6[%c25_58] : memref<128xf32, #tpu.memory_space<smem>>
    %c26_59 = arith.constant 26 : index
    %189 = memref.load %arg6[%c26_59] : memref<128xf32, #tpu.memory_space<smem>>
    %c27_60 = arith.constant 27 : index
    %190 = memref.load %arg6[%c27_60] : memref<128xf32, #tpu.memory_space<smem>>
    %c28_61 = arith.constant 28 : index
    %191 = memref.load %arg6[%c28_61] : memref<128xf32, #tpu.memory_space<smem>>
    %c29_62 = arith.constant 29 : index
    %192 = memref.load %arg6[%c29_62] : memref<128xf32, #tpu.memory_space<smem>>
    %c30_63 = arith.constant 30 : index
    %193 = memref.load %arg6[%c30_63] : memref<128xf32, #tpu.memory_space<smem>>
    %c31_64 = arith.constant 31 : index
    %194 = memref.load %arg6[%c31_64] : memref<128xf32, #tpu.memory_space<smem>>
    %c32_65 = arith.constant 32 : index
    %195 = memref.load %arg6[%c32_65] : memref<128xf32, #tpu.memory_space<smem>>
    %c33_66 = arith.constant 33 : index
    %196 = memref.load %arg6[%c33_66] : memref<128xf32, #tpu.memory_space<smem>>
    %c34_67 = arith.constant 34 : index
    %197 = memref.load %arg6[%c34_67] : memref<128xf32, #tpu.memory_space<smem>>
    %c35_68 = arith.constant 35 : index
    %198 = memref.load %arg6[%c35_68] : memref<128xf32, #tpu.memory_space<smem>>
    %c36_69 = arith.constant 36 : index
    %199 = memref.load %arg6[%c36_69] : memref<128xf32, #tpu.memory_space<smem>>
    %c37_70 = arith.constant 37 : index
    %200 = memref.load %arg6[%c37_70] : memref<128xf32, #tpu.memory_space<smem>>
    %c38_71 = arith.constant 38 : index
    %201 = memref.load %arg6[%c38_71] : memref<128xf32, #tpu.memory_space<smem>>
    %c39_72 = arith.constant 39 : index
    %202 = memref.load %arg6[%c39_72] : memref<128xf32, #tpu.memory_space<smem>>
    %c40_73 = arith.constant 40 : index
    %203 = memref.load %arg6[%c40_73] : memref<128xf32, #tpu.memory_space<smem>>
    %c41_74 = arith.constant 41 : index
    %204 = memref.load %arg6[%c41_74] : memref<128xf32, #tpu.memory_space<smem>>
    %c42_75 = arith.constant 42 : index
    %205 = memref.load %arg6[%c42_75] : memref<128xf32, #tpu.memory_space<smem>>
    %c43_76 = arith.constant 43 : index
    %206 = memref.load %arg6[%c43_76] : memref<128xf32, #tpu.memory_space<smem>>
    %c44_77 = arith.constant 44 : index
    %207 = memref.load %arg6[%c44_77] : memref<128xf32, #tpu.memory_space<smem>>
    %c45_78 = arith.constant 45 : index
    %208 = memref.load %arg6[%c45_78] : memref<128xf32, #tpu.memory_space<smem>>
    %c46_79 = arith.constant 46 : index
    %209 = memref.load %arg6[%c46_79] : memref<128xf32, #tpu.memory_space<smem>>
    %c47_80 = arith.constant 47 : index
    %210 = memref.load %arg6[%c47_80] : memref<128xf32, #tpu.memory_space<smem>>
    %c48_81 = arith.constant 48 : index
    %211 = memref.load %arg6[%c48_81] : memref<128xf32, #tpu.memory_space<smem>>
    %c49_82 = arith.constant 49 : index
    %212 = memref.load %arg6[%c49_82] : memref<128xf32, #tpu.memory_space<smem>>
    %c50_83 = arith.constant 50 : index
    %213 = memref.load %arg6[%c50_83] : memref<128xf32, #tpu.memory_space<smem>>
    %c51_84 = arith.constant 51 : index
    %214 = memref.load %arg6[%c51_84] : memref<128xf32, #tpu.memory_space<smem>>
    %c52_85 = arith.constant 52 : index
    %215 = memref.load %arg6[%c52_85] : memref<128xf32, #tpu.memory_space<smem>>
    %c53_86 = arith.constant 53 : index
    %216 = memref.load %arg6[%c53_86] : memref<128xf32, #tpu.memory_space<smem>>
    %c54_87 = arith.constant 54 : index
    %217 = memref.load %arg6[%c54_87] : memref<128xf32, #tpu.memory_space<smem>>
    %c55_88 = arith.constant 55 : index
    %218 = memref.load %arg6[%c55_88] : memref<128xf32, #tpu.memory_space<smem>>
    %c56_89 = arith.constant 56 : index
    %219 = memref.load %arg6[%c56_89] : memref<128xf32, #tpu.memory_space<smem>>
    %c57_90 = arith.constant 57 : index
    %220 = memref.load %arg6[%c57_90] : memref<128xf32, #tpu.memory_space<smem>>
    %c58_91 = arith.constant 58 : index
    %221 = memref.load %arg6[%c58_91] : memref<128xf32, #tpu.memory_space<smem>>
    %c59_92 = arith.constant 59 : index
    %222 = memref.load %arg6[%c59_92] : memref<128xf32, #tpu.memory_space<smem>>
    %c60_93 = arith.constant 60 : index
    %223 = memref.load %arg6[%c60_93] : memref<128xf32, #tpu.memory_space<smem>>
    %c61_94 = arith.constant 61 : index
    %224 = memref.load %arg6[%c61_94] : memref<128xf32, #tpu.memory_space<smem>>
    %c62_95 = arith.constant 62 : index
    %225 = memref.load %arg6[%c62_95] : memref<128xf32, #tpu.memory_space<smem>>
    %c63_96 = arith.constant 63 : index
    %226 = memref.load %arg6[%c63_96] : memref<128xf32, #tpu.memory_space<smem>>
    %c64_97 = arith.constant 64 : index
    %227 = memref.load %arg6[%c64_97] : memref<128xf32, #tpu.memory_space<smem>>
    %c65_98 = arith.constant 65 : index
    %228 = memref.load %arg6[%c65_98] : memref<128xf32, #tpu.memory_space<smem>>
    %c66_99 = arith.constant 66 : index
    %229 = memref.load %arg6[%c66_99] : memref<128xf32, #tpu.memory_space<smem>>
    %c67_100 = arith.constant 67 : index
    %230 = memref.load %arg6[%c67_100] : memref<128xf32, #tpu.memory_space<smem>>
    %c68_101 = arith.constant 68 : index
    %231 = memref.load %arg6[%c68_101] : memref<128xf32, #tpu.memory_space<smem>>
    %c69_102 = arith.constant 69 : index
    %232 = memref.load %arg6[%c69_102] : memref<128xf32, #tpu.memory_space<smem>>
    %c70_103 = arith.constant 70 : index
    %233 = memref.load %arg6[%c70_103] : memref<128xf32, #tpu.memory_space<smem>>
    %c71_104 = arith.constant 71 : index
    %234 = memref.load %arg6[%c71_104] : memref<128xf32, #tpu.memory_space<smem>>
    %c72_105 = arith.constant 72 : index
    %235 = memref.load %arg6[%c72_105] : memref<128xf32, #tpu.memory_space<smem>>
    %c73_106 = arith.constant 73 : index
    %236 = memref.load %arg6[%c73_106] : memref<128xf32, #tpu.memory_space<smem>>
    %c74_107 = arith.constant 74 : index
    %237 = memref.load %arg6[%c74_107] : memref<128xf32, #tpu.memory_space<smem>>
    %c75_108 = arith.constant 75 : index
    %238 = memref.load %arg6[%c75_108] : memref<128xf32, #tpu.memory_space<smem>>
    %c76_109 = arith.constant 76 : index
    %239 = memref.load %arg6[%c76_109] : memref<128xf32, #tpu.memory_space<smem>>
    %c77_110 = arith.constant 77 : index
    %240 = memref.load %arg6[%c77_110] : memref<128xf32, #tpu.memory_space<smem>>
    %c78_111 = arith.constant 78 : index
    %241 = memref.load %arg6[%c78_111] : memref<128xf32, #tpu.memory_space<smem>>
    %c79_112 = arith.constant 79 : index
    %242 = memref.load %arg6[%c79_112] : memref<128xf32, #tpu.memory_space<smem>>
    %c80_113 = arith.constant 80 : index
    %243 = memref.load %arg6[%c80_113] : memref<128xf32, #tpu.memory_space<smem>>
    %c81_114 = arith.constant 81 : index
    %244 = memref.load %arg6[%c81_114] : memref<128xf32, #tpu.memory_space<smem>>
    %c82_115 = arith.constant 82 : index
    %245 = memref.load %arg6[%c82_115] : memref<128xf32, #tpu.memory_space<smem>>
    %c83_116 = arith.constant 83 : index
    %246 = memref.load %arg6[%c83_116] : memref<128xf32, #tpu.memory_space<smem>>
    %c84_117 = arith.constant 84 : index
    %247 = memref.load %arg6[%c84_117] : memref<128xf32, #tpu.memory_space<smem>>
    %c85_118 = arith.constant 85 : index
    %248 = memref.load %arg6[%c85_118] : memref<128xf32, #tpu.memory_space<smem>>
    %c86_119 = arith.constant 86 : index
    %249 = memref.load %arg6[%c86_119] : memref<128xf32, #tpu.memory_space<smem>>
    %c87_120 = arith.constant 87 : index
    %250 = memref.load %arg6[%c87_120] : memref<128xf32, #tpu.memory_space<smem>>
    %c88_121 = arith.constant 88 : index
    %251 = memref.load %arg6[%c88_121] : memref<128xf32, #tpu.memory_space<smem>>
    %c89_122 = arith.constant 89 : index
    %252 = memref.load %arg6[%c89_122] : memref<128xf32, #tpu.memory_space<smem>>
    %c90_123 = arith.constant 90 : index
    %253 = memref.load %arg6[%c90_123] : memref<128xf32, #tpu.memory_space<smem>>
    %c91_124 = arith.constant 91 : index
    %254 = memref.load %arg6[%c91_124] : memref<128xf32, #tpu.memory_space<smem>>
    %c92_125 = arith.constant 92 : index
    %255 = memref.load %arg6[%c92_125] : memref<128xf32, #tpu.memory_space<smem>>
    %c93_126 = arith.constant 93 : index
    %256 = memref.load %arg6[%c93_126] : memref<128xf32, #tpu.memory_space<smem>>
    %c94_127 = arith.constant 94 : index
    %257 = memref.load %arg6[%c94_127] : memref<128xf32, #tpu.memory_space<smem>>
    %c95_128 = arith.constant 95 : index
    %258 = memref.load %arg6[%c95_128] : memref<128xf32, #tpu.memory_space<smem>>
    %c96_129 = arith.constant 96 : index
    %259 = memref.load %arg6[%c96_129] : memref<128xf32, #tpu.memory_space<smem>>
    %c97_130 = arith.constant 97 : index
    %260 = memref.load %arg6[%c97_130] : memref<128xf32, #tpu.memory_space<smem>>
    %c98_131 = arith.constant 98 : index
    %261 = memref.load %arg6[%c98_131] : memref<128xf32, #tpu.memory_space<smem>>
    %c99_132 = arith.constant 99 : index
    %262 = memref.load %arg6[%c99_132] : memref<128xf32, #tpu.memory_space<smem>>
    %c100_133 = arith.constant 100 : index
    %263 = memref.load %arg6[%c100_133] : memref<128xf32, #tpu.memory_space<smem>>
    %c101_134 = arith.constant 101 : index
    %264 = memref.load %arg6[%c101_134] : memref<128xf32, #tpu.memory_space<smem>>
    %c102_135 = arith.constant 102 : index
    %265 = memref.load %arg6[%c102_135] : memref<128xf32, #tpu.memory_space<smem>>
    %c103_136 = arith.constant 103 : index
    %266 = memref.load %arg6[%c103_136] : memref<128xf32, #tpu.memory_space<smem>>
    %c104_137 = arith.constant 104 : index
    %267 = memref.load %arg6[%c104_137] : memref<128xf32, #tpu.memory_space<smem>>
    %c105_138 = arith.constant 105 : index
    %268 = memref.load %arg6[%c105_138] : memref<128xf32, #tpu.memory_space<smem>>
    %c106_139 = arith.constant 106 : index
    %269 = memref.load %arg6[%c106_139] : memref<128xf32, #tpu.memory_space<smem>>
    %c107_140 = arith.constant 107 : index
    %270 = memref.load %arg6[%c107_140] : memref<128xf32, #tpu.memory_space<smem>>
    %c108_141 = arith.constant 108 : index
    %271 = memref.load %arg6[%c108_141] : memref<128xf32, #tpu.memory_space<smem>>
    %c109_142 = arith.constant 109 : index
    %272 = memref.load %arg6[%c109_142] : memref<128xf32, #tpu.memory_space<smem>>
    %c110_143 = arith.constant 110 : index
    %273 = memref.load %arg6[%c110_143] : memref<128xf32, #tpu.memory_space<smem>>
    %c111_144 = arith.constant 111 : index
    %274 = memref.load %arg6[%c111_144] : memref<128xf32, #tpu.memory_space<smem>>
    %c112_145 = arith.constant 112 : index
    %275 = memref.load %arg6[%c112_145] : memref<128xf32, #tpu.memory_space<smem>>
    %c113_146 = arith.constant 113 : index
    %276 = memref.load %arg6[%c113_146] : memref<128xf32, #tpu.memory_space<smem>>
    %c114_147 = arith.constant 114 : index
    %277 = memref.load %arg6[%c114_147] : memref<128xf32, #tpu.memory_space<smem>>
    %c115_148 = arith.constant 115 : index
    %278 = memref.load %arg6[%c115_148] : memref<128xf32, #tpu.memory_space<smem>>
    %c116_149 = arith.constant 116 : index
    %279 = memref.load %arg6[%c116_149] : memref<128xf32, #tpu.memory_space<smem>>
    %c117_150 = arith.constant 117 : index
    %280 = memref.load %arg6[%c117_150] : memref<128xf32, #tpu.memory_space<smem>>
    %c118_151 = arith.constant 118 : index
    %281 = memref.load %arg6[%c118_151] : memref<128xf32, #tpu.memory_space<smem>>
    %c119_152 = arith.constant 119 : index
    %282 = memref.load %arg6[%c119_152] : memref<128xf32, #tpu.memory_space<smem>>
    %c120_153 = arith.constant 120 : index
    %283 = memref.load %arg6[%c120_153] : memref<128xf32, #tpu.memory_space<smem>>
    %c121_154 = arith.constant 121 : index
    %284 = memref.load %arg6[%c121_154] : memref<128xf32, #tpu.memory_space<smem>>
    %c122_155 = arith.constant 122 : index
    %285 = memref.load %arg6[%c122_155] : memref<128xf32, #tpu.memory_space<smem>>
    %c123_156 = arith.constant 123 : index
    %286 = memref.load %arg6[%c123_156] : memref<128xf32, #tpu.memory_space<smem>>
    %c124_157 = arith.constant 124 : index
    %287 = memref.load %arg6[%c124_157] : memref<128xf32, #tpu.memory_space<smem>>
    %c125_158 = arith.constant 125 : index
    %288 = memref.load %arg6[%c125_158] : memref<128xf32, #tpu.memory_space<smem>>
    %c126_159 = arith.constant 126 : index
    %289 = memref.load %arg6[%c126_159] : memref<128xf32, #tpu.memory_space<smem>>
    %c127_160 = arith.constant 127 : index
    %290 = memref.load %arg6[%c127_160] : memref<128xf32, #tpu.memory_space<smem>>
    %c0_161 = arith.constant 0 : index
    %291 = memref.load %arg7[%c0_161] : memref<16xf32, #tpu.memory_space<smem>>
    %c1_162 = arith.constant 1 : index
    %292 = memref.load %arg7[%c1_162] : memref<16xf32, #tpu.memory_space<smem>>
    %c2_163 = arith.constant 2 : index
    %293 = memref.load %arg7[%c2_163] : memref<16xf32, #tpu.memory_space<smem>>
    %c3_164 = arith.constant 3 : index
    %294 = memref.load %arg7[%c3_164] : memref<16xf32, #tpu.memory_space<smem>>
    %c4_165 = arith.constant 4 : index
    %295 = memref.load %arg7[%c4_165] : memref<16xf32, #tpu.memory_space<smem>>
    %c5_166 = arith.constant 5 : index
    %296 = memref.load %arg7[%c5_166] : memref<16xf32, #tpu.memory_space<smem>>
    %c6_167 = arith.constant 6 : index
    %297 = memref.load %arg7[%c6_167] : memref<16xf32, #tpu.memory_space<smem>>
    %c7_168 = arith.constant 7 : index
    %298 = memref.load %arg7[%c7_168] : memref<16xf32, #tpu.memory_space<smem>>
    %c8_169 = arith.constant 8 : index
    %299 = memref.load %arg7[%c8_169] : memref<16xf32, #tpu.memory_space<smem>>
    %c9_170 = arith.constant 9 : index
    %300 = memref.load %arg7[%c9_170] : memref<16xf32, #tpu.memory_space<smem>>
    %c10_171 = arith.constant 10 : index
    %301 = memref.load %arg7[%c10_171] : memref<16xf32, #tpu.memory_space<smem>>
    %c11_172 = arith.constant 11 : index
    %302 = memref.load %arg7[%c11_172] : memref<16xf32, #tpu.memory_space<smem>>
    %c12_173 = arith.constant 12 : index
    %303 = memref.load %arg7[%c12_173] : memref<16xf32, #tpu.memory_space<smem>>
    %c13_174 = arith.constant 13 : index
    %304 = memref.load %arg7[%c13_174] : memref<16xf32, #tpu.memory_space<smem>>
    %c14_175 = arith.constant 14 : index
    %305 = memref.load %arg7[%c14_175] : memref<16xf32, #tpu.memory_space<smem>>
    %c15_176 = arith.constant 15 : index
    %306 = memref.load %arg7[%c15_176] : memref<16xf32, #tpu.memory_space<smem>>
    %c0_177 = arith.constant 0 : index
    %307 = memref.load %arg8[%c0_177] : memref<32xf32, #tpu.memory_space<smem>>
    %c1_178 = arith.constant 1 : index
    %308 = memref.load %arg8[%c1_178] : memref<32xf32, #tpu.memory_space<smem>>
    %c2_179 = arith.constant 2 : index
    %309 = memref.load %arg8[%c2_179] : memref<32xf32, #tpu.memory_space<smem>>
    %c3_180 = arith.constant 3 : index
    %310 = memref.load %arg8[%c3_180] : memref<32xf32, #tpu.memory_space<smem>>
    %c4_181 = arith.constant 4 : index
    %311 = memref.load %arg8[%c4_181] : memref<32xf32, #tpu.memory_space<smem>>
    %c5_182 = arith.constant 5 : index
    %312 = memref.load %arg8[%c5_182] : memref<32xf32, #tpu.memory_space<smem>>
    %c6_183 = arith.constant 6 : index
    %313 = memref.load %arg8[%c6_183] : memref<32xf32, #tpu.memory_space<smem>>
    %c7_184 = arith.constant 7 : index
    %314 = memref.load %arg8[%c7_184] : memref<32xf32, #tpu.memory_space<smem>>
    %c8_185 = arith.constant 8 : index
    %315 = memref.load %arg8[%c8_185] : memref<32xf32, #tpu.memory_space<smem>>
    %c9_186 = arith.constant 9 : index
    %316 = memref.load %arg8[%c9_186] : memref<32xf32, #tpu.memory_space<smem>>
    %c10_187 = arith.constant 10 : index
    %317 = memref.load %arg8[%c10_187] : memref<32xf32, #tpu.memory_space<smem>>
    %c11_188 = arith.constant 11 : index
    %318 = memref.load %arg8[%c11_188] : memref<32xf32, #tpu.memory_space<smem>>
    %c12_189 = arith.constant 12 : index
    %319 = memref.load %arg8[%c12_189] : memref<32xf32, #tpu.memory_space<smem>>
    %c13_190 = arith.constant 13 : index
    %320 = memref.load %arg8[%c13_190] : memref<32xf32, #tpu.memory_space<smem>>
    %c14_191 = arith.constant 14 : index
    %321 = memref.load %arg8[%c14_191] : memref<32xf32, #tpu.memory_space<smem>>
    %c15_192 = arith.constant 15 : index
    %322 = memref.load %arg8[%c15_192] : memref<32xf32, #tpu.memory_space<smem>>
    %c16_193 = arith.constant 16 : index
    %323 = memref.load %arg8[%c16_193] : memref<32xf32, #tpu.memory_space<smem>>
    %c17_194 = arith.constant 17 : index
    %324 = memref.load %arg8[%c17_194] : memref<32xf32, #tpu.memory_space<smem>>
    %c18_195 = arith.constant 18 : index
    %325 = memref.load %arg8[%c18_195] : memref<32xf32, #tpu.memory_space<smem>>
    %c19_196 = arith.constant 19 : index
    %326 = memref.load %arg8[%c19_196] : memref<32xf32, #tpu.memory_space<smem>>
    %c20_197 = arith.constant 20 : index
    %327 = memref.load %arg8[%c20_197] : memref<32xf32, #tpu.memory_space<smem>>
    %c21_198 = arith.constant 21 : index
    %328 = memref.load %arg8[%c21_198] : memref<32xf32, #tpu.memory_space<smem>>
    %c22_199 = arith.constant 22 : index
    %329 = memref.load %arg8[%c22_199] : memref<32xf32, #tpu.memory_space<smem>>
    %c23_200 = arith.constant 23 : index
    %330 = memref.load %arg8[%c23_200] : memref<32xf32, #tpu.memory_space<smem>>
    %c24_201 = arith.constant 24 : index
    %331 = memref.load %arg8[%c24_201] : memref<32xf32, #tpu.memory_space<smem>>
    %c25_202 = arith.constant 25 : index
    %332 = memref.load %arg8[%c25_202] : memref<32xf32, #tpu.memory_space<smem>>
    %c26_203 = arith.constant 26 : index
    %333 = memref.load %arg8[%c26_203] : memref<32xf32, #tpu.memory_space<smem>>
    %c27_204 = arith.constant 27 : index
    %334 = memref.load %arg8[%c27_204] : memref<32xf32, #tpu.memory_space<smem>>
    %c28_205 = arith.constant 28 : index
    %335 = memref.load %arg8[%c28_205] : memref<32xf32, #tpu.memory_space<smem>>
    %c29_206 = arith.constant 29 : index
    %336 = memref.load %arg8[%c29_206] : memref<32xf32, #tpu.memory_space<smem>>
    %c30_207 = arith.constant 30 : index
    %337 = memref.load %arg8[%c30_207] : memref<32xf32, #tpu.memory_space<smem>>
    %c31_208 = arith.constant 31 : index
    %338 = memref.load %arg8[%c31_208] : memref<32xf32, #tpu.memory_space<smem>>
    %c0_209 = arith.constant 0 : index
    %339 = memref.load %arg9[%c0_209] : memref<4xf32, #tpu.memory_space<smem>>
    %c1_210 = arith.constant 1 : index
    %340 = memref.load %arg9[%c1_210] : memref<4xf32, #tpu.memory_space<smem>>
    %c2_211 = arith.constant 2 : index
    %341 = memref.load %arg9[%c2_211] : memref<4xf32, #tpu.memory_space<smem>>
    %c3_212 = arith.constant 3 : index
    %342 = memref.load %arg9[%c3_212] : memref<4xf32, #tpu.memory_space<smem>>
    %c0_i32_213 = arith.constant 0 : i32
    %c16_i32 = arith.constant 16 : i32
    %343 = arith.muli %c0_i32_213, %c16_i32 : i32
    %344 = tpu.assume_multiple %343, 16 : i32
    %c0_214 = arith.constant 0 : index
    %c0_215 = arith.constant 0 : index
    %345 = arith.index_cast %344 : i32 to index
    %c0_216 = arith.constant 0 : index
    %346 = vector.load %arg2[%c0_214, %c0_215, %345, %c0_216] : memref<1x3x16x128xf32, #tpu.memory_space<vmem>>, vector<1x1x16x128xf32>
    %347 = vector.shape_cast %346 : vector<1x1x16x128xf32> to vector<16x128xf32>
    %c0_217 = arith.constant 0 : index
    %c1_218 = arith.constant 1 : index
    %348 = arith.index_cast %344 : i32 to index
    %c0_219 = arith.constant 0 : index
    %349 = vector.load %arg2[%c0_217, %c1_218, %348, %c0_219] : memref<1x3x16x128xf32, #tpu.memory_space<vmem>>, vector<1x1x16x128xf32>
    %350 = vector.shape_cast %349 : vector<1x1x16x128xf32> to vector<16x128xf32>
    %c0_220 = arith.constant 0 : index
    %c2_221 = arith.constant 2 : index
    %351 = arith.index_cast %344 : i32 to index
    %c0_222 = arith.constant 0 : index
    %352 = vector.load %arg2[%c0_220, %c2_221, %351, %c0_222] : memref<1x3x16x128xf32, #tpu.memory_space<vmem>>, vector<1x1x16x128xf32>
    %353 = vector.shape_cast %352 : vector<1x1x16x128xf32> to vector<16x128xf32>
    %c0_223 = arith.constant 0 : index
    %354 = arith.index_cast %344 : i32 to index
    %c0_224 = arith.constant 0 : index
    %355 = vector.load %arg14[%c0_223, %354, %c0_224] : memref<8x16x128xf32, #tpu.memory_space<vmem>>, vector<1x16x128xf32>
    %356 = vector.shape_cast %355 : vector<1x16x128xf32> to vector<16x128xf32>
    %c1_225 = arith.constant 1 : index
    %357 = arith.index_cast %344 : i32 to index
    %c0_226 = arith.constant 0 : index
    %358 = vector.load %arg14[%c1_225, %357, %c0_226] : memref<8x16x128xf32, #tpu.memory_space<vmem>>, vector<1x16x128xf32>
    %359 = vector.shape_cast %358 : vector<1x16x128xf32> to vector<16x128xf32>
    %c2_227 = arith.constant 2 : index
    %360 = arith.index_cast %344 : i32 to index
    %c0_228 = arith.constant 0 : index
    %361 = vector.load %arg14[%c2_227, %360, %c0_228] : memref<8x16x128xf32, #tpu.memory_space<vmem>>, vector<1x16x128xf32>
    %362 = vector.shape_cast %361 : vector<1x16x128xf32> to vector<16x128xf32>
    %c3_229 = arith.constant 3 : index
    %363 = arith.index_cast %344 : i32 to index
    %c0_230 = arith.constant 0 : index
    %364 = vector.load %arg14[%c3_229, %363, %c0_230] : memref<8x16x128xf32, #tpu.memory_space<vmem>>, vector<1x16x128xf32>
    %365 = vector.shape_cast %364 : vector<1x16x128xf32> to vector<16x128xf32>
    %c4_231 = arith.constant 4 : index
    %366 = arith.index_cast %344 : i32 to index
    %c0_232 = arith.constant 0 : index
    %367 = vector.load %arg14[%c4_231, %366, %c0_232] : memref<8x16x128xf32, #tpu.memory_space<vmem>>, vector<1x16x128xf32>
    %368 = vector.shape_cast %367 : vector<1x16x128xf32> to vector<16x128xf32>
    %c5_233 = arith.constant 5 : index
    %369 = arith.index_cast %344 : i32 to index
    %c0_234 = arith.constant 0 : index
    %370 = vector.load %arg14[%c5_233, %369, %c0_234] : memref<8x16x128xf32, #tpu.memory_space<vmem>>, vector<1x16x128xf32>
    %371 = vector.shape_cast %370 : vector<1x16x128xf32> to vector<16x128xf32>
    %c6_235 = arith.constant 6 : index
    %372 = arith.index_cast %344 : i32 to index
    %c0_236 = arith.constant 0 : index
    %373 = vector.load %arg14[%c6_235, %372, %c0_236] : memref<8x16x128xf32, #tpu.memory_space<vmem>>, vector<1x16x128xf32>
    %374 = vector.shape_cast %373 : vector<1x16x128xf32> to vector<16x128xf32>
    %c7_237 = arith.constant 7 : index
    %375 = arith.index_cast %344 : i32 to index
    %c0_238 = arith.constant 0 : index
    %376 = vector.load %arg14[%c7_237, %375, %c0_238] : memref<8x16x128xf32, #tpu.memory_space<vmem>>, vector<1x16x128xf32>
    %377 = vector.shape_cast %376 : vector<1x16x128xf32> to vector<16x128xf32>
    %378 = vector.broadcast %3 : f32 to vector<16x128xf32>
    %379 = arith.mulf %378, %347 : vector<16x128xf32>
    %380 = vector.broadcast %4 : f32 to vector<16x128xf32>
    %381 = arith.mulf %380, %350 : vector<16x128xf32>
    %382 = arith.addf %379, %381 : vector<16x128xf32>
    %383 = vector.broadcast %5 : f32 to vector<16x128xf32>
    %384 = arith.mulf %383, %353 : vector<16x128xf32>
    %385 = arith.addf %382, %384 : vector<16x128xf32>
    %386 = vector.broadcast %27 : f32 to vector<16x128xf32>
    %387 = arith.addf %385, %386 : vector<16x128xf32>
    %cst = arith.constant 0.000000e+00 : f32
    %388 = vector.broadcast %cst : f32 to vector<16x128xf32>
    %389 = arith.maximumf %387, %388 : vector<16x128xf32>
    %390 = vector.broadcast %6 : f32 to vector<16x128xf32>
    %391 = arith.mulf %390, %347 : vector<16x128xf32>
    %392 = vector.broadcast %7 : f32 to vector<16x128xf32>
    %393 = arith.mulf %392, %350 : vector<16x128xf32>
    %394 = arith.addf %391, %393 : vector<16x128xf32>
    %395 = vector.broadcast %8 : f32 to vector<16x128xf32>
    %396 = arith.mulf %395, %353 : vector<16x128xf32>
    %397 = arith.addf %394, %396 : vector<16x128xf32>
    %398 = vector.broadcast %28 : f32 to vector<16x128xf32>
    %399 = arith.addf %397, %398 : vector<16x128xf32>
    %cst_239 = arith.constant 0.000000e+00 : f32
    %400 = vector.broadcast %cst_239 : f32 to vector<16x128xf32>
    %401 = arith.maximumf %399, %400 : vector<16x128xf32>
    %402 = vector.broadcast %9 : f32 to vector<16x128xf32>
    %403 = arith.mulf %402, %347 : vector<16x128xf32>
    %404 = vector.broadcast %10 : f32 to vector<16x128xf32>
    %405 = arith.mulf %404, %350 : vector<16x128xf32>
    %406 = arith.addf %403, %405 : vector<16x128xf32>
    %407 = vector.broadcast %11 : f32 to vector<16x128xf32>
    %408 = arith.mulf %407, %353 : vector<16x128xf32>
    %409 = arith.addf %406, %408 : vector<16x128xf32>
    %410 = vector.broadcast %29 : f32 to vector<16x128xf32>
    %411 = arith.addf %409, %410 : vector<16x128xf32>
    %cst_240 = arith.constant 0.000000e+00 : f32
    %412 = vector.broadcast %cst_240 : f32 to vector<16x128xf32>
    %413 = arith.maximumf %411, %412 : vector<16x128xf32>
    %414 = vector.broadcast %12 : f32 to vector<16x128xf32>
    %415 = arith.mulf %414, %347 : vector<16x128xf32>
    %416 = vector.broadcast %13 : f32 to vector<16x128xf32>
    %417 = arith.mulf %416, %350 : vector<16x128xf32>
    %418 = arith.addf %415, %417 : vector<16x128xf32>
    %419 = vector.broadcast %14 : f32 to vector<16x128xf32>
    %420 = arith.mulf %419, %353 : vector<16x128xf32>
    %421 = arith.addf %418, %420 : vector<16x128xf32>
    %422 = vector.broadcast %30 : f32 to vector<16x128xf32>
    %423 = arith.addf %421, %422 : vector<16x128xf32>
    %cst_241 = arith.constant 0.000000e+00 : f32
    %424 = vector.broadcast %cst_241 : f32 to vector<16x128xf32>
    %425 = arith.maximumf %423, %424 : vector<16x128xf32>
    %426 = vector.broadcast %15 : f32 to vector<16x128xf32>
    %427 = arith.mulf %426, %347 : vector<16x128xf32>
    %428 = vector.broadcast %16 : f32 to vector<16x128xf32>
    %429 = arith.mulf %428, %350 : vector<16x128xf32>
    %430 = arith.addf %427, %429 : vector<16x128xf32>
    %431 = vector.broadcast %17 : f32 to vector<16x128xf32>
    %432 = arith.mulf %431, %353 : vector<16x128xf32>
    %433 = arith.addf %430, %432 : vector<16x128xf32>
    %434 = vector.broadcast %31 : f32 to vector<16x128xf32>
    %435 = arith.addf %433, %434 : vector<16x128xf32>
    %cst_242 = arith.constant 0.000000e+00 : f32
    %436 = vector.broadcast %cst_242 : f32 to vector<16x128xf32>
    %437 = arith.maximumf %435, %436 : vector<16x128xf32>
    %438 = vector.broadcast %18 : f32 to vector<16x128xf32>
    %439 = arith.mulf %438, %347 : vector<16x128xf32>
    %440 = vector.broadcast %19 : f32 to vector<16x128xf32>
    %441 = arith.mulf %440, %350 : vector<16x128xf32>
    %442 = arith.addf %439, %441 : vector<16x128xf32>
    %443 = vector.broadcast %20 : f32 to vector<16x128xf32>
    %444 = arith.mulf %443, %353 : vector<16x128xf32>
    %445 = arith.addf %442, %444 : vector<16x128xf32>
    %446 = vector.broadcast %32 : f32 to vector<16x128xf32>
    %447 = arith.addf %445, %446 : vector<16x128xf32>
    %cst_243 = arith.constant 0.000000e+00 : f32
    %448 = vector.broadcast %cst_243 : f32 to vector<16x128xf32>
    %449 = arith.maximumf %447, %448 : vector<16x128xf32>
    %450 = vector.broadcast %21 : f32 to vector<16x128xf32>
    %451 = arith.mulf %450, %347 : vector<16x128xf32>
    %452 = vector.broadcast %22 : f32 to vector<16x128xf32>
    %453 = arith.mulf %452, %350 : vector<16x128xf32>
    %454 = arith.addf %451, %453 : vector<16x128xf32>
    %455 = vector.broadcast %23 : f32 to vector<16x128xf32>
    %456 = arith.mulf %455, %353 : vector<16x128xf32>
    %457 = arith.addf %454, %456 : vector<16x128xf32>
    %458 = vector.broadcast %33 : f32 to vector<16x128xf32>
    %459 = arith.addf %457, %458 : vector<16x128xf32>
    %cst_244 = arith.constant 0.000000e+00 : f32
    %460 = vector.broadcast %cst_244 : f32 to vector<16x128xf32>
    %461 = arith.maximumf %459, %460 : vector<16x128xf32>
    %462 = vector.broadcast %24 : f32 to vector<16x128xf32>
    %463 = arith.mulf %462, %347 : vector<16x128xf32>
    %464 = vector.broadcast %25 : f32 to vector<16x128xf32>
    %465 = arith.mulf %464, %350 : vector<16x128xf32>
    %466 = arith.addf %463, %465 : vector<16x128xf32>
    %467 = vector.broadcast %26 : f32 to vector<16x128xf32>
    %468 = arith.mulf %467, %353 : vector<16x128xf32>
    %469 = arith.addf %466, %468 : vector<16x128xf32>
    %470 = vector.broadcast %34 : f32 to vector<16x128xf32>
    %471 = arith.addf %469, %470 : vector<16x128xf32>
    %cst_245 = arith.constant 0.000000e+00 : f32
    %472 = vector.broadcast %cst_245 : f32 to vector<16x128xf32>
    %473 = arith.maximumf %471, %472 : vector<16x128xf32>
    %474 = vector.broadcast %35 : f32 to vector<16x128xf32>
    %475 = arith.mulf %474, %389 : vector<16x128xf32>
    %476 = vector.broadcast %36 : f32 to vector<16x128xf32>
    %477 = arith.mulf %476, %401 : vector<16x128xf32>
    %478 = arith.addf %475, %477 : vector<16x128xf32>
    %479 = vector.broadcast %37 : f32 to vector<16x128xf32>
    %480 = arith.mulf %479, %413 : vector<16x128xf32>
    %481 = arith.addf %478, %480 : vector<16x128xf32>
    %482 = vector.broadcast %38 : f32 to vector<16x128xf32>
    %483 = arith.mulf %482, %425 : vector<16x128xf32>
    %484 = arith.addf %481, %483 : vector<16x128xf32>
    %485 = vector.broadcast %39 : f32 to vector<16x128xf32>
    %486 = arith.mulf %485, %437 : vector<16x128xf32>
    %487 = arith.addf %484, %486 : vector<16x128xf32>
    %488 = vector.broadcast %40 : f32 to vector<16x128xf32>
    %489 = arith.mulf %488, %449 : vector<16x128xf32>
    %490 = arith.addf %487, %489 : vector<16x128xf32>
    %491 = vector.broadcast %41 : f32 to vector<16x128xf32>
    %492 = arith.mulf %491, %461 : vector<16x128xf32>
    %493 = arith.addf %490, %492 : vector<16x128xf32>
    %494 = vector.broadcast %42 : f32 to vector<16x128xf32>
    %495 = arith.mulf %494, %473 : vector<16x128xf32>
    %496 = arith.addf %493, %495 : vector<16x128xf32>
    %497 = vector.broadcast %163 : f32 to vector<16x128xf32>
    %498 = arith.mulf %497, %356 : vector<16x128xf32>
    %499 = arith.addf %496, %498 : vector<16x128xf32>
    %500 = vector.broadcast %164 : f32 to vector<16x128xf32>
    %501 = arith.mulf %500, %359 : vector<16x128xf32>
    %502 = arith.addf %499, %501 : vector<16x128xf32>
    %503 = vector.broadcast %165 : f32 to vector<16x128xf32>
    %504 = arith.mulf %503, %362 : vector<16x128xf32>
    %505 = arith.addf %502, %504 : vector<16x128xf32>
    %506 = vector.broadcast %166 : f32 to vector<16x128xf32>
    %507 = arith.mulf %506, %365 : vector<16x128xf32>
    %508 = arith.addf %505, %507 : vector<16x128xf32>
    %509 = vector.broadcast %167 : f32 to vector<16x128xf32>
    %510 = arith.mulf %509, %368 : vector<16x128xf32>
    %511 = arith.addf %508, %510 : vector<16x128xf32>
    %512 = vector.broadcast %168 : f32 to vector<16x128xf32>
    %513 = arith.mulf %512, %371 : vector<16x128xf32>
    %514 = arith.addf %511, %513 : vector<16x128xf32>
    %515 = vector.broadcast %169 : f32 to vector<16x128xf32>
    %516 = arith.mulf %515, %374 : vector<16x128xf32>
    %517 = arith.addf %514, %516 : vector<16x128xf32>
    %518 = vector.broadcast %170 : f32 to vector<16x128xf32>
    %519 = arith.mulf %518, %377 : vector<16x128xf32>
    %520 = arith.addf %517, %519 : vector<16x128xf32>
    %521 = vector.broadcast %291 : f32 to vector<16x128xf32>
    %522 = arith.addf %520, %521 : vector<16x128xf32>
    %523 = vector.broadcast %43 : f32 to vector<16x128xf32>
    %524 = arith.mulf %523, %389 : vector<16x128xf32>
    %525 = vector.broadcast %44 : f32 to vector<16x128xf32>
    %526 = arith.mulf %525, %401 : vector<16x128xf32>
    %527 = arith.addf %524, %526 : vector<16x128xf32>
    %528 = vector.broadcast %45 : f32 to vector<16x128xf32>
    %529 = arith.mulf %528, %413 : vector<16x128xf32>
    %530 = arith.addf %527, %529 : vector<16x128xf32>
    %531 = vector.broadcast %46 : f32 to vector<16x128xf32>
    %532 = arith.mulf %531, %425 : vector<16x128xf32>
    %533 = arith.addf %530, %532 : vector<16x128xf32>
    %534 = vector.broadcast %47 : f32 to vector<16x128xf32>
    %535 = arith.mulf %534, %437 : vector<16x128xf32>
    %536 = arith.addf %533, %535 : vector<16x128xf32>
    %537 = vector.broadcast %48 : f32 to vector<16x128xf32>
    %538 = arith.mulf %537, %449 : vector<16x128xf32>
    %539 = arith.addf %536, %538 : vector<16x128xf32>
    %540 = vector.broadcast %49 : f32 to vector<16x128xf32>
    %541 = arith.mulf %540, %461 : vector<16x128xf32>
    %542 = arith.addf %539, %541 : vector<16x128xf32>
    %543 = vector.broadcast %50 : f32 to vector<16x128xf32>
    %544 = arith.mulf %543, %473 : vector<16x128xf32>
    %545 = arith.addf %542, %544 : vector<16x128xf32>
    %546 = vector.broadcast %171 : f32 to vector<16x128xf32>
    %547 = arith.mulf %546, %356 : vector<16x128xf32>
    %548 = arith.addf %545, %547 : vector<16x128xf32>
    %549 = vector.broadcast %172 : f32 to vector<16x128xf32>
    %550 = arith.mulf %549, %359 : vector<16x128xf32>
    %551 = arith.addf %548, %550 : vector<16x128xf32>
    %552 = vector.broadcast %173 : f32 to vector<16x128xf32>
    %553 = arith.mulf %552, %362 : vector<16x128xf32>
    %554 = arith.addf %551, %553 : vector<16x128xf32>
    %555 = vector.broadcast %174 : f32 to vector<16x128xf32>
    %556 = arith.mulf %555, %365 : vector<16x128xf32>
    %557 = arith.addf %554, %556 : vector<16x128xf32>
    %558 = vector.broadcast %175 : f32 to vector<16x128xf32>
    %559 = arith.mulf %558, %368 : vector<16x128xf32>
    %560 = arith.addf %557, %559 : vector<16x128xf32>
    %561 = vector.broadcast %176 : f32 to vector<16x128xf32>
    %562 = arith.mulf %561, %371 : vector<16x128xf32>
    %563 = arith.addf %560, %562 : vector<16x128xf32>
    %564 = vector.broadcast %177 : f32 to vector<16x128xf32>
    %565 = arith.mulf %564, %374 : vector<16x128xf32>
    %566 = arith.addf %563, %565 : vector<16x128xf32>
    %567 = vector.broadcast %178 : f32 to vector<16x128xf32>
    %568 = arith.mulf %567, %377 : vector<16x128xf32>
    %569 = arith.addf %566, %568 : vector<16x128xf32>
    %570 = vector.broadcast %292 : f32 to vector<16x128xf32>
    %571 = arith.addf %569, %570 : vector<16x128xf32>
    %572 = vector.broadcast %51 : f32 to vector<16x128xf32>
    %573 = arith.mulf %572, %389 : vector<16x128xf32>
    %574 = vector.broadcast %52 : f32 to vector<16x128xf32>
    %575 = arith.mulf %574, %401 : vector<16x128xf32>
    %576 = arith.addf %573, %575 : vector<16x128xf32>
    %577 = vector.broadcast %53 : f32 to vector<16x128xf32>
    %578 = arith.mulf %577, %413 : vector<16x128xf32>
    %579 = arith.addf %576, %578 : vector<16x128xf32>
    %580 = vector.broadcast %54 : f32 to vector<16x128xf32>
    %581 = arith.mulf %580, %425 : vector<16x128xf32>
    %582 = arith.addf %579, %581 : vector<16x128xf32>
    %583 = vector.broadcast %55 : f32 to vector<16x128xf32>
    %584 = arith.mulf %583, %437 : vector<16x128xf32>
    %585 = arith.addf %582, %584 : vector<16x128xf32>
    %586 = vector.broadcast %56 : f32 to vector<16x128xf32>
    %587 = arith.mulf %586, %449 : vector<16x128xf32>
    %588 = arith.addf %585, %587 : vector<16x128xf32>
    %589 = vector.broadcast %57 : f32 to vector<16x128xf32>
    %590 = arith.mulf %589, %461 : vector<16x128xf32>
    %591 = arith.addf %588, %590 : vector<16x128xf32>
    %592 = vector.broadcast %58 : f32 to vector<16x128xf32>
    %593 = arith.mulf %592, %473 : vector<16x128xf32>
    %594 = arith.addf %591, %593 : vector<16x128xf32>
    %595 = vector.broadcast %179 : f32 to vector<16x128xf32>
    %596 = arith.mulf %595, %356 : vector<16x128xf32>
    %597 = arith.addf %594, %596 : vector<16x128xf32>
    %598 = vector.broadcast %180 : f32 to vector<16x128xf32>
    %599 = arith.mulf %598, %359 : vector<16x128xf32>
    %600 = arith.addf %597, %599 : vector<16x128xf32>
    %601 = vector.broadcast %181 : f32 to vector<16x128xf32>
    %602 = arith.mulf %601, %362 : vector<16x128xf32>
    %603 = arith.addf %600, %602 : vector<16x128xf32>
    %604 = vector.broadcast %182 : f32 to vector<16x128xf32>
    %605 = arith.mulf %604, %365 : vector<16x128xf32>
    %606 = arith.addf %603, %605 : vector<16x128xf32>
    %607 = vector.broadcast %183 : f32 to vector<16x128xf32>
    %608 = arith.mulf %607, %368 : vector<16x128xf32>
    %609 = arith.addf %606, %608 : vector<16x128xf32>
    %610 = vector.broadcast %184 : f32 to vector<16x128xf32>
    %611 = arith.mulf %610, %371 : vector<16x128xf32>
    %612 = arith.addf %609, %611 : vector<16x128xf32>
    %613 = vector.broadcast %185 : f32 to vector<16x128xf32>
    %614 = arith.mulf %613, %374 : vector<16x128xf32>
    %615 = arith.addf %612, %614 : vector<16x128xf32>
    %616 = vector.broadcast %186 : f32 to vector<16x128xf32>
    %617 = arith.mulf %616, %377 : vector<16x128xf32>
    %618 = arith.addf %615, %617 : vector<16x128xf32>
    %619 = vector.broadcast %293 : f32 to vector<16x128xf32>
    %620 = arith.addf %618, %619 : vector<16x128xf32>
    %621 = vector.broadcast %59 : f32 to vector<16x128xf32>
    %622 = arith.mulf %621, %389 : vector<16x128xf32>
    %623 = vector.broadcast %60 : f32 to vector<16x128xf32>
    %624 = arith.mulf %623, %401 : vector<16x128xf32>
    %625 = arith.addf %622, %624 : vector<16x128xf32>
    %626 = vector.broadcast %61 : f32 to vector<16x128xf32>
    %627 = arith.mulf %626, %413 : vector<16x128xf32>
    %628 = arith.addf %625, %627 : vector<16x128xf32>
    %629 = vector.broadcast %62 : f32 to vector<16x128xf32>
    %630 = arith.mulf %629, %425 : vector<16x128xf32>
    %631 = arith.addf %628, %630 : vector<16x128xf32>
    %632 = vector.broadcast %63 : f32 to vector<16x128xf32>
    %633 = arith.mulf %632, %437 : vector<16x128xf32>
    %634 = arith.addf %631, %633 : vector<16x128xf32>
    %635 = vector.broadcast %64 : f32 to vector<16x128xf32>
    %636 = arith.mulf %635, %449 : vector<16x128xf32>
    %637 = arith.addf %634, %636 : vector<16x128xf32>
    %638 = vector.broadcast %65 : f32 to vector<16x128xf32>
    %639 = arith.mulf %638, %461 : vector<16x128xf32>
    %640 = arith.addf %637, %639 : vector<16x128xf32>
    %641 = vector.broadcast %66 : f32 to vector<16x128xf32>
    %642 = arith.mulf %641, %473 : vector<16x128xf32>
    %643 = arith.addf %640, %642 : vector<16x128xf32>
    %644 = vector.broadcast %187 : f32 to vector<16x128xf32>
    %645 = arith.mulf %644, %356 : vector<16x128xf32>
    %646 = arith.addf %643, %645 : vector<16x128xf32>
    %647 = vector.broadcast %188 : f32 to vector<16x128xf32>
    %648 = arith.mulf %647, %359 : vector<16x128xf32>
    %649 = arith.addf %646, %648 : vector<16x128xf32>
    %650 = vector.broadcast %189 : f32 to vector<16x128xf32>
    %651 = arith.mulf %650, %362 : vector<16x128xf32>
    %652 = arith.addf %649, %651 : vector<16x128xf32>
    %653 = vector.broadcast %190 : f32 to vector<16x128xf32>
    %654 = arith.mulf %653, %365 : vector<16x128xf32>
    %655 = arith.addf %652, %654 : vector<16x128xf32>
    %656 = vector.broadcast %191 : f32 to vector<16x128xf32>
    %657 = arith.mulf %656, %368 : vector<16x128xf32>
    %658 = arith.addf %655, %657 : vector<16x128xf32>
    %659 = vector.broadcast %192 : f32 to vector<16x128xf32>
    %660 = arith.mulf %659, %371 : vector<16x128xf32>
    %661 = arith.addf %658, %660 : vector<16x128xf32>
    %662 = vector.broadcast %193 : f32 to vector<16x128xf32>
    %663 = arith.mulf %662, %374 : vector<16x128xf32>
    %664 = arith.addf %661, %663 : vector<16x128xf32>
    %665 = vector.broadcast %194 : f32 to vector<16x128xf32>
    %666 = arith.mulf %665, %377 : vector<16x128xf32>
    %667 = arith.addf %664, %666 : vector<16x128xf32>
    %668 = vector.broadcast %294 : f32 to vector<16x128xf32>
    %669 = arith.addf %667, %668 : vector<16x128xf32>
    %670 = vector.broadcast %67 : f32 to vector<16x128xf32>
    %671 = arith.mulf %670, %389 : vector<16x128xf32>
    %672 = vector.broadcast %68 : f32 to vector<16x128xf32>
    %673 = arith.mulf %672, %401 : vector<16x128xf32>
    %674 = arith.addf %671, %673 : vector<16x128xf32>
    %675 = vector.broadcast %69 : f32 to vector<16x128xf32>
    %676 = arith.mulf %675, %413 : vector<16x128xf32>
    %677 = arith.addf %674, %676 : vector<16x128xf32>
    %678 = vector.broadcast %70 : f32 to vector<16x128xf32>
    %679 = arith.mulf %678, %425 : vector<16x128xf32>
    %680 = arith.addf %677, %679 : vector<16x128xf32>
    %681 = vector.broadcast %71 : f32 to vector<16x128xf32>
    %682 = arith.mulf %681, %437 : vector<16x128xf32>
    %683 = arith.addf %680, %682 : vector<16x128xf32>
    %684 = vector.broadcast %72 : f32 to vector<16x128xf32>
    %685 = arith.mulf %684, %449 : vector<16x128xf32>
    %686 = arith.addf %683, %685 : vector<16x128xf32>
    %687 = vector.broadcast %73 : f32 to vector<16x128xf32>
    %688 = arith.mulf %687, %461 : vector<16x128xf32>
    %689 = arith.addf %686, %688 : vector<16x128xf32>
    %690 = vector.broadcast %74 : f32 to vector<16x128xf32>
    %691 = arith.mulf %690, %473 : vector<16x128xf32>
    %692 = arith.addf %689, %691 : vector<16x128xf32>
    %693 = vector.broadcast %195 : f32 to vector<16x128xf32>
    %694 = arith.mulf %693, %356 : vector<16x128xf32>
    %695 = arith.addf %692, %694 : vector<16x128xf32>
    %696 = vector.broadcast %196 : f32 to vector<16x128xf32>
    %697 = arith.mulf %696, %359 : vector<16x128xf32>
    %698 = arith.addf %695, %697 : vector<16x128xf32>
    %699 = vector.broadcast %197 : f32 to vector<16x128xf32>
    %700 = arith.mulf %699, %362 : vector<16x128xf32>
    %701 = arith.addf %698, %700 : vector<16x128xf32>
    %702 = vector.broadcast %198 : f32 to vector<16x128xf32>
    %703 = arith.mulf %702, %365 : vector<16x128xf32>
    %704 = arith.addf %701, %703 : vector<16x128xf32>
    %705 = vector.broadcast %199 : f32 to vector<16x128xf32>
    %706 = arith.mulf %705, %368 : vector<16x128xf32>
    %707 = arith.addf %704, %706 : vector<16x128xf32>
    %708 = vector.broadcast %200 : f32 to vector<16x128xf32>
    %709 = arith.mulf %708, %371 : vector<16x128xf32>
    %710 = arith.addf %707, %709 : vector<16x128xf32>
    %711 = vector.broadcast %201 : f32 to vector<16x128xf32>
    %712 = arith.mulf %711, %374 : vector<16x128xf32>
    %713 = arith.addf %710, %712 : vector<16x128xf32>
    %714 = vector.broadcast %202 : f32 to vector<16x128xf32>
    %715 = arith.mulf %714, %377 : vector<16x128xf32>
    %716 = arith.addf %713, %715 : vector<16x128xf32>
    %717 = vector.broadcast %295 : f32 to vector<16x128xf32>
    %718 = arith.addf %716, %717 : vector<16x128xf32>
    %719 = vector.broadcast %75 : f32 to vector<16x128xf32>
    %720 = arith.mulf %719, %389 : vector<16x128xf32>
    %721 = vector.broadcast %76 : f32 to vector<16x128xf32>
    %722 = arith.mulf %721, %401 : vector<16x128xf32>
    %723 = arith.addf %720, %722 : vector<16x128xf32>
    %724 = vector.broadcast %77 : f32 to vector<16x128xf32>
    %725 = arith.mulf %724, %413 : vector<16x128xf32>
    %726 = arith.addf %723, %725 : vector<16x128xf32>
    %727 = vector.broadcast %78 : f32 to vector<16x128xf32>
    %728 = arith.mulf %727, %425 : vector<16x128xf32>
    %729 = arith.addf %726, %728 : vector<16x128xf32>
    %730 = vector.broadcast %79 : f32 to vector<16x128xf32>
    %731 = arith.mulf %730, %437 : vector<16x128xf32>
    %732 = arith.addf %729, %731 : vector<16x128xf32>
    %733 = vector.broadcast %80 : f32 to vector<16x128xf32>
    %734 = arith.mulf %733, %449 : vector<16x128xf32>
    %735 = arith.addf %732, %734 : vector<16x128xf32>
    %736 = vector.broadcast %81 : f32 to vector<16x128xf32>
    %737 = arith.mulf %736, %461 : vector<16x128xf32>
    %738 = arith.addf %735, %737 : vector<16x128xf32>
    %739 = vector.broadcast %82 : f32 to vector<16x128xf32>
    %740 = arith.mulf %739, %473 : vector<16x128xf32>
    %741 = arith.addf %738, %740 : vector<16x128xf32>
    %742 = vector.broadcast %203 : f32 to vector<16x128xf32>
    %743 = arith.mulf %742, %356 : vector<16x128xf32>
    %744 = arith.addf %741, %743 : vector<16x128xf32>
    %745 = vector.broadcast %204 : f32 to vector<16x128xf32>
    %746 = arith.mulf %745, %359 : vector<16x128xf32>
    %747 = arith.addf %744, %746 : vector<16x128xf32>
    %748 = vector.broadcast %205 : f32 to vector<16x128xf32>
    %749 = arith.mulf %748, %362 : vector<16x128xf32>
    %750 = arith.addf %747, %749 : vector<16x128xf32>
    %751 = vector.broadcast %206 : f32 to vector<16x128xf32>
    %752 = arith.mulf %751, %365 : vector<16x128xf32>
    %753 = arith.addf %750, %752 : vector<16x128xf32>
    %754 = vector.broadcast %207 : f32 to vector<16x128xf32>
    %755 = arith.mulf %754, %368 : vector<16x128xf32>
    %756 = arith.addf %753, %755 : vector<16x128xf32>
    %757 = vector.broadcast %208 : f32 to vector<16x128xf32>
    %758 = arith.mulf %757, %371 : vector<16x128xf32>
    %759 = arith.addf %756, %758 : vector<16x128xf32>
    %760 = vector.broadcast %209 : f32 to vector<16x128xf32>
    %761 = arith.mulf %760, %374 : vector<16x128xf32>
    %762 = arith.addf %759, %761 : vector<16x128xf32>
    %763 = vector.broadcast %210 : f32 to vector<16x128xf32>
    %764 = arith.mulf %763, %377 : vector<16x128xf32>
    %765 = arith.addf %762, %764 : vector<16x128xf32>
    %766 = vector.broadcast %296 : f32 to vector<16x128xf32>
    %767 = arith.addf %765, %766 : vector<16x128xf32>
    %768 = vector.broadcast %83 : f32 to vector<16x128xf32>
    %769 = arith.mulf %768, %389 : vector<16x128xf32>
    %770 = vector.broadcast %84 : f32 to vector<16x128xf32>
    %771 = arith.mulf %770, %401 : vector<16x128xf32>
    %772 = arith.addf %769, %771 : vector<16x128xf32>
    %773 = vector.broadcast %85 : f32 to vector<16x128xf32>
    %774 = arith.mulf %773, %413 : vector<16x128xf32>
    %775 = arith.addf %772, %774 : vector<16x128xf32>
    %776 = vector.broadcast %86 : f32 to vector<16x128xf32>
    %777 = arith.mulf %776, %425 : vector<16x128xf32>
    %778 = arith.addf %775, %777 : vector<16x128xf32>
    %779 = vector.broadcast %87 : f32 to vector<16x128xf32>
    %780 = arith.mulf %779, %437 : vector<16x128xf32>
    %781 = arith.addf %778, %780 : vector<16x128xf32>
    %782 = vector.broadcast %88 : f32 to vector<16x128xf32>
    %783 = arith.mulf %782, %449 : vector<16x128xf32>
    %784 = arith.addf %781, %783 : vector<16x128xf32>
    %785 = vector.broadcast %89 : f32 to vector<16x128xf32>
    %786 = arith.mulf %785, %461 : vector<16x128xf32>
    %787 = arith.addf %784, %786 : vector<16x128xf32>
    %788 = vector.broadcast %90 : f32 to vector<16x128xf32>
    %789 = arith.mulf %788, %473 : vector<16x128xf32>
    %790 = arith.addf %787, %789 : vector<16x128xf32>
    %791 = vector.broadcast %211 : f32 to vector<16x128xf32>
    %792 = arith.mulf %791, %356 : vector<16x128xf32>
    %793 = arith.addf %790, %792 : vector<16x128xf32>
    %794 = vector.broadcast %212 : f32 to vector<16x128xf32>
    %795 = arith.mulf %794, %359 : vector<16x128xf32>
    %796 = arith.addf %793, %795 : vector<16x128xf32>
    %797 = vector.broadcast %213 : f32 to vector<16x128xf32>
    %798 = arith.mulf %797, %362 : vector<16x128xf32>
    %799 = arith.addf %796, %798 : vector<16x128xf32>
    %800 = vector.broadcast %214 : f32 to vector<16x128xf32>
    %801 = arith.mulf %800, %365 : vector<16x128xf32>
    %802 = arith.addf %799, %801 : vector<16x128xf32>
    %803 = vector.broadcast %215 : f32 to vector<16x128xf32>
    %804 = arith.mulf %803, %368 : vector<16x128xf32>
    %805 = arith.addf %802, %804 : vector<16x128xf32>
    %806 = vector.broadcast %216 : f32 to vector<16x128xf32>
    %807 = arith.mulf %806, %371 : vector<16x128xf32>
    %808 = arith.addf %805, %807 : vector<16x128xf32>
    %809 = vector.broadcast %217 : f32 to vector<16x128xf32>
    %810 = arith.mulf %809, %374 : vector<16x128xf32>
    %811 = arith.addf %808, %810 : vector<16x128xf32>
    %812 = vector.broadcast %218 : f32 to vector<16x128xf32>
    %813 = arith.mulf %812, %377 : vector<16x128xf32>
    %814 = arith.addf %811, %813 : vector<16x128xf32>
    %815 = vector.broadcast %297 : f32 to vector<16x128xf32>
    %816 = arith.addf %814, %815 : vector<16x128xf32>
    %817 = vector.broadcast %91 : f32 to vector<16x128xf32>
    %818 = arith.mulf %817, %389 : vector<16x128xf32>
    %819 = vector.broadcast %92 : f32 to vector<16x128xf32>
    %820 = arith.mulf %819, %401 : vector<16x128xf32>
    %821 = arith.addf %818, %820 : vector<16x128xf32>
    %822 = vector.broadcast %93 : f32 to vector<16x128xf32>
    %823 = arith.mulf %822, %413 : vector<16x128xf32>
    %824 = arith.addf %821, %823 : vector<16x128xf32>
    %825 = vector.broadcast %94 : f32 to vector<16x128xf32>
    %826 = arith.mulf %825, %425 : vector<16x128xf32>
    %827 = arith.addf %824, %826 : vector<16x128xf32>
    %828 = vector.broadcast %95 : f32 to vector<16x128xf32>
    %829 = arith.mulf %828, %437 : vector<16x128xf32>
    %830 = arith.addf %827, %829 : vector<16x128xf32>
    %831 = vector.broadcast %96 : f32 to vector<16x128xf32>
    %832 = arith.mulf %831, %449 : vector<16x128xf32>
    %833 = arith.addf %830, %832 : vector<16x128xf32>
    %834 = vector.broadcast %97 : f32 to vector<16x128xf32>
    %835 = arith.mulf %834, %461 : vector<16x128xf32>
    %836 = arith.addf %833, %835 : vector<16x128xf32>
    %837 = vector.broadcast %98 : f32 to vector<16x128xf32>
    %838 = arith.mulf %837, %473 : vector<16x128xf32>
    %839 = arith.addf %836, %838 : vector<16x128xf32>
    %840 = vector.broadcast %219 : f32 to vector<16x128xf32>
    %841 = arith.mulf %840, %356 : vector<16x128xf32>
    %842 = arith.addf %839, %841 : vector<16x128xf32>
    %843 = vector.broadcast %220 : f32 to vector<16x128xf32>
    %844 = arith.mulf %843, %359 : vector<16x128xf32>
    %845 = arith.addf %842, %844 : vector<16x128xf32>
    %846 = vector.broadcast %221 : f32 to vector<16x128xf32>
    %847 = arith.mulf %846, %362 : vector<16x128xf32>
    %848 = arith.addf %845, %847 : vector<16x128xf32>
    %849 = vector.broadcast %222 : f32 to vector<16x128xf32>
    %850 = arith.mulf %849, %365 : vector<16x128xf32>
    %851 = arith.addf %848, %850 : vector<16x128xf32>
    %852 = vector.broadcast %223 : f32 to vector<16x128xf32>
    %853 = arith.mulf %852, %368 : vector<16x128xf32>
    %854 = arith.addf %851, %853 : vector<16x128xf32>
    %855 = vector.broadcast %224 : f32 to vector<16x128xf32>
    %856 = arith.mulf %855, %371 : vector<16x128xf32>
    %857 = arith.addf %854, %856 : vector<16x128xf32>
    %858 = vector.broadcast %225 : f32 to vector<16x128xf32>
    %859 = arith.mulf %858, %374 : vector<16x128xf32>
    %860 = arith.addf %857, %859 : vector<16x128xf32>
    %861 = vector.broadcast %226 : f32 to vector<16x128xf32>
    %862 = arith.mulf %861, %377 : vector<16x128xf32>
    %863 = arith.addf %860, %862 : vector<16x128xf32>
    %864 = vector.broadcast %298 : f32 to vector<16x128xf32>
    %865 = arith.addf %863, %864 : vector<16x128xf32>
    %866 = vector.broadcast %99 : f32 to vector<16x128xf32>
    %867 = arith.mulf %866, %389 : vector<16x128xf32>
    %868 = vector.broadcast %100 : f32 to vector<16x128xf32>
    %869 = arith.mulf %868, %401 : vector<16x128xf32>
    %870 = arith.addf %867, %869 : vector<16x128xf32>
    %871 = vector.broadcast %101 : f32 to vector<16x128xf32>
    %872 = arith.mulf %871, %413 : vector<16x128xf32>
    %873 = arith.addf %870, %872 : vector<16x128xf32>
    %874 = vector.broadcast %102 : f32 to vector<16x128xf32>
    %875 = arith.mulf %874, %425 : vector<16x128xf32>
    %876 = arith.addf %873, %875 : vector<16x128xf32>
    %877 = vector.broadcast %103 : f32 to vector<16x128xf32>
    %878 = arith.mulf %877, %437 : vector<16x128xf32>
    %879 = arith.addf %876, %878 : vector<16x128xf32>
    %880 = vector.broadcast %104 : f32 to vector<16x128xf32>
    %881 = arith.mulf %880, %449 : vector<16x128xf32>
    %882 = arith.addf %879, %881 : vector<16x128xf32>
    %883 = vector.broadcast %105 : f32 to vector<16x128xf32>
    %884 = arith.mulf %883, %461 : vector<16x128xf32>
    %885 = arith.addf %882, %884 : vector<16x128xf32>
    %886 = vector.broadcast %106 : f32 to vector<16x128xf32>
    %887 = arith.mulf %886, %473 : vector<16x128xf32>
    %888 = arith.addf %885, %887 : vector<16x128xf32>
    %889 = vector.broadcast %227 : f32 to vector<16x128xf32>
    %890 = arith.mulf %889, %356 : vector<16x128xf32>
    %891 = arith.addf %888, %890 : vector<16x128xf32>
    %892 = vector.broadcast %228 : f32 to vector<16x128xf32>
    %893 = arith.mulf %892, %359 : vector<16x128xf32>
    %894 = arith.addf %891, %893 : vector<16x128xf32>
    %895 = vector.broadcast %229 : f32 to vector<16x128xf32>
    %896 = arith.mulf %895, %362 : vector<16x128xf32>
    %897 = arith.addf %894, %896 : vector<16x128xf32>
    %898 = vector.broadcast %230 : f32 to vector<16x128xf32>
    %899 = arith.mulf %898, %365 : vector<16x128xf32>
    %900 = arith.addf %897, %899 : vector<16x128xf32>
    %901 = vector.broadcast %231 : f32 to vector<16x128xf32>
    %902 = arith.mulf %901, %368 : vector<16x128xf32>
    %903 = arith.addf %900, %902 : vector<16x128xf32>
    %904 = vector.broadcast %232 : f32 to vector<16x128xf32>
    %905 = arith.mulf %904, %371 : vector<16x128xf32>
    %906 = arith.addf %903, %905 : vector<16x128xf32>
    %907 = vector.broadcast %233 : f32 to vector<16x128xf32>
    %908 = arith.mulf %907, %374 : vector<16x128xf32>
    %909 = arith.addf %906, %908 : vector<16x128xf32>
    %910 = vector.broadcast %234 : f32 to vector<16x128xf32>
    %911 = arith.mulf %910, %377 : vector<16x128xf32>
    %912 = arith.addf %909, %911 : vector<16x128xf32>
    %913 = vector.broadcast %299 : f32 to vector<16x128xf32>
    %914 = arith.addf %912, %913 : vector<16x128xf32>
    %915 = vector.broadcast %107 : f32 to vector<16x128xf32>
    %916 = arith.mulf %915, %389 : vector<16x128xf32>
    %917 = vector.broadcast %108 : f32 to vector<16x128xf32>
    %918 = arith.mulf %917, %401 : vector<16x128xf32>
    %919 = arith.addf %916, %918 : vector<16x128xf32>
    %920 = vector.broadcast %109 : f32 to vector<16x128xf32>
    %921 = arith.mulf %920, %413 : vector<16x128xf32>
    %922 = arith.addf %919, %921 : vector<16x128xf32>
    %923 = vector.broadcast %110 : f32 to vector<16x128xf32>
    %924 = arith.mulf %923, %425 : vector<16x128xf32>
    %925 = arith.addf %922, %924 : vector<16x128xf32>
    %926 = vector.broadcast %111 : f32 to vector<16x128xf32>
    %927 = arith.mulf %926, %437 : vector<16x128xf32>
    %928 = arith.addf %925, %927 : vector<16x128xf32>
    %929 = vector.broadcast %112 : f32 to vector<16x128xf32>
    %930 = arith.mulf %929, %449 : vector<16x128xf32>
    %931 = arith.addf %928, %930 : vector<16x128xf32>
    %932 = vector.broadcast %113 : f32 to vector<16x128xf32>
    %933 = arith.mulf %932, %461 : vector<16x128xf32>
    %934 = arith.addf %931, %933 : vector<16x128xf32>
    %935 = vector.broadcast %114 : f32 to vector<16x128xf32>
    %936 = arith.mulf %935, %473 : vector<16x128xf32>
    %937 = arith.addf %934, %936 : vector<16x128xf32>
    %938 = vector.broadcast %235 : f32 to vector<16x128xf32>
    %939 = arith.mulf %938, %356 : vector<16x128xf32>
    %940 = arith.addf %937, %939 : vector<16x128xf32>
    %941 = vector.broadcast %236 : f32 to vector<16x128xf32>
    %942 = arith.mulf %941, %359 : vector<16x128xf32>
    %943 = arith.addf %940, %942 : vector<16x128xf32>
    %944 = vector.broadcast %237 : f32 to vector<16x128xf32>
    %945 = arith.mulf %944, %362 : vector<16x128xf32>
    %946 = arith.addf %943, %945 : vector<16x128xf32>
    %947 = vector.broadcast %238 : f32 to vector<16x128xf32>
    %948 = arith.mulf %947, %365 : vector<16x128xf32>
    %949 = arith.addf %946, %948 : vector<16x128xf32>
    %950 = vector.broadcast %239 : f32 to vector<16x128xf32>
    %951 = arith.mulf %950, %368 : vector<16x128xf32>
    %952 = arith.addf %949, %951 : vector<16x128xf32>
    %953 = vector.broadcast %240 : f32 to vector<16x128xf32>
    %954 = arith.mulf %953, %371 : vector<16x128xf32>
    %955 = arith.addf %952, %954 : vector<16x128xf32>
    %956 = vector.broadcast %241 : f32 to vector<16x128xf32>
    %957 = arith.mulf %956, %374 : vector<16x128xf32>
    %958 = arith.addf %955, %957 : vector<16x128xf32>
    %959 = vector.broadcast %242 : f32 to vector<16x128xf32>
    %960 = arith.mulf %959, %377 : vector<16x128xf32>
    %961 = arith.addf %958, %960 : vector<16x128xf32>
    %962 = vector.broadcast %300 : f32 to vector<16x128xf32>
    %963 = arith.addf %961, %962 : vector<16x128xf32>
    %964 = vector.broadcast %115 : f32 to vector<16x128xf32>
    %965 = arith.mulf %964, %389 : vector<16x128xf32>
    %966 = vector.broadcast %116 : f32 to vector<16x128xf32>
    %967 = arith.mulf %966, %401 : vector<16x128xf32>
    %968 = arith.addf %965, %967 : vector<16x128xf32>
    %969 = vector.broadcast %117 : f32 to vector<16x128xf32>
    %970 = arith.mulf %969, %413 : vector<16x128xf32>
    %971 = arith.addf %968, %970 : vector<16x128xf32>
    %972 = vector.broadcast %118 : f32 to vector<16x128xf32>
    %973 = arith.mulf %972, %425 : vector<16x128xf32>
    %974 = arith.addf %971, %973 : vector<16x128xf32>
    %975 = vector.broadcast %119 : f32 to vector<16x128xf32>
    %976 = arith.mulf %975, %437 : vector<16x128xf32>
    %977 = arith.addf %974, %976 : vector<16x128xf32>
    %978 = vector.broadcast %120 : f32 to vector<16x128xf32>
    %979 = arith.mulf %978, %449 : vector<16x128xf32>
    %980 = arith.addf %977, %979 : vector<16x128xf32>
    %981 = vector.broadcast %121 : f32 to vector<16x128xf32>
    %982 = arith.mulf %981, %461 : vector<16x128xf32>
    %983 = arith.addf %980, %982 : vector<16x128xf32>
    %984 = vector.broadcast %122 : f32 to vector<16x128xf32>
    %985 = arith.mulf %984, %473 : vector<16x128xf32>
    %986 = arith.addf %983, %985 : vector<16x128xf32>
    %987 = vector.broadcast %243 : f32 to vector<16x128xf32>
    %988 = arith.mulf %987, %356 : vector<16x128xf32>
    %989 = arith.addf %986, %988 : vector<16x128xf32>
    %990 = vector.broadcast %244 : f32 to vector<16x128xf32>
    %991 = arith.mulf %990, %359 : vector<16x128xf32>
    %992 = arith.addf %989, %991 : vector<16x128xf32>
    %993 = vector.broadcast %245 : f32 to vector<16x128xf32>
    %994 = arith.mulf %993, %362 : vector<16x128xf32>
    %995 = arith.addf %992, %994 : vector<16x128xf32>
    %996 = vector.broadcast %246 : f32 to vector<16x128xf32>
    %997 = arith.mulf %996, %365 : vector<16x128xf32>
    %998 = arith.addf %995, %997 : vector<16x128xf32>
    %999 = vector.broadcast %247 : f32 to vector<16x128xf32>
    %1000 = arith.mulf %999, %368 : vector<16x128xf32>
    %1001 = arith.addf %998, %1000 : vector<16x128xf32>
    %1002 = vector.broadcast %248 : f32 to vector<16x128xf32>
    %1003 = arith.mulf %1002, %371 : vector<16x128xf32>
    %1004 = arith.addf %1001, %1003 : vector<16x128xf32>
    %1005 = vector.broadcast %249 : f32 to vector<16x128xf32>
    %1006 = arith.mulf %1005, %374 : vector<16x128xf32>
    %1007 = arith.addf %1004, %1006 : vector<16x128xf32>
    %1008 = vector.broadcast %250 : f32 to vector<16x128xf32>
    %1009 = arith.mulf %1008, %377 : vector<16x128xf32>
    %1010 = arith.addf %1007, %1009 : vector<16x128xf32>
    %1011 = vector.broadcast %301 : f32 to vector<16x128xf32>
    %1012 = arith.addf %1010, %1011 : vector<16x128xf32>
    %1013 = vector.broadcast %123 : f32 to vector<16x128xf32>
    %1014 = arith.mulf %1013, %389 : vector<16x128xf32>
    %1015 = vector.broadcast %124 : f32 to vector<16x128xf32>
    %1016 = arith.mulf %1015, %401 : vector<16x128xf32>
    %1017 = arith.addf %1014, %1016 : vector<16x128xf32>
    %1018 = vector.broadcast %125 : f32 to vector<16x128xf32>
    %1019 = arith.mulf %1018, %413 : vector<16x128xf32>
    %1020 = arith.addf %1017, %1019 : vector<16x128xf32>
    %1021 = vector.broadcast %126 : f32 to vector<16x128xf32>
    %1022 = arith.mulf %1021, %425 : vector<16x128xf32>
    %1023 = arith.addf %1020, %1022 : vector<16x128xf32>
    %1024 = vector.broadcast %127 : f32 to vector<16x128xf32>
    %1025 = arith.mulf %1024, %437 : vector<16x128xf32>
    %1026 = arith.addf %1023, %1025 : vector<16x128xf32>
    %1027 = vector.broadcast %128 : f32 to vector<16x128xf32>
    %1028 = arith.mulf %1027, %449 : vector<16x128xf32>
    %1029 = arith.addf %1026, %1028 : vector<16x128xf32>
    %1030 = vector.broadcast %129 : f32 to vector<16x128xf32>
    %1031 = arith.mulf %1030, %461 : vector<16x128xf32>
    %1032 = arith.addf %1029, %1031 : vector<16x128xf32>
    %1033 = vector.broadcast %130 : f32 to vector<16x128xf32>
    %1034 = arith.mulf %1033, %473 : vector<16x128xf32>
    %1035 = arith.addf %1032, %1034 : vector<16x128xf32>
    %1036 = vector.broadcast %251 : f32 to vector<16x128xf32>
    %1037 = arith.mulf %1036, %356 : vector<16x128xf32>
    %1038 = arith.addf %1035, %1037 : vector<16x128xf32>
    %1039 = vector.broadcast %252 : f32 to vector<16x128xf32>
    %1040 = arith.mulf %1039, %359 : vector<16x128xf32>
    %1041 = arith.addf %1038, %1040 : vector<16x128xf32>
    %1042 = vector.broadcast %253 : f32 to vector<16x128xf32>
    %1043 = arith.mulf %1042, %362 : vector<16x128xf32>
    %1044 = arith.addf %1041, %1043 : vector<16x128xf32>
    %1045 = vector.broadcast %254 : f32 to vector<16x128xf32>
    %1046 = arith.mulf %1045, %365 : vector<16x128xf32>
    %1047 = arith.addf %1044, %1046 : vector<16x128xf32>
    %1048 = vector.broadcast %255 : f32 to vector<16x128xf32>
    %1049 = arith.mulf %1048, %368 : vector<16x128xf32>
    %1050 = arith.addf %1047, %1049 : vector<16x128xf32>
    %1051 = vector.broadcast %256 : f32 to vector<16x128xf32>
    %1052 = arith.mulf %1051, %371 : vector<16x128xf32>
    %1053 = arith.addf %1050, %1052 : vector<16x128xf32>
    %1054 = vector.broadcast %257 : f32 to vector<16x128xf32>
    %1055 = arith.mulf %1054, %374 : vector<16x128xf32>
    %1056 = arith.addf %1053, %1055 : vector<16x128xf32>
    %1057 = vector.broadcast %258 : f32 to vector<16x128xf32>
    %1058 = arith.mulf %1057, %377 : vector<16x128xf32>
    %1059 = arith.addf %1056, %1058 : vector<16x128xf32>
    %1060 = vector.broadcast %302 : f32 to vector<16x128xf32>
    %1061 = arith.addf %1059, %1060 : vector<16x128xf32>
    %1062 = vector.broadcast %131 : f32 to vector<16x128xf32>
    %1063 = arith.mulf %1062, %389 : vector<16x128xf32>
    %1064 = vector.broadcast %132 : f32 to vector<16x128xf32>
    %1065 = arith.mulf %1064, %401 : vector<16x128xf32>
    %1066 = arith.addf %1063, %1065 : vector<16x128xf32>
    %1067 = vector.broadcast %133 : f32 to vector<16x128xf32>
    %1068 = arith.mulf %1067, %413 : vector<16x128xf32>
    %1069 = arith.addf %1066, %1068 : vector<16x128xf32>
    %1070 = vector.broadcast %134 : f32 to vector<16x128xf32>
    %1071 = arith.mulf %1070, %425 : vector<16x128xf32>
    %1072 = arith.addf %1069, %1071 : vector<16x128xf32>
    %1073 = vector.broadcast %135 : f32 to vector<16x128xf32>
    %1074 = arith.mulf %1073, %437 : vector<16x128xf32>
    %1075 = arith.addf %1072, %1074 : vector<16x128xf32>
    %1076 = vector.broadcast %136 : f32 to vector<16x128xf32>
    %1077 = arith.mulf %1076, %449 : vector<16x128xf32>
    %1078 = arith.addf %1075, %1077 : vector<16x128xf32>
    %1079 = vector.broadcast %137 : f32 to vector<16x128xf32>
    %1080 = arith.mulf %1079, %461 : vector<16x128xf32>
    %1081 = arith.addf %1078, %1080 : vector<16x128xf32>
    %1082 = vector.broadcast %138 : f32 to vector<16x128xf32>
    %1083 = arith.mulf %1082, %473 : vector<16x128xf32>
    %1084 = arith.addf %1081, %1083 : vector<16x128xf32>
    %1085 = vector.broadcast %259 : f32 to vector<16x128xf32>
    %1086 = arith.mulf %1085, %356 : vector<16x128xf32>
    %1087 = arith.addf %1084, %1086 : vector<16x128xf32>
    %1088 = vector.broadcast %260 : f32 to vector<16x128xf32>
    %1089 = arith.mulf %1088, %359 : vector<16x128xf32>
    %1090 = arith.addf %1087, %1089 : vector<16x128xf32>
    %1091 = vector.broadcast %261 : f32 to vector<16x128xf32>
    %1092 = arith.mulf %1091, %362 : vector<16x128xf32>
    %1093 = arith.addf %1090, %1092 : vector<16x128xf32>
    %1094 = vector.broadcast %262 : f32 to vector<16x128xf32>
    %1095 = arith.mulf %1094, %365 : vector<16x128xf32>
    %1096 = arith.addf %1093, %1095 : vector<16x128xf32>
    %1097 = vector.broadcast %263 : f32 to vector<16x128xf32>
    %1098 = arith.mulf %1097, %368 : vector<16x128xf32>
    %1099 = arith.addf %1096, %1098 : vector<16x128xf32>
    %1100 = vector.broadcast %264 : f32 to vector<16x128xf32>
    %1101 = arith.mulf %1100, %371 : vector<16x128xf32>
    %1102 = arith.addf %1099, %1101 : vector<16x128xf32>
    %1103 = vector.broadcast %265 : f32 to vector<16x128xf32>
    %1104 = arith.mulf %1103, %374 : vector<16x128xf32>
    %1105 = arith.addf %1102, %1104 : vector<16x128xf32>
    %1106 = vector.broadcast %266 : f32 to vector<16x128xf32>
    %1107 = arith.mulf %1106, %377 : vector<16x128xf32>
    %1108 = arith.addf %1105, %1107 : vector<16x128xf32>
    %1109 = vector.broadcast %303 : f32 to vector<16x128xf32>
    %1110 = arith.addf %1108, %1109 : vector<16x128xf32>
    %1111 = vector.broadcast %139 : f32 to vector<16x128xf32>
    %1112 = arith.mulf %1111, %389 : vector<16x128xf32>
    %1113 = vector.broadcast %140 : f32 to vector<16x128xf32>
    %1114 = arith.mulf %1113, %401 : vector<16x128xf32>
    %1115 = arith.addf %1112, %1114 : vector<16x128xf32>
    %1116 = vector.broadcast %141 : f32 to vector<16x128xf32>
    %1117 = arith.mulf %1116, %413 : vector<16x128xf32>
    %1118 = arith.addf %1115, %1117 : vector<16x128xf32>
    %1119 = vector.broadcast %142 : f32 to vector<16x128xf32>
    %1120 = arith.mulf %1119, %425 : vector<16x128xf32>
    %1121 = arith.addf %1118, %1120 : vector<16x128xf32>
    %1122 = vector.broadcast %143 : f32 to vector<16x128xf32>
    %1123 = arith.mulf %1122, %437 : vector<16x128xf32>
    %1124 = arith.addf %1121, %1123 : vector<16x128xf32>
    %1125 = vector.broadcast %144 : f32 to vector<16x128xf32>
    %1126 = arith.mulf %1125, %449 : vector<16x128xf32>
    %1127 = arith.addf %1124, %1126 : vector<16x128xf32>
    %1128 = vector.broadcast %145 : f32 to vector<16x128xf32>
    %1129 = arith.mulf %1128, %461 : vector<16x128xf32>
    %1130 = arith.addf %1127, %1129 : vector<16x128xf32>
    %1131 = vector.broadcast %146 : f32 to vector<16x128xf32>
    %1132 = arith.mulf %1131, %473 : vector<16x128xf32>
    %1133 = arith.addf %1130, %1132 : vector<16x128xf32>
    %1134 = vector.broadcast %267 : f32 to vector<16x128xf32>
    %1135 = arith.mulf %1134, %356 : vector<16x128xf32>
    %1136 = arith.addf %1133, %1135 : vector<16x128xf32>
    %1137 = vector.broadcast %268 : f32 to vector<16x128xf32>
    %1138 = arith.mulf %1137, %359 : vector<16x128xf32>
    %1139 = arith.addf %1136, %1138 : vector<16x128xf32>
    %1140 = vector.broadcast %269 : f32 to vector<16x128xf32>
    %1141 = arith.mulf %1140, %362 : vector<16x128xf32>
    %1142 = arith.addf %1139, %1141 : vector<16x128xf32>
    %1143 = vector.broadcast %270 : f32 to vector<16x128xf32>
    %1144 = arith.mulf %1143, %365 : vector<16x128xf32>
    %1145 = arith.addf %1142, %1144 : vector<16x128xf32>
    %1146 = vector.broadcast %271 : f32 to vector<16x128xf32>
    %1147 = arith.mulf %1146, %368 : vector<16x128xf32>
    %1148 = arith.addf %1145, %1147 : vector<16x128xf32>
    %1149 = vector.broadcast %272 : f32 to vector<16x128xf32>
    %1150 = arith.mulf %1149, %371 : vector<16x128xf32>
    %1151 = arith.addf %1148, %1150 : vector<16x128xf32>
    %1152 = vector.broadcast %273 : f32 to vector<16x128xf32>
    %1153 = arith.mulf %1152, %374 : vector<16x128xf32>
    %1154 = arith.addf %1151, %1153 : vector<16x128xf32>
    %1155 = vector.broadcast %274 : f32 to vector<16x128xf32>
    %1156 = arith.mulf %1155, %377 : vector<16x128xf32>
    %1157 = arith.addf %1154, %1156 : vector<16x128xf32>
    %1158 = vector.broadcast %304 : f32 to vector<16x128xf32>
    %1159 = arith.addf %1157, %1158 : vector<16x128xf32>
    %1160 = vector.broadcast %147 : f32 to vector<16x128xf32>
    %1161 = arith.mulf %1160, %389 : vector<16x128xf32>
    %1162 = vector.broadcast %148 : f32 to vector<16x128xf32>
    %1163 = arith.mulf %1162, %401 : vector<16x128xf32>
    %1164 = arith.addf %1161, %1163 : vector<16x128xf32>
    %1165 = vector.broadcast %149 : f32 to vector<16x128xf32>
    %1166 = arith.mulf %1165, %413 : vector<16x128xf32>
    %1167 = arith.addf %1164, %1166 : vector<16x128xf32>
    %1168 = vector.broadcast %150 : f32 to vector<16x128xf32>
    %1169 = arith.mulf %1168, %425 : vector<16x128xf32>
    %1170 = arith.addf %1167, %1169 : vector<16x128xf32>
    %1171 = vector.broadcast %151 : f32 to vector<16x128xf32>
    %1172 = arith.mulf %1171, %437 : vector<16x128xf32>
    %1173 = arith.addf %1170, %1172 : vector<16x128xf32>
    %1174 = vector.broadcast %152 : f32 to vector<16x128xf32>
    %1175 = arith.mulf %1174, %449 : vector<16x128xf32>
    %1176 = arith.addf %1173, %1175 : vector<16x128xf32>
    %1177 = vector.broadcast %153 : f32 to vector<16x128xf32>
    %1178 = arith.mulf %1177, %461 : vector<16x128xf32>
    %1179 = arith.addf %1176, %1178 : vector<16x128xf32>
    %1180 = vector.broadcast %154 : f32 to vector<16x128xf32>
    %1181 = arith.mulf %1180, %473 : vector<16x128xf32>
    %1182 = arith.addf %1179, %1181 : vector<16x128xf32>
    %1183 = vector.broadcast %275 : f32 to vector<16x128xf32>
    %1184 = arith.mulf %1183, %356 : vector<16x128xf32>
    %1185 = arith.addf %1182, %1184 : vector<16x128xf32>
    %1186 = vector.broadcast %276 : f32 to vector<16x128xf32>
    %1187 = arith.mulf %1186, %359 : vector<16x128xf32>
    %1188 = arith.addf %1185, %1187 : vector<16x128xf32>
    %1189 = vector.broadcast %277 : f32 to vector<16x128xf32>
    %1190 = arith.mulf %1189, %362 : vector<16x128xf32>
    %1191 = arith.addf %1188, %1190 : vector<16x128xf32>
    %1192 = vector.broadcast %278 : f32 to vector<16x128xf32>
    %1193 = arith.mulf %1192, %365 : vector<16x128xf32>
    %1194 = arith.addf %1191, %1193 : vector<16x128xf32>
    %1195 = vector.broadcast %279 : f32 to vector<16x128xf32>
    %1196 = arith.mulf %1195, %368 : vector<16x128xf32>
    %1197 = arith.addf %1194, %1196 : vector<16x128xf32>
    %1198 = vector.broadcast %280 : f32 to vector<16x128xf32>
    %1199 = arith.mulf %1198, %371 : vector<16x128xf32>
    %1200 = arith.addf %1197, %1199 : vector<16x128xf32>
    %1201 = vector.broadcast %281 : f32 to vector<16x128xf32>
    %1202 = arith.mulf %1201, %374 : vector<16x128xf32>
    %1203 = arith.addf %1200, %1202 : vector<16x128xf32>
    %1204 = vector.broadcast %282 : f32 to vector<16x128xf32>
    %1205 = arith.mulf %1204, %377 : vector<16x128xf32>
    %1206 = arith.addf %1203, %1205 : vector<16x128xf32>
    %1207 = vector.broadcast %305 : f32 to vector<16x128xf32>
    %1208 = arith.addf %1206, %1207 : vector<16x128xf32>
    %1209 = vector.broadcast %155 : f32 to vector<16x128xf32>
    %1210 = arith.mulf %1209, %389 : vector<16x128xf32>
    %1211 = vector.broadcast %156 : f32 to vector<16x128xf32>
    %1212 = arith.mulf %1211, %401 : vector<16x128xf32>
    %1213 = arith.addf %1210, %1212 : vector<16x128xf32>
    %1214 = vector.broadcast %157 : f32 to vector<16x128xf32>
    %1215 = arith.mulf %1214, %413 : vector<16x128xf32>
    %1216 = arith.addf %1213, %1215 : vector<16x128xf32>
    %1217 = vector.broadcast %158 : f32 to vector<16x128xf32>
    %1218 = arith.mulf %1217, %425 : vector<16x128xf32>
    %1219 = arith.addf %1216, %1218 : vector<16x128xf32>
    %1220 = vector.broadcast %159 : f32 to vector<16x128xf32>
    %1221 = arith.mulf %1220, %437 : vector<16x128xf32>
    %1222 = arith.addf %1219, %1221 : vector<16x128xf32>
    %1223 = vector.broadcast %160 : f32 to vector<16x128xf32>
    %1224 = arith.mulf %1223, %449 : vector<16x128xf32>
    %1225 = arith.addf %1222, %1224 : vector<16x128xf32>
    %1226 = vector.broadcast %161 : f32 to vector<16x128xf32>
    %1227 = arith.mulf %1226, %461 : vector<16x128xf32>
    %1228 = arith.addf %1225, %1227 : vector<16x128xf32>
    %1229 = vector.broadcast %162 : f32 to vector<16x128xf32>
    %1230 = arith.mulf %1229, %473 : vector<16x128xf32>
    %1231 = arith.addf %1228, %1230 : vector<16x128xf32>
    %1232 = vector.broadcast %283 : f32 to vector<16x128xf32>
    %1233 = arith.mulf %1232, %356 : vector<16x128xf32>
    %1234 = arith.addf %1231, %1233 : vector<16x128xf32>
    %1235 = vector.broadcast %284 : f32 to vector<16x128xf32>
    %1236 = arith.mulf %1235, %359 : vector<16x128xf32>
    %1237 = arith.addf %1234, %1236 : vector<16x128xf32>
    %1238 = vector.broadcast %285 : f32 to vector<16x128xf32>
    %1239 = arith.mulf %1238, %362 : vector<16x128xf32>
    %1240 = arith.addf %1237, %1239 : vector<16x128xf32>
    %1241 = vector.broadcast %286 : f32 to vector<16x128xf32>
    %1242 = arith.mulf %1241, %365 : vector<16x128xf32>
    %1243 = arith.addf %1240, %1242 : vector<16x128xf32>
    %1244 = vector.broadcast %287 : f32 to vector<16x128xf32>
    %1245 = arith.mulf %1244, %368 : vector<16x128xf32>
    %1246 = arith.addf %1243, %1245 : vector<16x128xf32>
    %1247 = vector.broadcast %288 : f32 to vector<16x128xf32>
    %1248 = arith.mulf %1247, %371 : vector<16x128xf32>
    %1249 = arith.addf %1246, %1248 : vector<16x128xf32>
    %1250 = vector.broadcast %289 : f32 to vector<16x128xf32>
    %1251 = arith.mulf %1250, %374 : vector<16x128xf32>
    %1252 = arith.addf %1249, %1251 : vector<16x128xf32>
    %1253 = vector.broadcast %290 : f32 to vector<16x128xf32>
    %1254 = arith.mulf %1253, %377 : vector<16x128xf32>
    %1255 = arith.addf %1252, %1254 : vector<16x128xf32>
    %1256 = vector.broadcast %306 : f32 to vector<16x128xf32>
    %1257 = arith.addf %1255, %1256 : vector<16x128xf32>
    %1258 = arith.negf %522 : vector<16x128xf32>
    %1259 = math.exp %1258 : vector<16x128xf32>
    %cst_246 = arith.constant 1.000000e+00 : f32
    %1260 = vector.broadcast %cst_246 : f32 to vector<16x128xf32>
    %1261 = arith.addf %1260, %1259 : vector<16x128xf32>
    %1262 = arith.divf %1260, %1261 : vector<16x128xf32>
    %1263 = math.tanh %914 : vector<16x128xf32>
    %1264 = arith.subf %1263, %356 : vector<16x128xf32>
    %1265 = arith.mulf %1262, %1264 : vector<16x128xf32>
    %1266 = arith.addf %356, %1265 : vector<16x128xf32>
    %c0_247 = arith.constant 0 : index
    %1267 = arith.index_cast %344 : i32 to index
    %c0_248 = arith.constant 0 : index
    %1268 = vector.load %arg14[%c0_247, %1267, %c0_248] : memref<8x16x128xf32, #tpu.memory_space<vmem>>, vector<1x16x128xf32>
    %1269 = vector.shape_cast %1268 : vector<1x16x128xf32> to vector<16x128xf32>
    %1270 = vector.shape_cast %1266 : vector<16x128xf32> to vector<1x16x128xf32>
    tpu.vector_store %arg14[%c0_247, %1267, %c0_248], %1270 {strides = array<i32>} : memref<8x16x128xf32, #tpu.memory_space<vmem>>, vector<1x16x128xf32>,
    %1271 = arith.negf %571 : vector<16x128xf32>
    %1272 = math.exp %1271 : vector<16x128xf32>
    %cst_249 = arith.constant 1.000000e+00 : f32
    %1273 = vector.broadcast %cst_249 : f32 to vector<16x128xf32>
    %1274 = arith.addf %1273, %1272 : vector<16x128xf32>
    %1275 = arith.divf %1273, %1274 : vector<16x128xf32>
    %1276 = math.tanh %963 : vector<16x128xf32>
    %1277 = arith.subf %1276, %359 : vector<16x128xf32>
    %1278 = arith.mulf %1275, %1277 : vector<16x128xf32>
    %1279 = arith.addf %359, %1278 : vector<16x128xf32>
    %c1_250 = arith.constant 1 : index
    %1280 = arith.index_cast %344 : i32 to index
    %c0_251 = arith.constant 0 : index
    %1281 = vector.load %arg14[%c1_250, %1280, %c0_251] : memref<8x16x128xf32, #tpu.memory_space<vmem>>, vector<1x16x128xf32>
    %1282 = vector.shape_cast %1281 : vector<1x16x128xf32> to vector<16x128xf32>
    %1283 = vector.shape_cast %1279 : vector<16x128xf32> to vector<1x16x128xf32>
    tpu.vector_store %arg14[%c1_250, %1280, %c0_251], %1283 {strides = array<i32>} : memref<8x16x128xf32, #tpu.memory_space<vmem>>, vector<1x16x128xf32>,
    %1284 = arith.negf %620 : vector<16x128xf32>
    %1285 = math.exp %1284 : vector<16x128xf32>
    %cst_252 = arith.constant 1.000000e+00 : f32
    %1286 = vector.broadcast %cst_252 : f32 to vector<16x128xf32>
    %1287 = arith.addf %1286, %1285 : vector<16x128xf32>
    %1288 = arith.divf %1286, %1287 : vector<16x128xf32>
    %1289 = math.tanh %1012 : vector<16x128xf32>
    %1290 = arith.subf %1289, %362 : vector<16x128xf32>
    %1291 = arith.mulf %1288, %1290 : vector<16x128xf32>
    %1292 = arith.addf %362, %1291 : vector<16x128xf32>
    %c2_253 = arith.constant 2 : index
    %1293 = arith.index_cast %344 : i32 to index
    %c0_254 = arith.constant 0 : index
    %1294 = vector.load %arg14[%c2_253, %1293, %c0_254] : memref<8x16x128xf32, #tpu.memory_space<vmem>>, vector<1x16x128xf32>
    %1295 = vector.shape_cast %1294 : vector<1x16x128xf32> to vector<16x128xf32>
    %1296 = vector.shape_cast %1292 : vector<16x128xf32> to vector<1x16x128xf32>
    tpu.vector_store %arg14[%c2_253, %1293, %c0_254], %1296 {strides = array<i32>} : memref<8x16x128xf32, #tpu.memory_space<vmem>>, vector<1x16x128xf32>,
    %1297 = arith.negf %669 : vector<16x128xf32>
    %1298 = math.exp %1297 : vector<16x128xf32>
    %cst_255 = arith.constant 1.000000e+00 : f32
    %1299 = vector.broadcast %cst_255 : f32 to vector<16x128xf32>
    %1300 = arith.addf %1299, %1298 : vector<16x128xf32>
    %1301 = arith.divf %1299, %1300 : vector<16x128xf32>
    %1302 = math.tanh %1061 : vector<16x128xf32>
    %1303 = arith.subf %1302, %365 : vector<16x128xf32>
    %1304 = arith.mulf %1301, %1303 : vector<16x128xf32>
    %1305 = arith.addf %365, %1304 : vector<16x128xf32>
    %c3_256 = arith.constant 3 : index
    %1306 = arith.index_cast %344 : i32 to index
    %c0_257 = arith.constant 0 : index
    %1307 = vector.load %arg14[%c3_256, %1306, %c0_257] : memref<8x16x128xf32, #tpu.memory_space<vmem>>, vector<1x16x128xf32>
    %1308 = vector.shape_cast %1307 : vector<1x16x128xf32> to vector<16x128xf32>
    %1309 = vector.shape_cast %1305 : vector<16x128xf32> to vector<1x16x128xf32>
    tpu.vector_store %arg14[%c3_256, %1306, %c0_257], %1309 {strides = array<i32>} : memref<8x16x128xf32, #tpu.memory_space<vmem>>, vector<1x16x128xf32>,
    %1310 = arith.negf %718 : vector<16x128xf32>
    %1311 = math.exp %1310 : vector<16x128xf32>
    %cst_258 = arith.constant 1.000000e+00 : f32
    %1312 = vector.broadcast %cst_258 : f32 to vector<16x128xf32>
    %1313 = arith.addf %1312, %1311 : vector<16x128xf32>
    %1314 = arith.divf %1312, %1313 : vector<16x128xf32>
    %1315 = math.tanh %1110 : vector<16x128xf32>
    %1316 = arith.subf %1315, %368 : vector<16x128xf32>
    %1317 = arith.mulf %1314, %1316 : vector<16x128xf32>
    %1318 = arith.addf %368, %1317 : vector<16x128xf32>
    %c4_259 = arith.constant 4 : index
    %1319 = arith.index_cast %344 : i32 to index
    %c0_260 = arith.constant 0 : index
    %1320 = vector.load %arg14[%c4_259, %1319, %c0_260] : memref<8x16x128xf32, #tpu.memory_space<vmem>>, vector<1x16x128xf32>
    %1321 = vector.shape_cast %1320 : vector<1x16x128xf32> to vector<16x128xf32>
    %1322 = vector.shape_cast %1318 : vector<16x128xf32> to vector<1x16x128xf32>
    tpu.vector_store %arg14[%c4_259, %1319, %c0_260], %1322 {strides = array<i32>} : memref<8x16x128xf32, #tpu.memory_space<vmem>>, vector<1x16x128xf32>,
    %1323 = arith.negf %767 : vector<16x128xf32>
    %1324 = math.exp %1323 : vector<16x128xf32>
    %cst_261 = arith.constant 1.000000e+00 : f32
    %1325 = vector.broadcast %cst_261 : f32 to vector<16x128xf32>
    %1326 = arith.addf %1325, %1324 : vector<16x128xf32>
    %1327 = arith.divf %1325, %1326 : vector<16x128xf32>
    %1328 = math.tanh %1159 : vector<16x128xf32>
    %1329 = arith.subf %1328, %371 : vector<16x128xf32>
    %1330 = arith.mulf %1327, %1329 : vector<16x128xf32>
    %1331 = arith.addf %371, %1330 : vector<16x128xf32>
    %c5_262 = arith.constant 5 : index
    %1332 = arith.index_cast %344 : i32 to index
    %c0_263 = arith.constant 0 : index
    %1333 = vector.load %arg14[%c5_262, %1332, %c0_263] : memref<8x16x128xf32, #tpu.memory_space<vmem>>, vector<1x16x128xf32>
    %1334 = vector.shape_cast %1333 : vector<1x16x128xf32> to vector<16x128xf32>
    %1335 = vector.shape_cast %1331 : vector<16x128xf32> to vector<1x16x128xf32>
    tpu.vector_store %arg14[%c5_262, %1332, %c0_263], %1335 {strides = array<i32>} : memref<8x16x128xf32, #tpu.memory_space<vmem>>, vector<1x16x128xf32>,
    %1336 = arith.negf %816 : vector<16x128xf32>
    %1337 = math.exp %1336 : vector<16x128xf32>
    %cst_264 = arith.constant 1.000000e+00 : f32
    %1338 = vector.broadcast %cst_264 : f32 to vector<16x128xf32>
    %1339 = arith.addf %1338, %1337 : vector<16x128xf32>
    %1340 = arith.divf %1338, %1339 : vector<16x128xf32>
    %1341 = math.tanh %1208 : vector<16x128xf32>
    %1342 = arith.subf %1341, %374 : vector<16x128xf32>
    %1343 = arith.mulf %1340, %1342 : vector<16x128xf32>
    %1344 = arith.addf %374, %1343 : vector<16x128xf32>
    %c6_265 = arith.constant 6 : index
    %1345 = arith.index_cast %344 : i32 to index
    %c0_266 = arith.constant 0 : index
    %1346 = vector.load %arg14[%c6_265, %1345, %c0_266] : memref<8x16x128xf32, #tpu.memory_space<vmem>>, vector<1x16x128xf32>
    %1347 = vector.shape_cast %1346 : vector<1x16x128xf32> to vector<16x128xf32>
    %1348 = vector.shape_cast %1344 : vector<16x128xf32> to vector<1x16x128xf32>
    tpu.vector_store %arg14[%c6_265, %1345, %c0_266], %1348 {strides = array<i32>} : memref<8x16x128xf32, #tpu.memory_space<vmem>>, vector<1x16x128xf32>,
    %1349 = arith.negf %865 : vector<16x128xf32>
    %1350 = math.exp %1349 : vector<16x128xf32>
    %cst_267 = arith.constant 1.000000e+00 : f32
    %1351 = vector.broadcast %cst_267 : f32 to vector<16x128xf32>
    %1352 = arith.addf %1351, %1350 : vector<16x128xf32>
    %1353 = arith.divf %1351, %1352 : vector<16x128xf32>
    %1354 = math.tanh %1257 : vector<16x128xf32>
    %1355 = arith.subf %1354, %377 : vector<16x128xf32>
    %1356 = arith.mulf %1353, %1355 : vector<16x128xf32>
    %1357 = arith.addf %377, %1356 : vector<16x128xf32>
    %c7_268 = arith.constant 7 : index
    %1358 = arith.index_cast %344 : i32 to index
    %c0_269 = arith.constant 0 : index
    %1359 = vector.load %arg14[%c7_268, %1358, %c0_269] : memref<8x16x128xf32, #tpu.memory_space<vmem>>, vector<1x16x128xf32>
    %1360 = vector.shape_cast %1359 : vector<1x16x128xf32> to vector<16x128xf32>
    %1361 = vector.shape_cast %1357 : vector<16x128xf32> to vector<1x16x128xf32>
    tpu.vector_store %arg14[%c7_268, %1358, %c0_269], %1361 {strides = array<i32>} : memref<8x16x128xf32, #tpu.memory_space<vmem>>, vector<1x16x128xf32>,
    %1362 = vector.broadcast %307 : f32 to vector<16x128xf32>
    %1363 = arith.mulf %1362, %1266 : vector<16x128xf32>
    %1364 = vector.broadcast %308 : f32 to vector<16x128xf32>
    %1365 = arith.mulf %1364, %1279 : vector<16x128xf32>
    %1366 = arith.addf %1363, %1365 : vector<16x128xf32>
    %1367 = vector.broadcast %309 : f32 to vector<16x128xf32>
    %1368 = arith.mulf %1367, %1292 : vector<16x128xf32>
    %1369 = arith.addf %1366, %1368 : vector<16x128xf32>
    %1370 = vector.broadcast %310 : f32 to vector<16x128xf32>
    %1371 = arith.mulf %1370, %1305 : vector<16x128xf32>
    %1372 = arith.addf %1369, %1371 : vector<16x128xf32>
    %1373 = vector.broadcast %311 : f32 to vector<16x128xf32>
    %1374 = arith.mulf %1373, %1318 : vector<16x128xf32>
    %1375 = arith.addf %1372, %1374 : vector<16x128xf32>
    %1376 = vector.broadcast %312 : f32 to vector<16x128xf32>
    %1377 = arith.mulf %1376, %1331 : vector<16x128xf32>
    %1378 = arith.addf %1375, %1377 : vector<16x128xf32>
    %1379 = vector.broadcast %313 : f32 to vector<16x128xf32>
    %1380 = arith.mulf %1379, %1344 : vector<16x128xf32>
    %1381 = arith.addf %1378, %1380 : vector<16x128xf32>
    %1382 = vector.broadcast %314 : f32 to vector<16x128xf32>
    %1383 = arith.mulf %1382, %1357 : vector<16x128xf32>
    %1384 = arith.addf %1381, %1383 : vector<16x128xf32>
    %1385 = vector.broadcast %339 : f32 to vector<16x128xf32>
    %1386 = arith.addf %1384, %1385 : vector<16x128xf32>
    %1387 = arith.negf %1386 : vector<16x128xf32>
    %1388 = math.exp %1387 : vector<16x128xf32>
    %cst_270 = arith.constant 1.000000e+00 : f32
    %1389 = vector.broadcast %cst_270 : f32 to vector<16x128xf32>
    %1390 = arith.addf %1389, %1388 : vector<16x128xf32>
    %1391 = arith.divf %1389, %1390 : vector<16x128xf32>
    %1392 = vector.broadcast %315 : f32 to vector<16x128xf32>
    %1393 = arith.mulf %1392, %1266 : vector<16x128xf32>
    %1394 = vector.broadcast %316 : f32 to vector<16x128xf32>
    %1395 = arith.mulf %1394, %1279 : vector<16x128xf32>
    %1396 = arith.addf %1393, %1395 : vector<16x128xf32>
    %1397 = vector.broadcast %317 : f32 to vector<16x128xf32>
    %1398 = arith.mulf %1397, %1292 : vector<16x128xf32>
    %1399 = arith.addf %1396, %1398 : vector<16x128xf32>
    %1400 = vector.broadcast %318 : f32 to vector<16x128xf32>
    %1401 = arith.mulf %1400, %1305 : vector<16x128xf32>
    %1402 = arith.addf %1399, %1401 : vector<16x128xf32>
    %1403 = vector.broadcast %319 : f32 to vector<16x128xf32>
    %1404 = arith.mulf %1403, %1318 : vector<16x128xf32>
    %1405 = arith.addf %1402, %1404 : vector<16x128xf32>
    %1406 = vector.broadcast %320 : f32 to vector<16x128xf32>
    %1407 = arith.mulf %1406, %1331 : vector<16x128xf32>
    %1408 = arith.addf %1405, %1407 : vector<16x128xf32>
    %1409 = vector.broadcast %321 : f32 to vector<16x128xf32>
    %1410 = arith.mulf %1409, %1344 : vector<16x128xf32>
    %1411 = arith.addf %1408, %1410 : vector<16x128xf32>
    %1412 = vector.broadcast %322 : f32 to vector<16x128xf32>
    %1413 = arith.mulf %1412, %1357 : vector<16x128xf32>
    %1414 = arith.addf %1411, %1413 : vector<16x128xf32>
    %1415 = vector.broadcast %340 : f32 to vector<16x128xf32>
    %1416 = arith.addf %1414, %1415 : vector<16x128xf32>
    %1417 = arith.negf %1416 : vector<16x128xf32>
    %1418 = math.exp %1417 : vector<16x128xf32>
    %cst_271 = arith.constant 1.000000e+00 : f32
    %1419 = vector.broadcast %cst_271 : f32 to vector<16x128xf32>
    %1420 = arith.addf %1419, %1418 : vector<16x128xf32>
    %1421 = arith.divf %1419, %1420 : vector<16x128xf32>
    %1422 = vector.broadcast %323 : f32 to vector<16x128xf32>
    %1423 = arith.mulf %1422, %1266 : vector<16x128xf32>
    %1424 = vector.broadcast %324 : f32 to vector<16x128xf32>
    %1425 = arith.mulf %1424, %1279 : vector<16x128xf32>
    %1426 = arith.addf %1423, %1425 : vector<16x128xf32>
    %1427 = vector.broadcast %325 : f32 to vector<16x128xf32>
    %1428 = arith.mulf %1427, %1292 : vector<16x128xf32>
    %1429 = arith.addf %1426, %1428 : vector<16x128xf32>
    %1430 = vector.broadcast %326 : f32 to vector<16x128xf32>
    %1431 = arith.mulf %1430, %1305 : vector<16x128xf32>
    %1432 = arith.addf %1429, %1431 : vector<16x128xf32>
    %1433 = vector.broadcast %327 : f32 to vector<16x128xf32>
    %1434 = arith.mulf %1433, %1318 : vector<16x128xf32>
    %1435 = arith.addf %1432, %1434 : vector<16x128xf32>
    %1436 = vector.broadcast %328 : f32 to vector<16x128xf32>
    %1437 = arith.mulf %1436, %1331 : vector<16x128xf32>
    %1438 = arith.addf %1435, %1437 : vector<16x128xf32>
    %1439 = vector.broadcast %329 : f32 to vector<16x128xf32>
    %1440 = arith.mulf %1439, %1344 : vector<16x128xf32>
    %1441 = arith.addf %1438, %1440 : vector<16x128xf32>
    %1442 = vector.broadcast %330 : f32 to vector<16x128xf32>
    %1443 = arith.mulf %1442, %1357 : vector<16x128xf32>
    %1444 = arith.addf %1441, %1443 : vector<16x128xf32>
    %1445 = vector.broadcast %341 : f32 to vector<16x128xf32>
    %1446 = arith.addf %1444, %1445 : vector<16x128xf32>
    %1447 = arith.negf %1446 : vector<16x128xf32>
    %1448 = math.exp %1447 : vector<16x128xf32>
    %cst_272 = arith.constant 1.000000e+00 : f32
    %1449 = vector.broadcast %cst_272 : f32 to vector<16x128xf32>
    %1450 = arith.addf %1449, %1448 : vector<16x128xf32>
    %1451 = arith.divf %1449, %1450 : vector<16x128xf32>
    %1452 = vector.broadcast %331 : f32 to vector<16x128xf32>
    %1453 = arith.mulf %1452, %1266 : vector<16x128xf32>
    %1454 = vector.broadcast %332 : f32 to vector<16x128xf32>
    %1455 = arith.mulf %1454, %1279 : vector<16x128xf32>
    %1456 = arith.addf %1453, %1455 : vector<16x128xf32>
    %1457 = vector.broadcast %333 : f32 to vector<16x128xf32>
    %1458 = arith.mulf %1457, %1292 : vector<16x128xf32>
    %1459 = arith.addf %1456, %1458 : vector<16x128xf32>
    %1460 = vector.broadcast %334 : f32 to vector<16x128xf32>
    %1461 = arith.mulf %1460, %1305 : vector<16x128xf32>
    %1462 = arith.addf %1459, %1461 : vector<16x128xf32>
    %1463 = vector.broadcast %335 : f32 to vector<16x128xf32>
    %1464 = arith.mulf %1463, %1318 : vector<16x128xf32>
    %1465 = arith.addf %1462, %1464 : vector<16x128xf32>
    %1466 = vector.broadcast %336 : f32 to vector<16x128xf32>
    %1467 = arith.mulf %1466, %1331 : vector<16x128xf32>
    %1468 = arith.addf %1465, %1467 : vector<16x128xf32>
    %1469 = vector.broadcast %337 : f32 to vector<16x128xf32>
    %1470 = arith.mulf %1469, %1344 : vector<16x128xf32>
    %1471 = arith.addf %1468, %1470 : vector<16x128xf32>
    %1472 = vector.broadcast %338 : f32 to vector<16x128xf32>
    %1473 = arith.mulf %1472, %1357 : vector<16x128xf32>
    %1474 = arith.addf %1471, %1473 : vector<16x128xf32>
    %1475 = vector.broadcast %342 : f32 to vector<16x128xf32>
    %1476 = arith.addf %1474, %1475 : vector<16x128xf32>
    %1477 = arith.negf %1476 : vector<16x128xf32>
    %1478 = math.exp %1477 : vector<16x128xf32>
    %cst_273 = arith.constant 1.000000e+00 : f32
    %1479 = vector.broadcast %cst_273 : f32 to vector<16x128xf32>
    %1480 = arith.addf %1479, %1478 : vector<16x128xf32>
    %1481 = arith.divf %1479, %1480 : vector<16x128xf32>
    %1482 = arith.truncf %1391 : vector<16x128xf32> to vector<16x128xbf16>
    %c0_274 = arith.constant 0 : index
    %c0_275 = arith.constant 0 : index
    %1483 = arith.index_cast %344 : i32 to index
    %c0_276 = arith.constant 0 : index
    %1484 = vector.load %arg11[%c0_274, %c0_275, %1483, %c0_276] : memref<1x3x16x128xbf16, #tpu.memory_space<vmem>>, vector<1x1x16x128xbf16>
    %1485 = vector.shape_cast %1484 : vector<1x1x16x128xbf16> to vector<16x128xbf16>
    %1486 = vector.shape_cast %1482 : vector<16x128xbf16> to vector<1x1x16x128xbf16>
    tpu.vector_store %arg11[%c0_274, %c0_275, %1483, %c0_276], %1486 {strides = array<i32>} : memref<1x3x16x128xbf16, #tpu.memory_space<vmem>>, vector<1x1x16x128xbf16>,
    %1487 = arith.truncf %1421 : vector<16x128xf32> to vector<16x128xbf16>
    %c0_277 = arith.constant 0 : index
    %c1_278 = arith.constant 1 : index
    %1488 = arith.index_cast %344 : i32 to index
    %c0_279 = arith.constant 0 : index
    %1489 = vector.load %arg11[%c0_277, %c1_278, %1488, %c0_279] : memref<1x3x16x128xbf16, #tpu.memory_space<vmem>>, vector<1x1x16x128xbf16>
    %1490 = vector.shape_cast %1489 : vector<1x1x16x128xbf16> to vector<16x128xbf16>
    %1491 = vector.shape_cast %1487 : vector<16x128xbf16> to vector<1x1x16x128xbf16>
    tpu.vector_store %arg11[%c0_277, %c1_278, %1488, %c0_279], %1491 {strides = array<i32>} : memref<1x3x16x128xbf16, #tpu.memory_space<vmem>>, vector<1x1x16x128xbf16>,
    %1492 = arith.truncf %1451 : vector<16x128xf32> to vector<16x128xbf16>
    %c0_280 = arith.constant 0 : index
    %c2_281 = arith.constant 2 : index
    %1493 = arith.index_cast %344 : i32 to index
    %c0_282 = arith.constant 0 : index
    %1494 = vector.load %arg11[%c0_280, %c2_281, %1493, %c0_282] : memref<1x3x16x128xbf16, #tpu.memory_space<vmem>>, vector<1x1x16x128xbf16>
    %1495 = vector.shape_cast %1494 : vector<1x1x16x128xbf16> to vector<16x128xbf16>
    %1496 = vector.shape_cast %1492 : vector<16x128xbf16> to vector<1x1x16x128xbf16>
    tpu.vector_store %arg11[%c0_280, %c2_281, %1493, %c0_282], %1496 {strides = array<i32>} : memref<1x3x16x128xbf16, #tpu.memory_space<vmem>>, vector<1x1x16x128xbf16>,
    %1497 = arith.truncf %1481 : vector<16x128xf32> to vector<16x128xbf16>
    %c0_283 = arith.constant 0 : index
    %c0_284 = arith.constant 0 : index
    %1498 = arith.index_cast %344 : i32 to index
    %c0_285 = arith.constant 0 : index
    %1499 = vector.load %arg12[%c0_283, %c0_284, %1498, %c0_285] : memref<1x1x16x128xbf16, #tpu.memory_space<vmem>>, vector<1x1x16x128xbf16>
    %1500 = vector.shape_cast %1499 : vector<1x1x16x128xbf16> to vector<16x128xbf16>
    %1501 = vector.shape_cast %1497 : vector<16x128xbf16> to vector<1x1x16x128xbf16>
    tpu.vector_store %arg12[%c0_283, %c0_284, %1498, %c0_285], %1501 {strides = array<i32>} : memref<1x1x16x128xbf16, #tpu.memory_space<vmem>>, vector<1x1x16x128xbf16>,
    %cst_286 = arith.constant 0.000000e+00 : f32
    %1502 = vector.broadcast %cst_286 : f32 to vector<16x128xf32>
    %1503 = arith.cmpf ogt, %1481, %1502 : vector<16x128xf32>
    %1504 = arith.extui %1503 : vector<16x128xi1> to vector<16x128xi32>
    %1505 = arith.sitofp %1504 : vector<16x128xi32> to vector<16x128xf32>
    %1506 = arith.mulf %1391, %1505 : vector<16x128xf32>
    %1507 = arith.truncf %1506 : vector<16x128xf32> to vector<16x128xbf16>
    %c0_287 = arith.constant 0 : index
    %c0_288 = arith.constant 0 : index
    %1508 = arith.index_cast %344 : i32 to index
    %c0_289 = arith.constant 0 : index
    %1509 = vector.load %arg13[%c0_287, %c0_288, %1508, %c0_289] : memref<1x4x16x128xbf16, #tpu.memory_space<vmem>>, vector<1x1x16x128xbf16>
    %1510 = vector.shape_cast %1509 : vector<1x1x16x128xbf16> to vector<16x128xbf16>
    %1511 = vector.shape_cast %1507 : vector<16x128xbf16> to vector<1x1x16x128xbf16>
    tpu.vector_store %arg13[%c0_287, %c0_288, %1508, %c0_289], %1511 {strides = array<i32>} : memref<1x4x16x128xbf16, #tpu.memory_space<vmem>>, vector<1x1x16x128xbf16>,
    %1512 = arith.mulf %1421, %1505 : vector<16x128xf32>
    %1513 = arith.truncf %1512 : vector<16x128xf32> to vector<16x128xbf16>
    %c0_290 = arith.constant 0 : index
    %c1_291 = arith.constant 1 : index
    %1514 = arith.index_cast %344 : i32 to index
    %c0_292 = arith.constant 0 : index
    %1515 = vector.load %arg13[%c0_290, %c1_291, %1514, %c0_292] : memref<1x4x16x128xbf16, #tpu.memory_space<vmem>>, vector<1x1x16x128xbf16>
    %1516 = vector.shape_cast %1515 : vector<1x1x16x128xbf16> to vector<16x128xbf16>
    %1517 = vector.shape_cast %1513 : vector<16x128xbf16> to vector<1x1x16x128xbf16>
    tpu.vector_store %arg13[%c0_290, %c1_291, %1514, %c0_292], %1517 {strides = array<i32>} : memref<1x4x16x128xbf16, #tpu.memory_space<vmem>>, vector<1x1x16x128xbf16>,
    %1518 = arith.mulf %1451, %1505 : vector<16x128xf32>
    %1519 = arith.truncf %1518 : vector<16x128xf32> to vector<16x128xbf16>
    %c0_293 = arith.constant 0 : index
    %c2_294 = arith.constant 2 : index
    %1520 = arith.index_cast %344 : i32 to index
    %c0_295 = arith.constant 0 : index
    %1521 = vector.load %arg13[%c0_293, %c2_294, %1520, %c0_295] : memref<1x4x16x128xbf16, #tpu.memory_space<vmem>>, vector<1x1x16x128xbf16>
    %1522 = vector.shape_cast %1521 : vector<1x1x16x128xbf16> to vector<16x128xbf16>
    %1523 = vector.shape_cast %1519 : vector<16x128xbf16> to vector<1x1x16x128xbf16>
    tpu.vector_store %arg13[%c0_293, %c2_294, %1520, %c0_295], %1523 {strides = array<i32>} : memref<1x4x16x128xbf16, #tpu.memory_space<vmem>>, vector<1x1x16x128xbf16>,
    %1524 = arith.truncf %1481 : vector<16x128xf32> to vector<16x128xbf16>
    %c0_296 = arith.constant 0 : index
    %c3_297 = arith.constant 3 : index
    %1525 = arith.index_cast %344 : i32 to index
    %c0_298 = arith.constant 0 : index
    %1526 = vector.load %arg13[%c0_296, %c3_297, %1525, %c0_298] : memref<1x4x16x128xbf16, #tpu.memory_space<vmem>>, vector<1x1x16x128xbf16>
    %1527 = vector.shape_cast %1526 : vector<1x1x16x128xbf16> to vector<16x128xbf16>
    %1528 = vector.shape_cast %1524 : vector<16x128xbf16> to vector<1x1x16x128xbf16>
    tpu.vector_store %arg13[%c0_296, %c3_297, %1525, %c0_298], %1528 {strides = array<i32>} : memref<1x4x16x128xbf16, #tpu.memory_space<vmem>>, vector<1x1x16x128xbf16>,
    %c1_i32 = arith.constant 1 : i32
    return
  }
  func.func @transform_0(%arg0: i32, %arg1: i32) -> (i32, i32, i32, i32) {
    %c0_i32 = arith.constant 0 : i32
    %c0_i32_0 = arith.constant 0 : i32
    %c0_i32_1 = arith.constant 0 : i32
    return %arg1, %c0_i32, %arg0, %c0_i32_0 : i32, i32, i32, i32
  }
  func.func @transform_1(%arg0: i32, %arg1: i32) -> i32 {
    %c0_i32 = arith.constant 0 : i32
    %c0_i32_0 = arith.constant 0 : i32
    return %c0_i32 : i32
  }
  func.func @transform_2(%arg0: i32, %arg1: i32) -> i32 {
    %c0_i32 = arith.constant 0 : i32
    %c0_i32_0 = arith.constant 0 : i32
    return %c0_i32 : i32
  }
  func.func @transform_3(%arg0: i32, %arg1: i32) -> i32 {
    %c0_i32 = arith.constant 0 : i32
    %c0_i32_0 = arith.constant 0 : i32
    return %c0_i32 : i32
  }
  func.func @transform_4(%arg0: i32, %arg1: i32) -> i32 {
    %c0_i32 = arith.constant 0 : i32
    %c0_i32_0 = arith.constant 0 : i32
    return %c0_i32 : i32
  }
  func.func @transform_5(%arg0: i32, %arg1: i32) -> i32 {
    %c0_i32 = arith.constant 0 : i32
    %c0_i32_0 = arith.constant 0 : i32
    return %c0_i32 : i32
  }
  func.func @transform_6(%arg0: i32, %arg1: i32) -> i32 {
    %c0_i32 = arith.constant 0 : i32
    %c0_i32_0 = arith.constant 0 : i32
    return %c0_i32 : i32
  }
  func.func @transform_7(%arg0: i32, %arg1: i32) -> i32 {
    %c0_i32 = arith.constant 0 : i32
    %c0_i32_0 = arith.constant 0 : i32
    return %c0_i32 : i32
  }
  func.func @transform_8(%arg0: i32, %arg1: i32) -> i32 {
    %c0_i32 = arith.constant 0 : i32
    %c0_i32_0 = arith.constant 0 : i32
    return %c0_i32 : i32
  }
  func.func @transform_9(%arg0: i32, %arg1: i32) -> (i32, i32, i32, i32) {
    %c0_i32 = arith.constant 0 : i32
    %c0_i32_0 = arith.constant 0 : i32
    %c0_i32_1 = arith.constant 0 : i32
    return %arg1, %c0_i32, %arg0, %c0_i32_0 : i32, i32, i32, i32
  }
  func.func @transform_10(%arg0: i32, %arg1: i32) -> (i32, i32, i32, i32) {
    %c0_i32 = arith.constant 0 : i32
    %c0_i32_0 = arith.constant 0 : i32
    %c0_i32_1 = arith.constant 0 : i32
    return %arg1, %c0_i32, %arg0, %c0_i32_0 : i32, i32, i32, i32
  }
  func.func @transform_11(%arg0: i32, %arg1: i32) -> (i32, i32, i32, i32) {
    %c0_i32 = arith.constant 0 : i32
    %c0_i32_0 = arith.constant 0 : i32
    %c0_i32_1 = arith.constant 0 : i32
    return %arg1, %c0_i32, %arg0, %c0_i32_0 : i32, i32, i32, i32
  }
}

</mosaic_0001>

<llo_original>
// kernel: _run_matting_kernel.1
$region0: #{_run_matting_kernel.1}
  #allocation0 [shape = 'u32[]', space=smem, size = 0x4, offset = 0x4, fixed_abs, tag = 'smem constant byte address 0x4 - core index']
  #allocation1 [shape = 'u32[144,128]{1,0:T(1,128)}', space=vmem, size = 0x12000, scoped, tag = 'internal scratch']
  #allocation2 [shape = 'f32[8,16,128]{2,1,0:T(8,128)}', space=vmem, size = 0x10000, scoped, tag = 'scratch operand']
  %s0 = inlined_call_operand.hbm [shape: f32[4,3,16,128], index: 0, kind: input, shape index: {}]
  %s1 = inlined_call_operand.vmem [shape: f32[24], index: 1, kind: input, shape index: {}]
  %s2 = inlined_call_operand.vmem [shape: f32[8], index: 2, kind: input, shape index: {}]
  %s3 = inlined_call_operand.vmem [shape: f32[128], index: 3, kind: input, shape index: {}]
  %s4 = inlined_call_operand.vmem [shape: f32[128], index: 4, kind: input, shape index: {}]
  %s5 = inlined_call_operand.vmem [shape: f32[16], index: 5, kind: input, shape index: {}]
  %s6 = inlined_call_operand.vmem [shape: f32[32], index: 6, kind: input, shape index: {}]
  %s7 = inlined_call_operand.vmem [shape: f32[4], index: 7, kind: input, shape index: {}]
  %s8 = inlined_call_operand.vmem [shape: f32[3], index: 8, kind: input, shape index: {}]
  %s9 = inlined_call_operand.hbm [shape: bf16[4,3,16,128], index: 9, kind: output, shape index: {0}]
  %s10 = inlined_call_operand.hbm [shape: bf16[4,1,16,128], index: 10, kind: output, shape index: {1}]
  %s11 = inlined_call_operand.hbm [shape: bf16[4,4,16,128], index: 11, kind: output, shape index: {2}]
  %12 = xla_tuple %s9, %s10, %s11
  %s13 = sld [smem:[#allocation0]]
  $region125: #{_run_matting_kernel.1} parent=0
    _
  %s15 = ssub.s32 1, %s13
  %s16 = scalar_select 0, %s15, %s13
  $region1: #{_run_matting_kernel.1} parent=0
    #allocation3 [shape = 'u8[49152]{0}', space=vmem, size = 0xc000, scoped, tag = 'input window, operand 0']
    #allocation4 [shape = 's32[2]{0}', space=sflag, size = 0x8, scoped, tag = 'scoped memory for _run_matting_kernel.1']
    #allocation5 [shape = 's32[2]{0}', space=sflag, size = 0x8, scoped, tag = 'scoped memory for _run_matting_kernel.1']
    #allocation6 [shape = 's32[2]{0}', space=sflag, size = 0x8, scoped, tag = 'scoped memory for _run_matting_kernel.1']
    #allocation7 [shape = 'u8[512]{0}', space=smem, size = 0x200, scoped, tag = 'input window, operand 1, single buffered']
    #allocation8 [shape = 'u8[512]{0}', space=smem, size = 0x200, scoped, tag = 'input window, operand 2, single buffered']
    #allocation9 [shape = 's32[1]{0}', space=sflag, size = 0x4, scoped, tag = 'scoped memory for _run_matting_kernel.1']
    #allocation10 [shape = 'u8[512]{0}', space=smem, size = 0x200, scoped, tag = 'input window, operand 3, single buffered']
    #allocation11 [shape = 'u8[512]{0}', space=smem, size = 0x200, scoped, tag = 'input window, operand 4, single buffered']
    #allocation12 [shape = 's32[1]{0}', space=sflag, size = 0x4, scoped, tag = 'scoped memory for _run_matting_kernel.1']
    #allocation13 [shape = 'u8[512]{0}', space=smem, size = 0x200, scoped, tag = 'input window, operand 5, single buffered']
    #allocation14 [shape = 'u8[512]{0}', space=smem, size = 0x200, scoped, tag = 'input window, operand 6, single buffered']
    #allocation15 [shape = 's32[1]{0}', space=sflag, size = 0x4, scoped, tag = 'scoped memory for _run_matting_kernel.1']
    #allocation16 [shape = 'u8[512]{0}', space=smem, size = 0x200, scoped, tag = 'input window, operand 7, single buffered']
    #allocation17 [shape = 'u8[512]{0}', space=smem, size = 0x200, scoped, tag = 'input window, operand 8, single buffered']
    #allocation18 [shape = 's32[1]{0}', space=sflag, size = 0x4, scoped, tag = 'scoped memory for _run_matting_kernel.1']
    #allocation19 [shape = 'u8[24576]{0}', space=vmem, size = 0x6000, scoped, tag = 'output window, operand 0']
    #allocation20 [shape = 'u8[8192]{0}', space=vmem, size = 0x2000, scoped, tag = 'output window, operand 1']
    #allocation21 [shape = 's32[2]{0}', space=sflag, size = 0x8, scoped, tag = 'scoped memory for _run_matting_kernel.1']
    #allocation22 [shape = 'u8[32768]{0}', space=vmem, size = 0x8000, scoped, tag = 'output window, operand 2']
    %17 = vsyncpa [#allocation4], 0
    %s18 = scalar_lea.sflag [#allocation4], 1
    %19 = vsyncpa %s18, 0
    %20 = vsyncpa [#allocation6], 0
    %21 = vsyncpa [#allocation9], 0
    %22 = vsyncpa [#allocation12], 0
    %23 = vsyncpa [#allocation15], 0
    %24 = vsyncpa [#allocation18], 0
    %25 = vsyncpa [#allocation5], 0
    %s26 = scalar_lea.sflag [#allocation5], 1
    %27 = vsyncpa %s26, 0
    %28 = vsyncpa [#allocation21], 0
    %s29 = scalar_lea.sflag [#allocation21], 1
    %30 = vsyncpa %s29, 0
    loop: start=0, step=1, limit=6
    $region2: #{_run_matting_kernel.1} parent=1 // loop_pre_header
      _
    $region3: #{_run_matting_kernel.1} parent=1 // loop_header
      %s32 = sphi 0, %s36
      %p33 = scmp.ge.s32.totalorder %s32, 6
      %s39 = sphi 0, %s51
      %s40 = sphi 0, %s47
      %s41 = sphi 0, %s39
      %s42 = sphi 0, %s40
      %s43 = sphi 0, %s41
      %s44 = sphi 0, %s42
      %s56 = sphi 0, %s58
      %s59 = sphi 0, %s56
      %s60 = sphi 0, %s59
      %s76 = sphi 0, %s60
      %s80 = sphi 0, %s80
      %s82 = sphi 0, %s80
      %s83 = sphi 0, %s82
      %s97 = sphi 0, %s83
      %s101 = sphi 0, %s101
      %s103 = sphi 0, %s101
      %s104 = sphi 0, %s103
      %s118 = sphi 0, %s104
      %s122 = sphi 0, %s122
      %s124 = sphi 0, %s122
      %s125 = sphi 0, %s124
      %s139 = sphi 0, %s125
      %s143 = sphi 0, %s143
      %s145 = sphi 0, %s143
      %s146 = sphi 0, %s145
      %s160 = sphi 0, %s146
      %s164 = sphi 0, %s164
      %s166 = sphi 0, %s164
      %s167 = sphi 0, %s166
      %s181 = sphi 0, %s167
      %s185 = sphi 0, %s185
      %s187 = sphi 0, %s185
      %s188 = sphi 0, %s187
      %s202 = sphi 0, %s188
      %s206 = sphi 0, %s206
      %s208 = sphi 0, %s206
      %s209 = sphi 0, %s208
      %s223 = sphi 0, %s209
      %s227 = sphi 0, %s227
      %s229 = sphi 0, %s227
      %s230 = sphi 0, %s229
      %s244 = sphi 0, %s230
      %s252 = sphi 0, %s254
      %s255 = sphi 0, %s252
      %s256 = sphi 0, %s255
      %s272 = sphi 0, %s256
      %s280 = sphi 0, %s282
      %s283 = sphi 0, %s280
      %s284 = sphi 0, %s283
      %s300 = sphi 0, %s284
      %s308 = sphi 0, %s310
      %s311 = sphi 0, %s308
      %s312 = sphi 0, %s311
      %s328 = sphi 0, %s312
    $region4: #{_run_matting_kernel.1} parent=1 // loop_header_branch
      %35 = sbr.rel (%p33) target = $region8
    $region5: #{_run_matting_kernel.1} parent=1 // loop_body
      %s37 = ssub.s32 %s32, 1
      %s38 = ssub.s32 %s32, 2
      %s45 = sadd.s32 1, %s40
      %p46 = scmp.ge.s32.totalorder %s45, 4
      %s47 = scalar_select %p46, 0, %s45
      %s48 = sadd.s32 1, %s39
      %s49 = scalar_select %p46, %s48, %s39
      %p50 = scmp.ge.s32.totalorder %s49, 1
      %s51 = scalar_select %p50, 0, %s49
      %s52 = ssub.s32 %s40, %s47
      %s53 = ssub.s32 %s39, %s51
      %s54 = sor.u32 %s52, %s53
      %p55 = scmp.eq.s32.totalorder %s54, 0
      %s57 = sadd.s32 %s56, 1
      %s58 = scalar_select %p55, %s56, %s57
      %p61 = pneg %p55
      %p62 = scmp.eq.s32.totalorder %s32, 3
      %p63 = por %p61, %p62
      %p64 = scmp.ne.s32.totalorder %s56, %s59
      %p65 = scmp.eq.s32.totalorder %s32, 0
      %p66 = por %p64, %p65
      %p67 = scmp.ne.s32.totalorder %s56, %s59
      %p68 = scmp.eq.s32.totalorder %s37, 3
      %p69 = por %p67, %p68
      %p70 = scmp.ne.s32.totalorder %s59, %s60
      %p71 = scmp.eq.s32.totalorder %s37, 0
      %p72 = por %p70, %p71
      %p73 = scmp.ne.s32.totalorder %s59, %s60
      %p74 = scmp.eq.s32.totalorder %s38, 3
      %p75 = por %p73, %p74
      %p77 = scmp.ne.s32.totalorder %s60, %s76
      %p78 = scmp.eq.s32.totalorder %s38, 0
      %p79 = por %p77, %p78
      %s81 = sadd.s32 %s80, 1
      %p84 = scmp.eq.s32.totalorder %s32, 3
      %p85 = scmp.ne.s32.totalorder %s80, %s82
      %p86 = scmp.eq.s32.totalorder %s32, 0
      %p87 = por %p85, %p86
      %p88 = scmp.ne.s32.totalorder %s80, %s82
      %p89 = scmp.eq.s32.totalorder %s37, 3
      %p90 = por %p88, %p89
      %p91 = scmp.ne.s32.totalorder %s82, %s83
      %p92 = scmp.eq.s32.totalorder %s37, 0
      %p93 = por %p91, %p92
      %p94 = scmp.ne.s32.totalorder %s82, %s83
      %p95 = scmp.eq.s32.totalorder %s38, 3
      %p96 = por %p94, %p95
      %p98 = scmp.ne.s32.totalorder %s83, %s97
      %p99 = scmp.eq.s32.totalorder %s38, 0
      %p100 = por %p98, %p99
      %s102 = sadd.s32 %s101, 1
      %p105 = scmp.eq.s32.totalorder %s32, 3
      %p106 = scmp.ne.s32.totalorder %s101, %s103
      %p107 = scmp.eq.s32.totalorder %s32, 0
      %p108 = por %p106, %p107
      %p109 = scmp.ne.s32.totalorder %s101, %s103
      %p110 = scmp.eq.s32.totalorder %s37, 3
      %p111 = por %p109, %p110
      %p112 = scmp.ne.s32.totalorder %s103, %s104
      %p113 = scmp.eq.s32.totalorder %s37, 0
      %p114 = por %p112, %p113
      %p115 = scmp.ne.s32.totalorder %s103, %s104
      %p116 = scmp.eq.s32.totalorder %s38, 3
      %p117 = por %p115, %p116
      %p119 = scmp.ne.s32.totalorder %s104, %s118
      %p120 = scmp.eq.s32.totalorder %s38, 0
      %p121 = por %p119, %p120
      %s123 = sadd.s32 %s122, 1
      %p126 = scmp.eq.s32.totalorder %s32, 3
      %p127 = scmp.ne.s32.totalorder %s122, %s124
      %p128 = scmp.eq.s32.totalorder %s32, 0
      %p129 = por %p127, %p128
      %p130 = scmp.ne.s32.totalorder %s122, %s124
      %p131 = scmp.eq.s32.totalorder %s37, 3
      %p132 = por %p130, %p131
      %p133 = scmp.ne.s32.totalorder %s124, %s125
      %p134 = scmp.eq.s32.totalorder %s37, 0
      %p135 = por %p133, %p134
      %p136 = scmp.ne.s32.totalorder %s124, %s125
      %p137 = scmp.eq.s32.totalorder %s38, 3
      %p138 = por %p136, %p137
      %p140 = scmp.ne.s32.totalorder %s125, %s139
      %p141 = scmp.eq.s32.totalorder %s38, 0
      %p142 = por %p140, %p141
      %s144 = sadd.s32 %s143, 1
      %p147 = scmp.eq.s32.totalorder %s32, 3
      %p148 = scmp.ne.s32.totalorder %s143, %s145
      %p149 = scmp.eq.s32.totalorder %s32, 0
      %p150 = por %p148, %p149
      %p151 = scmp.ne.s32.totalorder %s143, %s145
      %p152 = scmp.eq.s32.totalorder %s37, 3
      %p153 = por %p151, %p152
      %p154 = scmp.ne.s32.totalorder %s145, %s146
      %p155 = scmp.eq.s32.totalorder %s37, 0
      %p156 = por %p154, %p155
      %p157 = scmp.ne.s32.totalorder %s145, %s146
      %p158 = scmp.eq.s32.totalorder %s38, 3
      %p159 = por %p157, %p158
      %p161 = scmp.ne.s32.totalorder %s146, %s160
      %p162 = scmp.eq.s32.totalorder %s38, 0
      %p163 = por %p161, %p162
      %s165 = sadd.s32 %s164, 1
      %p168 = scmp.eq.s32.totalorder %s32, 3
      %p169 = scmp.ne.s32.totalorder %s164, %s166
      %p170 = scmp.eq.s32.totalorder %s32, 0
      %p171 = por %p169, %p170
      %p172 = scmp.ne.s32.totalorder %s164, %s166
      %p173 = scmp.eq.s32.totalorder %s37, 3
      %p174 = por %p172, %p173
      %p175 = scmp.ne.s32.totalorder %s166, %s167
      %p176 = scmp.eq.s32.totalorder %s37, 0
      %p177 = por %p175, %p176
      %p178 = scmp.ne.s32.totalorder %s166, %s167
      %p179 = scmp.eq.s32.totalorder %s38, 3
      %p180 = por %p178, %p179
      %p182 = scmp.ne.s32.totalorder %s167, %s181
      %p183 = scmp.eq.s32.totalorder %s38, 0
      %p184 = por %p182, %p183
      %s186 = sadd.s32 %s185, 1
      %p189 = scmp.eq.s32.totalorder %s32, 3
      %p190 = scmp.ne.s32.totalorder %s185, %s187
      %p191 = scmp.eq.s32.totalorder %s32, 0
      %p192 = por %p190, %p191
      %p193 = scmp.ne.s32.totalorder %s185, %s187
      %p194 = scmp.eq.s32.totalorder %s37, 3
      %p195 = por %p193, %p194
      %p196 = scmp.ne.s32.totalorder %s187, %s188
      %p197 = scmp.eq.s32.totalorder %s37, 0
      %p198 = por %p196, %p197
      %p199 = scmp.ne.s32.totalorder %s187, %s188
      %p200 = scmp.eq.s32.totalorder %s38, 3
      %p201 = por %p199, %p200
      %p203 = scmp.ne.s32.totalorder %s188, %s202
      %p204 = scmp.eq.s32.totalorder %s38, 0
      %p205 = por %p203, %p204
      %s207 = sadd.s32 %s206, 1
      %p210 = scmp.eq.s32.totalorder %s32, 3
      %p211 = scmp.ne.s32.totalorder %s206, %s208
      %p212 = scmp.eq.s32.totalorder %s32, 0
      %p213 = por %p211, %p212
      %p214 = scmp.ne.s32.totalorder %s206, %s208
      %p215 = scmp.eq.s32.totalorder %s37, 3
      %p216 = por %p214, %p215
      %p217 = scmp.ne.s32.totalorder %s208, %s209
      %p218 = scmp.eq.s32.totalorder %s37, 0
      %p219 = por %p217, %p218
      %p220 = scmp.ne.s32.totalorder %s208, %s209
      %p221 = scmp.eq.s32.totalorder %s38, 3
      %p222 = por %p220, %p221
      %p224 = scmp.ne.s32.totalorder %s209, %s223
      %p225 = scmp.eq.s32.totalorder %s38, 0
      %p226 = por %p224, %p225
      %s228 = sadd.s32 %s227, 1
      %p231 = scmp.eq.s32.totalorder %s32, 3
      %p232 = scmp.ne.s32.totalorder %s227, %s229
      %p233 = scmp.eq.s32.totalorder %s32, 0
      %p234 = por %p232, %p233
      %p235 = scmp.ne.s32.totalorder %s227, %s229
      %p236 = scmp.eq.s32.totalorder %s37, 3
      %p237 = por %p235, %p236
      %p238 = scmp.ne.s32.totalorder %s229, %s230
      %p239 = scmp.eq.s32.totalorder %s37, 0
      %p240 = por %p238, %p239
      %p241 = scmp.ne.s32.totalorder %s229, %s230
      %p242 = scmp.eq.s32.totalorder %s38, 3
      %p243 = por %p241, %p242
      %p245 = scmp.ne.s32.totalorder %s230, %s244
      %p246 = scmp.eq.s32.totalorder %s38, 0
      %p247 = por %p245, %p246
      %s248 = ssub.s32 %s40, %s47
      %s249 = ssub.s32 %s39, %s51
      %s250 = sor.u32 %s248, %s249
      %p251 = scmp.eq.s32.totalorder %s250, 0
      %s253 = sadd.s32 %s252, 1
      %s254 = scalar_select %p251, %s252, %s253
      %p257 = pneg %p251
      %p258 = scmp.eq.s32.totalorder %s32, 3
      %p259 = por %p257, %p258
      %p260 = scmp.ne.s32.totalorder %s252, %s255
      %p261 = scmp.eq.s32.totalorder %s32, 0
      %p262 = por %p260, %p261
      %p263 = scmp.ne.s32.totalorder %s252, %s255
      %p264 = scmp.eq.s32.totalorder %s37, 3
      %p265 = por %p263, %p264
      %p266 = scmp.ne.s32.totalorder %s255, %s256
      %p267 = scmp.eq.s32.totalorder %s37, 0
      %p268 = por %p266, %p267
      %p269 = scmp.ne.s32.totalorder %s255, %s256
      %p270 = scmp.eq.s32.totalorder %s38, 3
      %p271 = por %p269, %p270
      %p273 = scmp.ne.s32.totalorder %s256, %s272
      %p274 = scmp.eq.s32.totalorder %s38, 0
      %p275 = por %p273, %p274
      %s276 = ssub.s32 %s40, %s47
      %s277 = ssub.s32 %s39, %s51
      %s278 = sor.u32 %s276, %s277
      %p279 = scmp.eq.s32.totalorder %s278, 0
      %s281 = sadd.s32 %s280, 1
      %s282 = scalar_select %p279, %s280, %s281
      %p285 = pneg %p279
      %p286 = scmp.eq.s32.totalorder %s32, 3
      %p287 = por %p285, %p286
      %p288 = scmp.ne.s32.totalorder %s280, %s283
      %p289 = scmp.eq.s32.totalorder %s32, 0
      %p290 = por %p288, %p289
      %p291 = scmp.ne.s32.totalorder %s280, %s283
      %p292 = scmp.eq.s32.totalorder %s37, 3
      %p293 = por %p291, %p292
      %p294 = scmp.ne.s32.totalorder %s283, %s284
      %p295 = scmp.eq.s32.totalorder %s37, 0
      %p296 = por %p294, %p295
      %p297 = scmp.ne.s32.totalorder %s283, %s284
      %p298 = scmp.eq.s32.totalorder %s38, 3
      %p299 = por %p297, %p298
      %p301 = scmp.ne.s32.totalorder %s284, %s300
      %p302 = scmp.eq.s32.totalorder %s38, 0
      %p303 = por %p301, %p302
      %s304 = ssub.s32 %s40, %s47
      %s305 = ssub.s32 %s39, %s51
      %s306 = sor.u32 %s304, %s305
      %p307 = scmp.eq.s32.totalorder %s306, 0
      %s309 = sadd.s32 %s308, 1
      %s310 = scalar_select %p307, %s308, %s309
      %p313 = pneg %p307
      %p314 = scmp.eq.s32.totalorder %s32, 3
      %p315 = por %p313, %p314
      %p316 = scmp.ne.s32.totalorder %s308, %s311
      %p317 = scmp.eq.s32.totalorder %s32, 0
      %p318 = por %p316, %p317
      %p319 = scmp.ne.s32.totalorder %s308, %s311
      %p320 = scmp.eq.s32.totalorder %s37, 3
      %p321 = por %p319, %p320
      %p322 = scmp.ne.s32.totalorder %s311, %s312
      %p323 = scmp.eq.s32.totalorder %s37, 0
      %p324 = por %p322, %p323
      %p325 = scmp.ne.s32.totalorder %s311, %s312
      %p326 = scmp.eq.s32.totalorder %s38, 3
      %p327 = por %p325, %p326
      %p329 = scmp.ne.s32.totalorder %s312, %s328
      %p330 = scmp.eq.s32.totalorder %s38, 0
      %p331 = por %p329, %p330
      %p332 = scmp.le.s32.totalorder 1, %s32
      %p333 = scmp.lt.s32.totalorder %s32, 5
      %p334 = pnand %p332, %p333
      %p335 = pneg %p334
      // Predicated region
      $region9: #{_run_matting_kernel.1} parent=5 // pred_check
        _
      $region10: #{_run_matting_kernel.1} parent=5 // pred_check_branch
        %337 = sbr.rel (%p334) target = $region12
      $region11: #{_run_matting_kernel.1} parent=5 // pred_region
        %s338 = ssub.s32 %s32, 1
        // Predicated region
        $region13: #{_run_matting_kernel.1} parent=11 // pred_check
          %p339 = pneg %p93
        $region14: #{_run_matting_kernel.1} parent=11 // pred_check_branch
          %341 = sbr.rel (%p339) target = $region16
        $region15: #{_run_matting_kernel.1} parent=11 // pred_region
          %s343 = ssub.s32 16, 16
          %344 = vsyncadd [#allocation6], %s343
          %s346 = sshll.u32 %s1, 4
          %s347 = int_to_ptr.vmem [resolvable:$true] %s346
          %349 = dma.vmem_to_smem %s347, 16, [#allocation7], [#allocation6]
        $region16: #{_run_matting_kernel.1} parent=11 // pred_fallthru
          _
        // Predicated region
        $region17: #{_run_matting_kernel.1} parent=11 // pred_check
          %p350 = pneg %p114
        $region18: #{_run_matting_kernel.1} parent=11 // pred_check_branch
          %352 = sbr.rel (%p350) target = $region20
        $region19: #{_run_matting_kernel.1} parent=11 // pred_region
          %s354 = ssub.s32 16, 16
          %355 = vsyncadd [#allocation9], %s354
          %s357 = sshll.u32 %s2, 4
          %s358 = int_to_ptr.vmem [resolvable:$true] %s357
          %360 = dma.vmem_to_smem %s358, 16, [#allocation8], [#allocation9]
        $region20: #{_run_matting_kernel.1} parent=11 // pred_fallthru
          _
        // Predicated region
        $region21: #{_run_matting_kernel.1} parent=11 // pred_check
          %p361 = pneg %p135
        $region22: #{_run_matting_kernel.1} parent=11 // pred_check_branch
          %363 = sbr.rel (%p361) target = $region24
        $region23: #{_run_matting_kernel.1} parent=11 // pred_region
          %s365 = ssub.s32 16, 16
          %366 = vsyncadd [#allocation9], %s365
          %s368 = sshll.u32 %s3, 4
          %s369 = int_to_ptr.vmem [resolvable:$true] %s368
          %371 = dma.vmem_to_smem %s369, 16, [#allocation10], [#allocation9]
        $region24: #{_run_matting_kernel.1} parent=11 // pred_fallthru
          _
        // Predicated region
        $region25: #{_run_matting_kernel.1} parent=11 // pred_check
          %p372 = pneg %p156
        $region26: #{_run_matting_kernel.1} parent=11 // pred_check_branch
          %374 = sbr.rel (%p372) target = $region28
        $region27: #{_run_matting_kernel.1} parent=11 // pred_region
          %s376 = ssub.s32 16, 16
          %377 = vsyncadd [#allocation12], %s376
          %s379 = sshll.u32 %s4, 4
          %s380 = int_to_ptr.vmem [resolvable:$true] %s379
          %382 = dma.vmem_to_smem %s380, 16, [#allocation11], [#allocation12]
        $region28: #{_run_matting_kernel.1} parent=11 // pred_fallthru
          _
        // Predicated region
        $region29: #{_run_matting_kernel.1} parent=11 // pred_check
          %p383 = pneg %p177
        $region30: #{_run_matting_kernel.1} parent=11 // pred_check_branch
          %385 = sbr.rel (%p383) target = $region32
        $region31: #{_run_matting_kernel.1} parent=11 // pred_region
          %s387 = ssub.s32 16, 16
          %388 = vsyncadd [#allocation12], %s387
          %s390 = sshll.u32 %s5, 4
          %s391 = int_to_ptr.vmem [resolvable:$true] %s390
          %393 = dma.vmem_to_smem %s391, 16, [#allocation13], [#allocation12]
        $region32: #{_run_matting_kernel.1} parent=11 // pred_fallthru
          _
        // Predicated region
        $region33: #{_run_matting_kernel.1} parent=11 // pred_check
          %p394 = pneg %p198
        $region34: #{_run_matting_kernel.1} parent=11 // pred_check_branch
          %396 = sbr.rel (%p394) target = $region36
        $region35: #{_run_matting_kernel.1} parent=11 // pred_region
          %s398 = ssub.s32 16, 16
          %399 = vsyncadd [#allocation15], %s398
          %s401 = sshll.u32 %s6, 4
          %s402 = int_to_ptr.vmem [resolvable:$true] %s401
          %404 = dma.vmem_to_smem %s402, 16, [#allocation14], [#allocation15]
        $region36: #{_run_matting_kernel.1} parent=11 // pred_fallthru
          _
        // Predicated region
        $region37: #{_run_matting_kernel.1} parent=11 // pred_check
          %p405 = pneg %p219
        $region38: #{_run_matting_kernel.1} parent=11 // pred_check_branch
          %407 = sbr.rel (%p405) target = $region40
        $region39: #{_run_matting_kernel.1} parent=11 // pred_region
          %s409 = ssub.s32 16, 16
          %410 = vsyncadd [#allocation15], %s409
          %s412 = sshll.u32 %s7, 4
          %s413 = int_to_ptr.vmem [resolvable:$true] %s412
          %415 = dma.vmem_to_smem %s413, 16, [#allocation16], [#allocation15]
        $region40: #{_run_matting_kernel.1} parent=11 // pred_fallthru
          _
        // Predicated region
        $region41: #{_run_matting_kernel.1} parent=11 // pred_check
          %p416 = pneg %p240
        $region42: #{_run_matting_kernel.1} parent=11 // pred_check_branch
          %418 = sbr.rel (%p416) target = $region44
        $region43: #{_run_matting_kernel.1} parent=11 // pred_region
          %s420 = ssub.s32 16, 16
          %421 = vsyncadd [#allocation18], %s420
          %s423 = sshll.u32 %s8, 4
          %s424 = int_to_ptr.vmem [resolvable:$true] %s423
          %426 = dma.vmem_to_smem %s424, 16, [#allocation17], [#allocation18]
        $region44: #{_run_matting_kernel.1} parent=11 // pred_fallthru
          _
      $region12: #{_run_matting_kernel.1} parent=5 // pred_fallthru
        _
      %p427 = scmp.lt.s32.totalorder %s32, 4
      // Predicated region
      $region45: #{_run_matting_kernel.1} parent=5 // pred_check
        %p428 = pneg %p427
      $region46: #{_run_matting_kernel.1} parent=5 // pred_check_branch
        %430 = sbr.rel (%p428) target = $region48
      $region47: #{_run_matting_kernel.1} parent=5 // pred_region
        // Predicated region
        $region49: #{_run_matting_kernel.1} parent=47 // pred_check
          %p431 = pneg %p66
        $region50: #{_run_matting_kernel.1} parent=47 // pred_check_branch
          %433 = sbr.rel (%p431) target = $region52
        $region51: #{_run_matting_kernel.1} parent=47 // pred_region
          %s434 = sand.u32 %s56, 1
          %s435 = scalar_lea.sflag [#allocation4], %s434
          %s436 = sand.u32 %s56, 1
          %s437 = smul.addr %s436, 48
          %s438 = scalar_lea.vmem [#allocation3], %s437
          %s439 = smul.u32 2, %s39
          %s441 = ssub.s32 768, 768
          %442 = vsyncadd %s435, %s441
          %s443 = smul.addr %s40, 6
          %s444 = sadd.s32 %s439, %s443
          %s445 = smul.addr %s444, 128
          %s446 = scalar_lea.hbm %s0, %s445
          %s447 = sshll.u32 %s438, 4
          %s448 = int_to_ptr.vmem [resolvable:$true] %s447
          %453 = dma.hbm_to_vmem [thread:$0]  %s446, 768, %s448, %s435, 128, 128, 8
        $region52: #{_run_matting_kernel.1} parent=47 // pred_fallthru
          _
      $region48: #{_run_matting_kernel.1} parent=5 // pred_fallthru
        _
      %p454 = scmp.le.s32.totalorder 1, %s32
      %p455 = scmp.lt.s32.totalorder %s32, 5
      %p456 = pnand %p454, %p455
      %p457 = pneg %p456
      // Predicated region
      $region53: #{_run_matting_kernel.1} parent=5 // pred_check
        _
      $region54: #{_run_matting_kernel.1} parent=5 // pred_check_branch
        %459 = sbr.rel (%p456) target = $region56
      $region55: #{_run_matting_kernel.1} parent=5 // pred_region
        %s460 = ssub.s32 %s32, 1
        %s461 = sand.u32 %s59, 1
        %s462 = scalar_lea.sflag [#allocation4], %s461
        %s463 = sand.u32 %s59, 1
        %s464 = smul.addr %s463, 48
        %s465 = scalar_lea.vmem [#allocation3], %s464
        // Predicated region
        $region57: #{_run_matting_kernel.1} parent=55 // pred_check
          %p466 = pneg %p72
        $region58: #{_run_matting_kernel.1} parent=55 // pred_check_branch
          %468 = sbr.rel (%p466) target = $region60
        $region59: #{_run_matting_kernel.1} parent=55 // pred_region
          %469 = dma.done %s462, 768
        $region60: #{_run_matting_kernel.1} parent=55 // pred_fallthru
          _
        // Predicated region
        $region61: #{_run_matting_kernel.1} parent=55 // pred_check
          %p470 = pneg %p93
        $region62: #{_run_matting_kernel.1} parent=55 // pred_check_branch
          %472 = sbr.rel (%p470) target = $region64
        $region63: #{_run_matting_kernel.1} parent=55 // pred_region
          %473 = dma.done [#allocation6], 16
        $region64: #{_run_matting_kernel.1} parent=55 // pred_fallthru
          _
        // Predicated region
        $region65: #{_run_matting_kernel.1} parent=55 // pred_check
          %p474 = pneg %p114
        $region66: #{_run_matting_kernel.1} parent=55 // pred_check_branch
          %476 = sbr.rel (%p474) target = $region68
        $region67: #{_run_matting_kernel.1} parent=55 // pred_region
          %477 = dma.done [#allocation9], 16
        $region68: #{_run_matting_kernel.1} parent=55 // pred_fallthru
          _
        // Predicated region
        $region69: #{_run_matting_kernel.1} parent=55 // pred_check
          %p478 = pneg %p135
        $region70: #{_run_matting_kernel.1} parent=55 // pred_check_branch
          %480 = sbr.rel (%p478) target = $region72
        $region71: #{_run_matting_kernel.1} parent=55 // pred_region
          %481 = dma.done [#allocation9], 16
        $region72: #{_run_matting_kernel.1} parent=55 // pred_fallthru
          _
        // Predicated region
        $region73: #{_run_matting_kernel.1} parent=55 // pred_check
          %p482 = pneg %p156
        $region74: #{_run_matting_kernel.1} parent=55 // pred_check_branch
          %484 = sbr.rel (%p482) target = $region76
        $region75: #{_run_matting_kernel.1} parent=55 // pred_region
          %485 = dma.done [#allocation12], 16
        $region76: #{_run_matting_kernel.1} parent=55 // pred_fallthru
          _
        // Predicated region
        $region77: #{_run_matting_kernel.1} parent=55 // pred_check
          %p486 = pneg %p177
        $region78: #{_run_matting_kernel.1} parent=55 // pred_check_branch
          %488 = sbr.rel (%p486) target = $region80
        $region79: #{_run_matting_kernel.1} parent=55 // pred_region
          %489 = dma.done [#allocation12], 16
        $region80: #{_run_matting_kernel.1} parent=55 // pred_fallthru
          _
        // Predicated region
        $region81: #{_run_matting_kernel.1} parent=55 // pred_check
          %p490 = pneg %p198
        $region82: #{_run_matting_kernel.1} parent=55 // pred_check_branch
          %492 = sbr.rel (%p490) target = $region84
        $region83: #{_run_matting_kernel.1} parent=55 // pred_region
          %493 = dma.done [#allocation15], 16
        $region84: #{_run_matting_kernel.1} parent=55 // pred_fallthru
          _
        // Predicated region
        $region85: #{_run_matting_kernel.1} parent=55 // pred_check
          %p494 = pneg %p219
        $region86: #{_run_matting_kernel.1} parent=55 // pred_check_branch
          %496 = sbr.rel (%p494) target = $region88
        $region87: #{_run_matting_kernel.1} parent=55 // pred_region
          %497 = dma.done [#allocation15], 16
        $region88: #{_run_matting_kernel.1} parent=55 // pred_fallthru
          _
        // Predicated region
        $region89: #{_run_matting_kernel.1} parent=55 // pred_check
          %p498 = pneg %p240
        $region90: #{_run_matting_kernel.1} parent=55 // pred_check_branch
          %500 = sbr.rel (%p498) target = $region92
        $region91: #{_run_matting_kernel.1} parent=55 // pred_region
          %501 = dma.done [#allocation18], 16
        $region92: #{_run_matting_kernel.1} parent=55 // pred_fallthru
          _
        %502 = sfence
        %s503 = sand.u32 %s59, 1
        %s504 = scalar_lea.sflag [#allocation4], %s503
        %s505 = sand.u32 %s59, 1
        %s506 = smul.addr %s505, 48
        %s507 = scalar_lea.vmem [#allocation3], %s506
        %p508 = pneg %p72
        %p509 = pneg %p69
        %p510 = pneg %p93
        %p511 = pneg %p90
        %p512 = pneg %p114
        %p513 = pneg %p111
        %p514 = pneg %p135
        %p515 = pneg %p132
        %p516 = pneg %p156
        %p517 = pneg %p153
        %p518 = pneg %p177
        %p519 = pneg %p174
        %p520 = pneg %p198
        %p521 = pneg %p195
        %p522 = pneg %p219
        %p523 = pneg %p216
        %p524 = pneg %p240
        %p525 = pneg %p237
        %p526 = pneg %p268
        %p527 = pneg %p265
        %s528 = sand.u32 %s255, 1
        %s529 = scalar_lea.sflag [#allocation5], %s528
        %s530 = sand.u32 %s255, 1
        %s531 = smul.addr %s530, 24
        %s532 = scalar_lea.vmem [#allocation19], %s531
        %p533 = pneg %p296
        %p534 = pneg %p293
        %s535 = sand.u32 %s37, 1
        %s536 = scalar_lea.sflag [#allocation21], %s535
        %s537 = sand.u32 %s283, 1
        %s538 = smul.addr %s537, 8
        %s539 = scalar_lea.vmem [#allocation20], %s538
        %p540 = pneg %p324
        %p541 = pneg %p321
        %s542 = sand.u32 %s37, 1
        %s543 = scalar_lea.sflag [#allocation21], %s542
        %s544 = sand.u32 %s311, 1
        %s545 = smul.addr %s544, 32
        %s546 = scalar_lea.vmem [#allocation22], %s545
        %s547 = smul.u32 2, %s41
        %s548 = smul.u32 2, %s41
        %s549 = smul.u32 2, %s41
        %s550 = smul.u32 2, %s41
        %p551 = scmp.eq.s32.totalorder %s42, 0
        // Predicated region
        $region93: #{_run_matting_kernel.1} parent=55 // pred_check
          %p552 = pneg %p551
        $region94: #{_run_matting_kernel.1} parent=55 // pred_check_branch
          %554 = sbr.rel (%p552) target = $region96
        $region95: #{_run_matting_kernel.1} parent=55 // pred_region
          %555 = vst [vmem:[#allocation2] sm:$0xff] 0.0
          %556 = vst [vmem:[#allocation2 + $0x8] sm:$0xff] 0.0
          %557 = vst [vmem:[#allocation2 + $0x10] sm:$0xff] 0.0
          %558 = vst [vmem:[#allocation2 + $0x18] sm:$0xff] 0.0
          %559 = vst [vmem:[#allocation2 + $0x20] sm:$0xff] 0.0
          %560 = vst [vmem:[#allocation2 + $0x28] sm:$0xff] 0.0
          %561 = vst [vmem:[#allocation2 + $0x30] sm:$0xff] 0.0
          %562 = vst [vmem:[#allocation2 + $0x38] sm:$0xff] 0.0
          %563 = vst [vmem:[#allocation2 + $0x40] sm:$0xff] 0.0
          %564 = vst [vmem:[#allocation2 + $0x48] sm:$0xff] 0.0
          %565 = vst [vmem:[#allocation2 + $0x50] sm:$0xff] 0.0
          %566 = vst [vmem:[#allocation2 + $0x58] sm:$0xff] 0.0
          %567 = vst [vmem:[#allocation2 + $0x60] sm:$0xff] 0.0
          %568 = vst [vmem:[#allocation2 + $0x68] sm:$0xff] 0.0
          %569 = vst [vmem:[#allocation2 + $0x70] sm:$0xff] 0.0
          %570 = vst [vmem:[#allocation2 + $0x78] sm:$0xff] 0.0
        $region96: #{_run_matting_kernel.1} parent=55 // pred_fallthru
          _
        %s571 = sld [smem:[#allocation7]]
        %s572 = sld [smem:[#allocation7 + $0x1]]
        %s573 = sld [smem:[#allocation7 + $0x2]]
        %s574 = sld [smem:[#allocation7 + $0x3]]
        %s575 = sld [smem:[#allocation7 + $0x4]]
        %s576 = sld [smem:[#allocation7 + $0x5]]
        %s577 = sld [smem:[#allocation7 + $0x6]]
        %s578 = sld [smem:[#allocation7 + $0x7]]
        %s579 = sld [smem:[#allocation7 + $0x8]]
        %s580 = sld [smem:[#allocation7 + $0x9]]
        %s581 = sld [smem:[#allocation7 + $0xa]]
        %s582 = sld [smem:[#allocation7 + $0xb]]
        %s583 = sld [smem:[#allocation7 + $0xc]]
        %s584 = sld [smem:[#allocation7 + $0xd]]
        %s585 = sld [smem:[#allocation7 + $0xe]]
        %s586 = sld [smem:[#allocation7 + $0xf]]
        %s587 = sld [smem:[#allocation7 + $0x10]]
        %s588 = sld [smem:[#allocation7 + $0x11]]
        %s589 = sld [smem:[#allocation7 + $0x12]]
        %s590 = sld [smem:[#allocation7 + $0x13]]
        %s591 = sld [smem:[#allocation7 + $0x14]]
        %s592 = sld [smem:[#allocation7 + $0x15]]
        %s593 = sld [smem:[#allocation7 + $0x16]]
        %s594 = sld [smem:[#allocation7 + $0x17]]
        %s595 = sld [smem:[#allocation8]]
        %s596 = sld [smem:[#allocation8 + $0x1]]
        %s597 = sld [smem:[#allocation8 + $0x2]]
        %s598 = sld [smem:[#allocation8 + $0x3]]
        %s599 = sld [smem:[#allocation8 + $0x4]]
        %s600 = sld [smem:[#allocation8 + $0x5]]
        %s601 = sld [smem:[#allocation8 + $0x6]]
        %s602 = sld [smem:[#allocation8 + $0x7]]
        %s603 = sld [smem:[#allocation10]]
        %s604 = sld [smem:[#allocation10 + $0x1]]
        %s605 = sld [smem:[#allocation10 + $0x2]]
        %s606 = sld [smem:[#allocation10 + $0x3]]
        %s607 = sld [smem:[#allocation10 + $0x4]]
        %s608 = sld [smem:[#allocation10 + $0x5]]
        %s609 = sld [smem:[#allocation10 + $0x6]]
        %s610 = sld [smem:[#allocation10 + $0x7]]
        %s611 = sld [smem:[#allocation10 + $0x8]]
        %s612 = sld [smem:[#allocation10 + $0x9]]
        %s613 = sld [smem:[#allocation10 + $0xa]]
        %s614 = sld [smem:[#allocation10 + $0xb]]
        %s615 = sld [smem:[#allocation10 + $0xc]]
        %s616 = sld [smem:[#allocation10 + $0xd]]
        %s617 = sld [smem:[#allocation10 + $0xe]]
        %s618 = sld [smem:[#allocation10 + $0xf]]
        %s619 = sld [smem:[#allocation10 + $0x10]]
        %s620 = sld [smem:[#allocation10 + $0x11]]
        %s621 = sld [smem:[#allocation10 + $0x12]]
        %s622 = sld [smem:[#allocation10 + $0x13]]
        %s623 = sld [smem:[#allocation10 + $0x14]]
        %s624 = sld [smem:[#allocation10 + $0x15]]
        %s625 = sld [smem:[#allocation10 + $0x16]]
        %s626 = sld [smem:[#allocation10 + $0x17]]
        %s627 = sld [smem:[#allocation10 + $0x18]]
        %s628 = sld [smem:[#allocation10 + $0x19]]
        %s629 = sld [smem:[#allocation10 + $0x1a]]
        %s630 = sld [smem:[#allocation10 + $0x1b]]
        %s631 = sld [smem:[#allocation10 + $0x1c]]
        %s632 = sld [smem:[#allocation10 + $0x1d]]
        %s633 = sld [smem:[#allocation10 + $0x1e]]
        %s634 = sld [smem:[#allocation10 + $0x1f]]
        %s635 = sld [smem:[#allocation10 + $0x20]]
        %s636 = sld [smem:[#allocation10 + $0x21]]
        %s637 = sld [smem:[#allocation10 + $0x22]]
        %s638 = sld [smem:[#allocation10 + $0x23]]
        %s639 = sld [smem:[#allocation10 + $0x24]]
        %s640 = sld [smem:[#allocation10 + $0x25]]
        %s641 = sld [smem:[#allocation10 + $0x26]]
        %s642 = sld [smem:[#allocation10 + $0x27]]
        %s643 = sld [smem:[#allocation10 + $0x28]]
        %s644 = sld [smem:[#allocation10 + $0x29]]
        %s645 = sld [smem:[#allocation10 + $0x2a]]
        %s646 = sld [smem:[#allocation10 + $0x2b]]
        %s647 = sld [smem:[#allocation10 + $0x2c]]
        %s648 = sld [smem:[#allocation10 + $0x2d]]
        %s649 = sld [smem:[#allocation10 + $0x2e]]
        %s650 = sld [smem:[#allocation10 + $0x2f]]
        %s651 = sld [smem:[#allocation10 + $0x30]]
        %s652 = sld [smem:[#allocation10 + $0x31]]
        %s653 = sld [smem:[#allocation10 + $0x32]]
        %s654 = sld [smem:[#allocation10 + $0x33]]
        %s655 = sld [smem:[#allocation10 + $0x34]]
        %s656 = sld [smem:[#allocation10 + $0x35]]
        %s657 = sld [smem:[#allocation10 + $0x36]]
        %s658 = sld [smem:[#allocation10 + $0x37]]
        %s659 = sld [smem:[#allocation10 + $0x38]]
        %s660 = sld [smem:[#allocation10 + $0x39]]
        %s661 = sld [smem:[#allocation10 + $0x3a]]
        %s662 = sld [smem:[#allocation10 + $0x3b]]
        %s663 = sld [smem:[#allocation10 + $0x3c]]
        %s664 = sld [smem:[#allocation10 + $0x3d]]
        %s665 = sld [smem:[#allocation10 + $0x3e]]
        %s666 = sld [smem:[#allocation10 + $0x3f]]
        %s667 = sld [smem:[#allocation10 + $0x40]]
        %s668 = sld [smem:[#allocation10 + $0x41]]
        %s669 = sld [smem:[#allocation10 + $0x42]]
        %s670 = sld [smem:[#allocation10 + $0x43]]
        %s671 = sld [smem:[#allocation10 + $0x44]]
        %s672 = sld [smem:[#allocation10 + $0x45]]
        %s673 = sld [smem:[#allocation10 + $0x46]]
        %s674 = sld [smem:[#allocation10 + $0x47]]
        %s675 = sld [smem:[#allocation10 + $0x48]]
        %s676 = sld [smem:[#allocation10 + $0x49]]
        %s677 = sld [smem:[#allocation10 + $0x4a]]
        %s678 = sld [smem:[#allocation10 + $0x4b]]
        %s679 = sld [smem:[#allocation10 + $0x4c]]
        %s680 = sld [smem:[#allocation10 + $0x4d]]
        %s681 = sld [smem:[#allocation10 + $0x4e]]
        %s682 = sld [smem:[#allocation10 + $0x4f]]
        %s683 = sld [smem:[#allocation10 + $0x50]]
        %s684 = sld [smem:[#allocation10 + $0x51]]
        %s685 = sld [smem:[#allocation10 + $0x52]]
        %s686 = sld [smem:[#allocation10 + $0x53]]
        %s687 = sld [smem:[#allocation10 + $0x54]]
        %s688 = sld [smem:[#allocation10 + $0x55]]
        %s689 = sld [smem:[#allocation10 + $0x56]]
        %s690 = sld [smem:[#allocation10 + $0x57]]
        %s691 = sld [smem:[#allocation10 + $0x58]]
        %s692 = sld [smem:[#allocation10 + $0x59]]
        %s693 = sld [smem:[#allocation10 + $0x5a]]
        %s694 = sld [smem:[#allocation10 + $0x5b]]
        %s695 = sld [smem:[#allocation10 + $0x5c]]
        %s696 = sld [smem:[#allocation10 + $0x5d]]
        %s697 = sld [smem:[#allocation10 + $0x5e]]
        %s698 = sld [smem:[#allocation10 + $0x5f]]
        %s699 = sld [smem:[#allocation10 + $0x60]]
        %s700 = sld [smem:[#allocation10 + $0x61]]
        %s701 = sld [smem:[#allocation10 + $0x62]]
        %s702 = sld [smem:[#allocation10 + $0x63]]
        %s703 = sld [smem:[#allocation10 + $0x64]]
        %s704 = sld [smem:[#allocation10 + $0x65]]
        %s705 = sld [smem:[#allocation10 + $0x66]]
        %s706 = sld [smem:[#allocation10 + $0x67]]
        %s707 = sld [smem:[#allocation10 + $0x68]]
        %s708 = sld [smem:[#allocation10 + $0x69]]
        %s709 = sld [smem:[#allocation10 + $0x6a]]
        %s710 = sld [smem:[#allocation10 + $0x6b]]
        %s711 = sld [smem:[#allocation10 + $0x6c]]
        %s712 = sld [smem:[#allocation10 + $0x6d]]
        %s713 = sld [smem:[#allocation10 + $0x6e]]
        %s714 = sld [smem:[#allocation10 + $0x6f]]
        %s715 = sld [smem:[#allocation10 + $0x70]]
        %s716 = sld [smem:[#allocation10 + $0x71]]
        %s717 = sld [smem:[#allocation10 + $0x72]]
        %s718 = sld [smem:[#allocation10 + $0x73]]
        %s719 = sld [smem:[#allocation10 + $0x74]]
        %s720 = sld [smem:[#allocation10 + $0x75]]
        %s721 = sld [smem:[#allocation10 + $0x76]]
        %s722 = sld [smem:[#allocation10 + $0x77]]
        %s723 = sld [smem:[#allocation10 + $0x78]]
        %s724 = sld [smem:[#allocation10 + $0x79]]
        %s725 = sld [smem:[#allocation10 + $0x7a]]
        %s726 = sld [smem:[#allocation10 + $0x7b]]
        %s727 = sld [smem:[#allocation10 + $0x7c]]
        %s728 = sld [smem:[#allocation10 + $0x7d]]
        %s729 = sld [smem:[#allocation10 + $0x7e]]
        %s730 = sld [smem:[#allocation10 + $0x7f]]
        %s731 = sld [smem:[#allocation11]]
        %s732 = sld [smem:[#allocation11 + $0x1]]
        %s733 = sld [smem:[#allocation11 + $0x2]]
        %s734 = sld [smem:[#allocation11 + $0x3]]
        %s735 = sld [smem:[#allocation11 + $0x4]]
        %s736 = sld [smem:[#allocation11 + $0x5]]
        %s737 = sld [smem:[#allocation11 + $0x6]]
        %s738 = sld [smem:[#allocation11 + $0x7]]
        %s739 = sld [smem:[#allocation11 + $0x8]]
        %s740 = sld [smem:[#allocation11 + $0x9]]
        %s741 = sld [smem:[#allocation11 + $0xa]]
        %s742 = sld [smem:[#allocation11 + $0xb]]
        %s743 = sld [smem:[#allocation11 + $0xc]]
        %s744 = sld [smem:[#allocation11 + $0xd]]
        %s745 = sld [smem:[#allocation11 + $0xe]]
        %s746 = sld [smem:[#allocation11 + $0xf]]
        %s747 = sld [smem:[#allocation11 + $0x10]]
        %s748 = sld [smem:[#allocation11 + $0x11]]
        %s749 = sld [smem:[#allocation11 + $0x12]]
        %s750 = sld [smem:[#allocation11 + $0x13]]
        %s751 = sld [smem:[#allocation11 + $0x14]]
        %s752 = sld [smem:[#allocation11 + $0x15]]
        %s753 = sld [smem:[#allocation11 + $0x16]]
        %s754 = sld [smem:[#allocation11 + $0x17]]
        %s755 = sld [smem:[#allocation11 + $0x18]]
        %s756 = sld [smem:[#allocation11 + $0x19]]
        %s757 = sld [smem:[#allocation11 + $0x1a]]
        %s758 = sld [smem:[#allocation11 + $0x1b]]
        %s759 = sld [smem:[#allocation11 + $0x1c]]
        %s760 = sld [smem:[#allocation11 + $0x1d]]
        %s761 = sld [smem:[#allocation11 + $0x1e]]
        %s762 = sld [smem:[#allocation11 + $0x1f]]
        %s763 = sld [smem:[#allocation11 + $0x20]]
        %s764 = sld [smem:[#allocation11 + $0x21]]
        %s765 = sld [smem:[#allocation11 + $0x22]]
        %s766 = sld [smem:[#allocation11 + $0x23]]
        %s767 = sld [smem:[#allocation11 + $0x24]]
        %s768 = sld [smem:[#allocation11 + $0x25]]
        %s769 = sld [smem:[#allocation11 + $0x26]]
        %s770 = sld [smem:[#allocation11 + $0x27]]
        %s771 = sld [smem:[#allocation11 + $0x28]]
        %s772 = sld [smem:[#allocation11 + $0x29]]
        %s773 = sld [smem:[#allocation11 + $0x2a]]
        %s774 = sld [smem:[#allocation11 + $0x2b]]
        %s775 = sld [smem:[#allocation11 + $0x2c]]
        %s776 = sld [smem:[#allocation11 + $0x2d]]
        %s777 = sld [smem:[#allocation11 + $0x2e]]
        %s778 = sld [smem:[#allocation11 + $0x2f]]
        %s779 = sld [smem:[#allocation11 + $0x30]]
        %s780 = sld [smem:[#allocation11 + $0x31]]
        %s781 = sld [smem:[#allocation11 + $0x32]]
        %s782 = sld [smem:[#allocation11 + $0x33]]
        %s783 = sld [smem:[#allocation11 + $0x34]]
        %s784 = sld [smem:[#allocation11 + $0x35]]
        %s785 = sld [smem:[#allocation11 + $0x36]]
        %s786 = sld [smem:[#allocation11 + $0x37]]
        %s787 = sld [smem:[#allocation11 + $0x38]]
        %s788 = sld [smem:[#allocation11 + $0x39]]
        %s789 = sld [smem:[#allocation11 + $0x3a]]
        %s790 = sld [smem:[#allocation11 + $0x3b]]
        %s791 = sld [smem:[#allocation11 + $0x3c]]
        %s792 = sld [smem:[#allocation11 + $0x3d]]
        %s793 = sld [smem:[#allocation11 + $0x3e]]
        %s794 = sld [smem:[#allocation11 + $0x3f]]
        %s795 = sld [smem:[#allocation11 + $0x40]]
        %s796 = sld [smem:[#allocation11 + $0x41]]
        %s797 = sld [smem:[#allocation11 + $0x42]]
        %s798 = sld [smem:[#allocation11 + $0x43]]
        %s799 = sld [smem:[#allocation11 + $0x44]]
        %s800 = sld [smem:[#allocation11 + $0x45]]
        %s801 = sld [smem:[#allocation11 + $0x46]]
        %s802 = sld [smem:[#allocation11 + $0x47]]
        %s803 = sld [smem:[#allocation11 + $0x48]]
        %s804 = sld [smem:[#allocation11 + $0x49]]
        %s805 = sld [smem:[#allocation11 + $0x4a]]
        %s806 = sld [smem:[#allocation11 + $0x4b]]
        %s807 = sld [smem:[#allocation11 + $0x4c]]
        %s808 = sld [smem:[#allocation11 + $0x4d]]
        %s809 = sld [smem:[#allocation11 + $0x4e]]
        %s810 = sld [smem:[#allocation11 + $0x4f]]
        %s811 = sld [smem:[#allocation11 + $0x50]]
        %s812 = sld [smem:[#allocation11 + $0x51]]
        %s813 = sld [smem:[#allocation11 + $0x52]]
        %s814 = sld [smem:[#allocation11 + $0x53]]
        %s815 = sld [smem:[#allocation11 + $0x54]]
        %s816 = sld [smem:[#allocation11 + $0x55]]
        %s817 = sld [smem:[#allocation11 + $0x56]]
        %s818 = sld [smem:[#allocation11 + $0x57]]
        %s819 = sld [smem:[#allocation11 + $0x58]]
        %s820 = sld [smem:[#allocation11 + $0x59]]
        %s821 = sld [smem:[#allocation11 + $0x5a]]
        %s822 = sld [smem:[#allocation11 + $0x5b]]
        %s823 = sld [smem:[#allocation11 + $0x5c]]
        %s824 = sld [smem:[#allocation11 + $0x5d]]
        %s825 = sld [smem:[#allocation11 + $0x5e]]
        %s826 = sld [smem:[#allocation11 + $0x5f]]
        %s827 = sld [smem:[#allocation11 + $0x60]]
        %s828 = sld [smem:[#allocation11 + $0x61]]
        %s829 = sld [smem:[#allocation11 + $0x62]]
        %s830 = sld [smem:[#allocation11 + $0x63]]
        %s831 = sld [smem:[#allocation11 + $0x64]]
        %s832 = sld [smem:[#allocation11 + $0x65]]
        %s833 = sld [smem:[#allocation11 + $0x66]]
        %s834 = sld [smem:[#allocation11 + $0x67]]
        %s835 = sld [smem:[#allocation11 + $0x68]]
        %s836 = sld [smem:[#allocation11 + $0x69]]
        %s837 = sld [smem:[#allocation11 + $0x6a]]
        %s838 = sld [smem:[#allocation11 + $0x6b]]
        %s839 = sld [smem:[#allocation11 + $0x6c]]
        %s840 = sld [smem:[#allocation11 + $0x6d]]
        %s841 = sld [smem:[#allocation11 + $0x6e]]
        %s842 = sld [smem:[#allocation11 + $0x6f]]
        %s843 = sld [smem:[#allocation11 + $0x70]]
        %s844 = sld [smem:[#allocation11 + $0x71]]
        %s845 = sld [smem:[#allocation11 + $0x72]]
        %s846 = sld [smem:[#allocation11 + $0x73]]
        %s847 = sld [smem:[#allocation11 + $0x74]]
        %s848 = sld [smem:[#allocation11 + $0x75]]
        %s849 = sld [smem:[#allocation11 + $0x76]]
        %s850 = sld [smem:[#allocation11 + $0x77]]
        %s851 = sld [smem:[#allocation11 + $0x78]]
        %s852 = sld [smem:[#allocation11 + $0x79]]
        %s853 = sld [smem:[#allocation11 + $0x7a]]
        %s854 = sld [smem:[#allocation11 + $0x7b]]
        %s855 = sld [smem:[#allocation11 + $0x7c]]
        %s856 = sld [smem:[#allocation11 + $0x7d]]
        %s857 = sld [smem:[#allocation11 + $0x7e]]
        %s858 = sld [smem:[#allocation11 + $0x7f]]
        %s859 = sld [smem:[#allocation13]]
        %s860 = sld [smem:[#allocation13 + $0x1]]
        %s861 = sld [smem:[#allocation13 + $0x2]]
        %s862 = sld [smem:[#allocation13 + $0x3]]
        %s863 = sld [smem:[#allocation13 + $0x4]]
        %s864 = sld [smem:[#allocation13 + $0x5]]
        %s865 = sld [smem:[#allocation13 + $0x6]]
        %s866 = sld [smem:[#allocation13 + $0x7]]
        %s867 = sld [smem:[#allocation13 + $0x8]]
        %s868 = sld [smem:[#allocation13 + $0x9]]
        %s869 = sld [smem:[#allocation13 + $0xa]]
        %s870 = sld [smem:[#allocation13 + $0xb]]
        %s871 = sld [smem:[#allocation13 + $0xc]]
        %s872 = sld [smem:[#allocation13 + $0xd]]
        %s873 = sld [smem:[#allocation13 + $0xe]]
        %s874 = sld [smem:[#allocation13 + $0xf]]
        %s875 = sld [smem:[#allocation14]]
        %s876 = sld [smem:[#allocation14 + $0x1]]
        %s877 = sld [smem:[#allocation14 + $0x2]]
        %s878 = sld [smem:[#allocation14 + $0x3]]
        %s879 = sld [smem:[#allocation14 + $0x4]]
        %s880 = sld [smem:[#allocation14 + $0x5]]
        %s881 = sld [smem:[#allocation14 + $0x6]]
        %s882 = sld [smem:[#allocation14 + $0x7]]
        %s883 = sld [smem:[#allocation14 + $0x8]]
        %s884 = sld [smem:[#allocation14 + $0x9]]
        %s885 = sld [smem:[#allocation14 + $0xa]]
        %s886 = sld [smem:[#allocation14 + $0xb]]
        %s887 = sld [smem:[#allocation14 + $0xc]]
        %s888 = sld [smem:[#allocation14 + $0xd]]
        %s889 = sld [smem:[#allocation14 + $0xe]]
        %s890 = sld [smem:[#allocation14 + $0xf]]
        %s891 = sld [smem:[#allocation14 + $0x10]]
        %s892 = sld [smem:[#allocation14 + $0x11]]
        %s893 = sld [smem:[#allocation14 + $0x12]]
        %s894 = sld [smem:[#allocation14 + $0x13]]
        %s895 = sld [smem:[#allocation14 + $0x14]]
        %s896 = sld [smem:[#allocation14 + $0x15]]
        %s897 = sld [smem:[#allocation14 + $0x16]]
        %s898 = sld [smem:[#allocation14 + $0x17]]
        %s899 = sld [smem:[#allocation14 + $0x18]]
        %s900 = sld [smem:[#allocation14 + $0x19]]
        %s901 = sld [smem:[#allocation14 + $0x1a]]
        %s902 = sld [smem:[#allocation14 + $0x1b]]
        %s903 = sld [smem:[#allocation14 + $0x1c]]
        %s904 = sld [smem:[#allocation14 + $0x1d]]
        %s905 = sld [smem:[#allocation14 + $0x1e]]
        %s906 = sld [smem:[#allocation14 + $0x1f]]
        %s907 = sld [smem:[#allocation16]]
        %s908 = sld [smem:[#allocation16 + $0x1]]
        %s909 = sld [smem:[#allocation16 + $0x2]]
        %s910 = sld [smem:[#allocation16 + $0x3]]
        %v911 = vld [vmem:[%s465] sm:$0xff]
        %v912 = vld [vmem:[%s465 + $0x8] sm:$0xff]
        %s913 = sadd.s32 0, 16
        %s914 = scalar_lea.vmem %s465, %s913 [#allocation3]
        %v915 = vld [vmem:[%s914] sm:$0xff]
        %v916 = vld [vmem:[%s914 + $0x8] sm:$0xff]
        %s917 = sadd.s32 0, 32
        %s918 = scalar_lea.vmem %s465, %s917 [#allocation3]
        %v919 = vld [vmem:[%s918] sm:$0xff]
        %v920 = vld [vmem:[%s918 + $0x8] sm:$0xff]
        %v921 = vld [vmem:[#allocation2] sm:$0xff]
        %v922 = vld [vmem:[#allocation2 + $0x8] sm:$0xff]
        %s923 = scalar_lea.vmem [#allocation2], %s913
        %v924 = vld [vmem:[%s923] sm:$0xff]
        %v925 = vld [vmem:[%s923 + $0x8] sm:$0xff]
        %s926 = scalar_lea.vmem [#allocation2], %s917
        %v927 = vld [vmem:[%s926] sm:$0xff]
        %v928 = vld [vmem:[%s926 + $0x8] sm:$0xff]
        %s929 = sadd.s32 0, 48
        %s930 = scalar_lea.vmem [#allocation2], %s929
        %v931 = vld [vmem:[%s930] sm:$0xff]
        %v932 = vld [vmem:[%s930 + $0x8] sm:$0xff]
        %s933 = sadd.s32 0, 64
        %s934 = scalar_lea.vmem [#allocation2], %s933
        %v935 = vld [vmem:[%s934] sm:$0xff]
        %v936 = vld [vmem:[%s934 + $0x8] sm:$0xff]
        %s937 = sadd.s32 0, 80
        %s938 = scalar_lea.vmem [#allocation2], %s937
        %v939 = vld [vmem:[%s938] sm:$0xff]
        %v940 = vld [vmem:[%s938 + $0x8] sm:$0xff]
        %s941 = sadd.s32 0, 96
        %s942 = scalar_lea.vmem [#allocation2], %s941
        %v943 = vld [vmem:[%s942] sm:$0xff]
        %v944 = vld [vmem:[%s942 + $0x8] sm:$0xff]
        %s945 = sadd.s32 0, 112
        %s946 = scalar_lea.vmem [#allocation2], %s945
        %v947 = vld [vmem:[%s946] sm:$0xff]
        %v948 = vld [vmem:[%s946 + $0x8] sm:$0xff]
        %v949 = vstv %s571
        %v950 = vmul.f32 %v949, %v911
        %v951 = vmul.f32 %v949, %v912
        %v952 = vstv %s572
        %v953 = vmul.f32 %v952, %v915
        %v954 = vmul.f32 %v952, %v916
        %v955 = vadd.f32 %v950, %v953
        %v956 = vadd.f32 %v951, %v954
        %v957 = vstv %s573
        %v958 = vmul.f32 %v957, %v919
        %v959 = vmul.f32 %v957, %v920
        %v960 = vadd.f32 %v955, %v958
        %v961 = vadd.f32 %v956, %v959
        %v962 = vstv %s595
        %v963 = vadd.f32 %v960, %v962
        %v964 = vadd.f32 %v961, %v962
        %v965 = vmax.f32 %v963, 0.0
        %v966 = vmax.f32 %v964, 0.0
        %v967 = vstv %s574
        %v968 = vmul.f32 %v967, %v911
        %v969 = vmul.f32 %v967, %v912
        %v970 = vstv %s575
        %v971 = vmul.f32 %v970, %v915
        %v972 = vmul.f32 %v970, %v916
        %v973 = vadd.f32 %v968, %v971
        %v974 = vadd.f32 %v969, %v972
        %v975 = vstv %s576
        %v976 = vmul.f32 %v975, %v919
        %v977 = vmul.f32 %v975, %v920
        %v978 = vadd.f32 %v973, %v976
        %v979 = vadd.f32 %v974, %v977
        %v980 = vstv %s596
        %v981 = vadd.f32 %v978, %v980
        %v982 = vadd.f32 %v979, %v980
        %v983 = vmax.f32 %v981, 0.0
        %v984 = vmax.f32 %v982, 0.0
        %v985 = vstv %s577
        %v986 = vmul.f32 %v985, %v911
        %v987 = vmul.f32 %v985, %v912
        %v988 = vstv %s578
        %v989 = vmul.f32 %v988, %v915
        %v990 = vmul.f32 %v988, %v916
        %v991 = vadd.f32 %v986, %v989
        %v992 = vadd.f32 %v987, %v990
        %v993 = vstv %s579
        %v994 = vmul.f32 %v993, %v919
        %v995 = vmul.f32 %v993, %v920
        %v996 = vadd.f32 %v991, %v994
        %v997 = vadd.f32 %v992, %v995
        %v998 = vstv %s597
        %v999 = vadd.f32 %v996, %v998
        %v1000 = vadd.f32 %v997, %v998
        %v1001 = vmax.f32 %v999, 0.0
        %v1002 = vmax.f32 %v1000, 0.0
        %v1003 = vstv %s580
        %v1004 = vmul.f32 %v1003, %v911
        %v1005 = vmul.f32 %v1003, %v912
        %v1006 = vstv %s581
        %v1007 = vmul.f32 %v1006, %v915
        %v1008 = vmul.f32 %v1006, %v916
        %v1009 = vadd.f32 %v1004, %v1007
        %v1010 = vadd.f32 %v1005, %v1008
        %v1011 = vstv %s582
        %v1012 = vmul.f32 %v1011, %v919
        %v1013 = vmul.f32 %v1011, %v920
        %v1014 = vadd.f32 %v1009, %v1012
        %v1015 = vadd.f32 %v1010, %v1013
        %v1016 = vstv %s598
        %v1017 = vadd.f32 %v1014, %v1016
        %v1018 = vadd.f32 %v1015, %v1016
        %v1019 = vmax.f32 %v1017, 0.0
        %v1020 = vmax.f32 %v1018, 0.0
        %v1021 = vstv %s583
        %v1022 = vmul.f32 %v1021, %v911
        %v1023 = vmul.f32 %v1021, %v912
        %v1024 = vstv %s584
        %v1025 = vmul.f32 %v1024, %v915
        %v1026 = vmul.f32 %v1024, %v916
        %v1027 = vadd.f32 %v1022, %v1025
        %v1028 = vadd.f32 %v1023, %v1026
        %v1029 = vstv %s585
        %v1030 = vmul.f32 %v1029, %v919
        %v1031 = vmul.f32 %v1029, %v920
        %v1032 = vadd.f32 %v1027, %v1030
        %v1033 = vadd.f32 %v1028, %v1031
        %v1034 = vstv %s599
        %v1035 = vadd.f32 %v1032, %v1034
        %v1036 = vadd.f32 %v1033, %v1034
        %v1037 = vmax.f32 %v1035, 0.0
        %v1038 = vmax.f32 %v1036, 0.0
        %v1039 = vstv %s586
        %v1040 = vmul.f32 %v1039, %v911
        %v1041 = vmul.f32 %v1039, %v912
        %v1042 = vstv %s587
        %v1043 = vmul.f32 %v1042, %v915
        %v1044 = vmul.f32 %v1042, %v916
        %v1045 = vadd.f32 %v1040, %v1043
        %v1046 = vadd.f32 %v1041, %v1044
        %v1047 = vstv %s588
        %v1048 = vmul.f32 %v1047, %v919
        %v1049 = vmul.f32 %v1047, %v920
        %v1050 = vadd.f32 %v1045, %v1048
        %v1051 = vadd.f32 %v1046, %v1049
        %v1052 = vstv %s600
        %v1053 = vadd.f32 %v1050, %v1052
        %v1054 = vadd.f32 %v1051, %v1052
        %v1055 = vmax.f32 %v1053, 0.0
        %v1056 = vmax.f32 %v1054, 0.0
        %v1057 = vstv %s589
        %v1058 = vmul.f32 %v1057, %v911
        %v1059 = vmul.f32 %v1057, %v912
        %v1060 = vstv %s590
        %v1061 = vmul.f32 %v1060, %v915
        %v1062 = vmul.f32 %v1060, %v916
        %v1063 = vadd.f32 %v1058, %v1061
        %v1064 = vadd.f32 %v1059, %v1062
        %v1065 = vstv %s591
        %v1066 = vmul.f32 %v1065, %v919
        %v1067 = vmul.f32 %v1065, %v920
        %v1068 = vadd.f32 %v1063, %v1066
        %v1069 = vadd.f32 %v1064, %v1067
        %v1070 = vstv %s601
        %v1071 = vadd.f32 %v1068, %v1070
        %v1072 = vadd.f32 %v1069, %v1070
        %v1073 = vmax.f32 %v1071, 0.0
        %v1074 = vmax.f32 %v1072, 0.0
        %v1075 = vstv %s592
        %v1076 = vmul.f32 %v1075, %v911
        %v1077 = vmul.f32 %v1075, %v912
        %v1078 = vstv %s593
        %v1079 = vmul.f32 %v1078, %v915
        %v1080 = vmul.f32 %v1078, %v916
        %v1081 = vadd.f32 %v1076, %v1079
        %v1082 = vadd.f32 %v1077, %v1080
        %v1083 = vstv %s594
        %v1084 = vmul.f32 %v1083, %v919
        %v1085 = vmul.f32 %v1083, %v920
        %v1086 = vadd.f32 %v1081, %v1084
        %v1087 = vadd.f32 %v1082, %v1085
        %v1088 = vstv %s602
        %v1089 = vadd.f32 %v1086, %v1088
        %v1090 = vadd.f32 %v1087, %v1088
        %v1091 = vmax.f32 %v1089, 0.0
        %v1092 = vmax.f32 %v1090, 0.0
        %v1093 = vstv %s603
        %v1094 = vmul.f32 %v1093, %v965
        %v1095 = vmul.f32 %v1093, %v966
        %v1096 = vstv %s604
        %v1097 = vmul.f32 %v1096, %v983
        %v1098 = vmul.f32 %v1096, %v984
        %v1099 = vadd.f32 %v1094, %v1097
        %v1100 = vadd.f32 %v1095, %v1098
        %v1101 = vstv %s605
        %v1102 = vmul.f32 %v1101, %v1001
        %v1103 = vmul.f32 %v1101, %v1002
        %v1104 = vadd.f32 %v1099, %v1102
        %v1105 = vadd.f32 %v1100, %v1103
        %v1106 = vstv %s606
        %v1107 = vmul.f32 %v1106, %v1019
        %v1108 = vmul.f32 %v1106, %v1020
        %v1109 = vadd.f32 %v1104, %v1107
        %v1110 = vadd.f32 %v1105, %v1108
        %v1111 = vstv %s607
        %v1112 = vmul.f32 %v1111, %v1037
        %v1113 = vmul.f32 %v1111, %v1038
        %v1114 = vadd.f32 %v1109, %v1112
        %v1115 = vadd.f32 %v1110, %v1113
        %v1116 = vstv %s608
        %v1117 = vmul.f32 %v1116, %v1055
        %v1118 = vmul.f32 %v1116, %v1056
        %v1119 = vadd.f32 %v1114, %v1117
        %v1120 = vadd.f32 %v1115, %v1118
        %v1121 = vstv %s609
        %v1122 = vmul.f32 %v1121, %v1073
        %v1123 = vmul.f32 %v1121, %v1074
        %v1124 = vadd.f32 %v1119, %v1122
        %v1125 = vadd.f32 %v1120, %v1123
        %v1126 = vstv %s610
        %v1127 = vmul.f32 %v1126, %v1091
        %v1128 = vmul.f32 %v1126, %v1092
        %v1129 = vadd.f32 %v1124, %v1127
        %v1130 = vadd.f32 %v1125, %v1128
        %v1131 = vstv %s731
        %v1132 = vmul.f32 %v1131, %v921
        %v1133 = vmul.f32 %v1131, %v922
        %v1134 = vadd.f32 %v1129, %v1132
        %v1135 = vadd.f32 %v1130, %v1133
        %v1136 = vstv %s732
        %v1137 = vmul.f32 %v1136, %v924
        %v1138 = vmul.f32 %v1136, %v925
        %v1139 = vadd.f32 %v1134, %v1137
        %v1140 = vadd.f32 %v1135, %v1138
        %v1141 = vstv %s733
        %v1142 = vmul.f32 %v1141, %v927
        %v1143 = vmul.f32 %v1141, %v928
        %v1144 = vadd.f32 %v1139, %v1142
        %v1145 = vadd.f32 %v1140, %v1143
        %v1146 = vstv %s734
        %v1147 = vmul.f32 %v1146, %v931
        %v1148 = vmul.f32 %v1146, %v932
        %v1149 = vadd.f32 %v1144, %v1147
        %v1150 = vadd.f32 %v1145, %v1148
        %v1151 = vstv %s735
        %v1152 = vmul.f32 %v1151, %v935
        %v1153 = vmul.f32 %v1151, %v936
        %v1154 = vadd.f32 %v1149, %v1152
        %v1155 = vadd.f32 %v1150, %v1153
        %v1156 = vstv %s736
        %v1157 = vmul.f32 %v1156, %v939
        %v1158 = vmul.f32 %v1156, %v940
        %v1159 = vadd.f32 %v1154, %v1157
        %v1160 = vadd.f32 %v1155, %v1158
        %v1161 = vstv %s737
        %v1162 = vmul.f32 %v1161, %v943
        %v1163 = vmul.f32 %v1161, %v944
        %v1164 = vadd.f32 %v1159, %v1162
        %v1165 = vadd.f32 %v1160, %v1163
        %v1166 = vstv %s738
        %v1167 = vmul.f32 %v1166, %v947
        %v1168 = vmul.f32 %v1166, %v948
        %v1169 = vadd.f32 %v1164, %v1167
        %v1170 = vadd.f32 %v1165, %v1168
        %v1171 = vstv %s859
        %v1172 = vadd.f32 %v1169, %v1171
        %v1173 = vadd.f32 %v1170, %v1171
        %v1174 = vstv %s611
        %v1175 = vmul.f32 %v1174, %v965
        %v1176 = vmul.f32 %v1174, %v966
        %v1177 = vstv %s612
        %v1178 = vmul.f32 %v1177, %v983
        %v1179 = vmul.f32 %v1177, %v984
        %v1180 = vadd.f32 %v1175, %v1178
        %v1181 = vadd.f32 %v1176, %v1179
        %v1182 = vstv %s613
        %v1183 = vmul.f32 %v1182, %v1001
        %v1184 = vmul.f32 %v1182, %v1002
        %v1185 = vadd.f32 %v1180, %v1183
        %v1186 = vadd.f32 %v1181, %v1184
        %v1187 = vstv %s614
        %v1188 = vmul.f32 %v1187, %v1019
        %v1189 = vmul.f32 %v1187, %v1020
        %v1190 = vadd.f32 %v1185, %v1188
        %v1191 = vadd.f32 %v1186, %v1189
        %v1192 = vstv %s615
        %v1193 = vmul.f32 %v1192, %v1037
        %v1194 = vmul.f32 %v1192, %v1038
        %v1195 = vadd.f32 %v1190, %v1193
        %v1196 = vadd.f32 %v1191, %v1194
        %v1197 = vstv %s616
        %v1198 = vmul.f32 %v1197, %v1055
        %v1199 = vmul.f32 %v1197, %v1056
        %v1200 = vadd.f32 %v1195, %v1198
        %v1201 = vadd.f32 %v1196, %v1199
        %v1202 = vstv %s617
        %v1203 = vmul.f32 %v1202, %v1073
        %v1204 = vmul.f32 %v1202, %v1074
        %v1205 = vadd.f32 %v1200, %v1203
        %v1206 = vadd.f32 %v1201, %v1204
        %v1207 = vstv %s618
        %v1208 = vmul.f32 %v1207, %v1091
        %v1209 = vmul.f32 %v1207, %v1092
        %v1210 = vadd.f32 %v1205, %v1208
        %v1211 = vadd.f32 %v1206, %v1209
        %v1212 = vstv %s739
        %v1213 = vmul.f32 %v1212, %v921
        %v1214 = vmul.f32 %v1212, %v922
        %v1215 = vadd.f32 %v1210, %v1213
        %v1216 = vadd.f32 %v1211, %v1214
        %v1217 = vstv %s740
        %v1218 = vmul.f32 %v1217, %v924
        %v1219 = vmul.f32 %v1217, %v925
        %v1220 = vadd.f32 %v1215, %v1218
        %v1221 = vadd.f32 %v1216, %v1219
        %v1222 = vstv %s741
        %v1223 = vmul.f32 %v1222, %v927
        %v1224 = vmul.f32 %v1222, %v928
        %v1225 = vadd.f32 %v1220, %v1223
        %v1226 = vadd.f32 %v1221, %v1224
        %v1227 = vstv %s742
        %v1228 = vmul.f32 %v1227, %v931
        %v1229 = vmul.f32 %v1227, %v932
        %v1230 = vadd.f32 %v1225, %v1228
        %v1231 = vadd.f32 %v1226, %v1229
        %v1232 = vstv %s743
        %v1233 = vmul.f32 %v1232, %v935
        %v1234 = vmul.f32 %v1232, %v936
        %v1235 = vadd.f32 %v1230, %v1233
        %v1236 = vadd.f32 %v1231, %v1234
        %v1237 = vstv %s744
        %v1238 = vmul.f32 %v1237, %v939
        %v1239 = vmul.f32 %v1237, %v940
        %v1240 = vadd.f32 %v1235, %v1238
        %v1241 = vadd.f32 %v1236, %v1239
        %v1242 = vstv %s745
        %v1243 = vmul.f32 %v1242, %v943
        %v1244 = vmul.f32 %v1242, %v944
        %v1245 = vadd.f32 %v1240, %v1243
        %v1246 = vadd.f32 %v1241, %v1244
        %v1247 = vstv %s746
        %v1248 = vmul.f32 %v1247, %v947
        %v1249 = vmul.f32 %v1247, %v948
        %v1250 = vadd.f32 %v1245, %v1248
        %v1251 = vadd.f32 %v1246, %v1249
        %v1252 = vstv %s860
        %v1253 = vadd.f32 %v1250, %v1252
        %v1254 = vadd.f32 %v1251, %v1252
        %v1255 = vstv %s619
        %v1256 = vmul.f32 %v1255, %v965
        %v1257 = vmul.f32 %v1255, %v966
        %v1258 = vstv %s620
        %v1259 = vmul.f32 %v1258, %v983
        %v1260 = vmul.f32 %v1258, %v984
        %v1261 = vadd.f32 %v1256, %v1259
        %v1262 = vadd.f32 %v1257, %v1260
        %v1263 = vstv %s621
        %v1264 = vmul.f32 %v1263, %v1001
        %v1265 = vmul.f32 %v1263, %v1002
        %v1266 = vadd.f32 %v1261, %v1264
        %v1267 = vadd.f32 %v1262, %v1265
        %v1268 = vstv %s622
        %v1269 = vmul.f32 %v1268, %v1019
        %v1270 = vmul.f32 %v1268, %v1020
        %v1271 = vadd.f32 %v1266, %v1269
        %v1272 = vadd.f32 %v1267, %v1270
        %v1273 = vstv %s623
        %v1274 = vmul.f32 %v1273, %v1037
        %v1275 = vmul.f32 %v1273, %v1038
        %v1276 = vadd.f32 %v1271, %v1274
        %v1277 = vadd.f32 %v1272, %v1275
        %v1278 = vstv %s624
        %v1279 = vmul.f32 %v1278, %v1055
        %v1280 = vmul.f32 %v1278, %v1056
        %v1281 = vadd.f32 %v1276, %v1279
        %v1282 = vadd.f32 %v1277, %v1280
        %v1283 = vstv %s625
        %v1284 = vmul.f32 %v1283, %v1073
        %v1285 = vmul.f32 %v1283, %v1074
        %v1286 = vadd.f32 %v1281, %v1284
        %v1287 = vadd.f32 %v1282, %v1285
        %v1288 = vstv %s626
        %v1289 = vmul.f32 %v1288, %v1091
        %v1290 = vmul.f32 %v1288, %v1092
        %v1291 = vadd.f32 %v1286, %v1289
        %v1292 = vadd.f32 %v1287, %v1290
        %v1293 = vstv %s747
        %v1294 = vmul.f32 %v1293, %v921
        %v1295 = vmul.f32 %v1293, %v922
        %v1296 = vadd.f32 %v1291, %v1294
        %v1297 = vadd.f32 %v1292, %v1295
        %v1298 = vstv %s748
        %v1299 = vmul.f32 %v1298, %v924
        %v1300 = vmul.f32 %v1298, %v925
        %v1301 = vadd.f32 %v1296, %v1299
        %v1302 = vadd.f32 %v1297, %v1300
        %v1303 = vstv %s749
        %v1304 = vmul.f32 %v1303, %v927
        %v1305 = vmul.f32 %v1303, %v928
        %v1306 = vadd.f32 %v1301, %v1304
        %v1307 = vadd.f32 %v1302, %v1305
        %v1308 = vstv %s750
        %v1309 = vmul.f32 %v1308, %v931
        %v1310 = vmul.f32 %v1308, %v932
        %v1311 = vadd.f32 %v1306, %v1309
        %v1312 = vadd.f32 %v1307, %v1310
        %v1313 = vstv %s751
        %v1314 = vmul.f32 %v1313, %v935
        %v1315 = vmul.f32 %v1313, %v936
        %v1316 = vadd.f32 %v1311, %v1314
        %v1317 = vadd.f32 %v1312, %v1315
        %v1318 = vstv %s752
        %v1319 = vmul.f32 %v1318, %v939
        %v1320 = vmul.f32 %v1318, %v940
        %v1321 = vadd.f32 %v1316, %v1319
        %v1322 = vadd.f32 %v1317, %v1320
        %v1323 = vstv %s753
        %v1324 = vmul.f32 %v1323, %v943
        %v1325 = vmul.f32 %v1323, %v944
        %v1326 = vadd.f32 %v1321, %v1324
        %v1327 = vadd.f32 %v1322, %v1325
        %v1328 = vstv %s754
        %v1329 = vmul.f32 %v1328, %v947
        %v1330 = vmul.f32 %v1328, %v948
        %v1331 = vadd.f32 %v1326, %v1329
        %v1332 = vadd.f32 %v1327, %v1330
        %v1333 = vstv %s861
        %v1334 = vadd.f32 %v1331, %v1333
        %v1335 = vadd.f32 %v1332, %v1333
        %v1336 = vstv %s627
        %v1337 = vmul.f32 %v1336, %v965
        %v1338 = vmul.f32 %v1336, %v966
        %v1339 = vstv %s628
        %v1340 = vmul.f32 %v1339, %v983
        %v1341 = vmul.f32 %v1339, %v984
        %v1342 = vadd.f32 %v1337, %v1340
        %v1343 = vadd.f32 %v1338, %v1341
        %v1344 = vstv %s629
        %v1345 = vmul.f32 %v1344, %v1001
        %v1346 = vmul.f32 %v1344, %v1002
        %v1347 = vadd.f32 %v1342, %v1345
        %v1348 = vadd.f32 %v1343, %v1346
        %v1349 = vstv %s630
        %v1350 = vmul.f32 %v1349, %v1019
        %v1351 = vmul.f32 %v1349, %v1020
        %v1352 = vadd.f32 %v1347, %v1350
        %v1353 = vadd.f32 %v1348, %v1351
        %v1354 = vstv %s631
        %v1355 = vmul.f32 %v1354, %v1037
        %v1356 = vmul.f32 %v1354, %v1038
        %v1357 = vadd.f32 %v1352, %v1355
        %v1358 = vadd.f32 %v1353, %v1356
        %v1359 = vstv %s632
        %v1360 = vmul.f32 %v1359, %v1055
        %v1361 = vmul.f32 %v1359, %v1056
        %v1362 = vadd.f32 %v1357, %v1360
        %v1363 = vadd.f32 %v1358, %v1361
        %v1364 = vstv %s633
        %v1365 = vmul.f32 %v1364, %v1073
        %v1366 = vmul.f32 %v1364, %v1074
        %v1367 = vadd.f32 %v1362, %v1365
        %v1368 = vadd.f32 %v1363, %v1366
        %v1369 = vstv %s634
        %v1370 = vmul.f32 %v1369, %v1091
        %v1371 = vmul.f32 %v1369, %v1092
        %v1372 = vadd.f32 %v1367, %v1370
        %v1373 = vadd.f32 %v1368, %v1371
        %v1374 = vstv %s755
        %v1375 = vmul.f32 %v1374, %v921
        %v1376 = vmul.f32 %v1374, %v922
        %v1377 = vadd.f32 %v1372, %v1375
        %v1378 = vadd.f32 %v1373, %v1376
        %v1379 = vstv %s756
        %v1380 = vmul.f32 %v1379, %v924
        %v1381 = vmul.f32 %v1379, %v925
        %v1382 = vadd.f32 %v1377, %v1380
        %v1383 = vadd.f32 %v1378, %v1381
        %v1384 = vstv %s757
        %v1385 = vmul.f32 %v1384, %v927
        %v1386 = vmul.f32 %v1384, %v928
        %v1387 = vadd.f32 %v1382, %v1385
        %v1388 = vadd.f32 %v1383, %v1386
        %v1389 = vstv %s758
        %v1390 = vmul.f32 %v1389, %v931
        %v1391 = vmul.f32 %v1389, %v932
        %v1392 = vadd.f32 %v1387, %v1390
        %v1393 = vadd.f32 %v1388, %v1391
        %v1394 = vstv %s759
        %v1395 = vmul.f32 %v1394, %v935
        %v1396 = vmul.f32 %v1394, %v936
        %v1397 = vadd.f32 %v1392, %v1395
        %v1398 = vadd.f32 %v1393, %v1396
        %v1399 = vstv %s760
        %v1400 = vmul.f32 %v1399, %v939
        %v1401 = vmul.f32 %v1399, %v940
        %v1402 = vadd.f32 %v1397, %v1400
        %v1403 = vadd.f32 %v1398, %v1401
        %v1404 = vstv %s761
        %v1405 = vmul.f32 %v1404, %v943
        %v1406 = vmul.f32 %v1404, %v944
        %v1407 = vadd.f32 %v1402, %v1405
        %v1408 = vadd.f32 %v1403, %v1406
        %v1409 = vstv %s762
        %v1410 = vmul.f32 %v1409, %v947
        %v1411 = vmul.f32 %v1409, %v948
        %v1412 = vadd.f32 %v1407, %v1410
        %v1413 = vadd.f32 %v1408, %v1411
        %v1414 = vstv %s862
        %v1415 = vadd.f32 %v1412, %v1414
        %v1416 = vadd.f32 %v1413, %v1414
        %v1417 = vstv %s635
        %v1418 = vmul.f32 %v1417, %v965
        %v1419 = vmul.f32 %v1417, %v966
        %v1420 = vstv %s636
        %v1421 = vmul.f32 %v1420, %v983
        %v1422 = vmul.f32 %v1420, %v984
        %v1423 = vadd.f32 %v1418, %v1421
        %v1424 = vadd.f32 %v1419, %v1422
        %v1425 = vstv %s637
        %v1426 = vmul.f32 %v1425, %v1001
        %v1427 = vmul.f32 %v1425, %v1002
        %v1428 = vadd.f32 %v1423, %v1426
        %v1429 = vadd.f32 %v1424, %v1427
        %v1430 = vstv %s638
        %v1431 = vmul.f32 %v1430, %v1019
        %v1432 = vmul.f32 %v1430, %v1020
        %v1433 = vadd.f32 %v1428, %v1431
        %v1434 = vadd.f32 %v1429, %v1432
        %v1435 = vstv %s639
        %v1436 = vmul.f32 %v1435, %v1037
        %v1437 = vmul.f32 %v1435, %v1038
        %v1438 = vadd.f32 %v1433, %v1436
        %v1439 = vadd.f32 %v1434, %v1437
        %v1440 = vstv %s640
        %v1441 = vmul.f32 %v1440, %v1055
        %v1442 = vmul.f32 %v1440, %v1056
        %v1443 = vadd.f32 %v1438, %v1441
        %v1444 = vadd.f32 %v1439, %v1442
        %v1445 = vstv %s641
        %v1446 = vmul.f32 %v1445, %v1073
        %v1447 = vmul.f32 %v1445, %v1074
        %v1448 = vadd.f32 %v1443, %v1446
        %v1449 = vadd.f32 %v1444, %v1447
        %v1450 = vstv %s642
        %v1451 = vmul.f32 %v1450, %v1091
        %v1452 = vmul.f32 %v1450, %v1092
        %v1453 = vadd.f32 %v1448, %v1451
        %v1454 = vadd.f32 %v1449, %v1452
        %v1455 = vstv %s763
        %v1456 = vmul.f32 %v1455, %v921
        %v1457 = vmul.f32 %v1455, %v922
        %v1458 = vadd.f32 %v1453, %v1456
        %v1459 = vadd.f32 %v1454, %v1457
        %v1460 = vstv %s764
        %v1461 = vmul.f32 %v1460, %v924
        %v1462 = vmul.f32 %v1460, %v925
        %v1463 = vadd.f32 %v1458, %v1461
        %v1464 = vadd.f32 %v1459, %v1462
        %v1465 = vstv %s765
        %v1466 = vmul.f32 %v1465, %v927
        %v1467 = vmul.f32 %v1465, %v928
        %v1468 = vadd.f32 %v1463, %v1466
        %v1469 = vadd.f32 %v1464, %v1467
        %v1470 = vstv %s766
        %v1471 = vmul.f32 %v1470, %v931
        %v1472 = vmul.f32 %v1470, %v932
        %v1473 = vadd.f32 %v1468, %v1471
        %v1474 = vadd.f32 %v1469, %v1472
        %v1475 = vstv %s767
        %v1476 = vmul.f32 %v1475, %v935
        %v1477 = vmul.f32 %v1475, %v936
        %v1478 = vadd.f32 %v1473, %v1476
        %v1479 = vadd.f32 %v1474, %v1477
        %v1480 = vstv %s768
        %v1481 = vmul.f32 %v1480, %v939
        %v1482 = vmul.f32 %v1480, %v940
        %v1483 = vadd.f32 %v1478, %v1481
        %v1484 = vadd.f32 %v1479, %v1482
        %v1485 = vstv %s769
        %v1486 = vmul.f32 %v1485, %v943
        %v1487 = vmul.f32 %v1485, %v944
        %v1488 = vadd.f32 %v1483, %v1486
        %v1489 = vadd.f32 %v1484, %v1487
        %v1490 = vstv %s770
        %v1491 = vmul.f32 %v1490, %v947
        %v1492 = vmul.f32 %v1490, %v948
        %v1493 = vadd.f32 %v1488, %v1491
        %v1494 = vadd.f32 %v1489, %v1492
        %v1495 = vstv %s863
        %v1496 = vadd.f32 %v1493, %v1495
        %v1497 = vadd.f32 %v1494, %v1495
        %v1498 = vstv %s643
        %v1499 = vmul.f32 %v1498, %v965
        %v1500 = vmul.f32 %v1498, %v966
        %v1501 = vstv %s644
        %v1502 = vmul.f32 %v1501, %v983
        %v1503 = vmul.f32 %v1501, %v984
        %v1504 = vadd.f32 %v1499, %v1502
        %v1505 = vadd.f32 %v1500, %v1503
        %v1506 = vstv %s645
        %v1507 = vmul.f32 %v1506, %v1001
        %v1508 = vmul.f32 %v1506, %v1002
        %v1509 = vadd.f32 %v1504, %v1507
        %v1510 = vadd.f32 %v1505, %v1508
        %v1511 = vstv %s646
        %v1512 = vmul.f32 %v1511, %v1019
        %v1513 = vmul.f32 %v1511, %v1020
        %v1514 = vadd.f32 %v1509, %v1512
        %v1515 = vadd.f32 %v1510, %v1513
        %v1516 = vstv %s647
        %v1517 = vmul.f32 %v1516, %v1037
        %v1518 = vmul.f32 %v1516, %v1038
        %v1519 = vadd.f32 %v1514, %v1517
        %v1520 = vadd.f32 %v1515, %v1518
        %v1521 = vstv %s648
        %v1522 = vmul.f32 %v1521, %v1055
        %v1523 = vmul.f32 %v1521, %v1056
        %v1524 = vadd.f32 %v1519, %v1522
        %v1525 = vadd.f32 %v1520, %v1523
        %v1526 = vstv %s649
        %v1527 = vmul.f32 %v1526, %v1073
        %v1528 = vmul.f32 %v1526, %v1074
        %v1529 = vadd.f32 %v1524, %v1527
        %v1530 = vadd.f32 %v1525, %v1528
        %v1531 = vstv %s650
        %v1532 = vmul.f32 %v1531, %v1091
        %v1533 = vmul.f32 %v1531, %v1092
        %v1534 = vadd.f32 %v1529, %v1532
        %v1535 = vadd.f32 %v1530, %v1533
        %v1536 = vstv %s771
        %v1537 = vmul.f32 %v1536, %v921
        %v1538 = vmul.f32 %v1536, %v922
        %v1539 = vadd.f32 %v1534, %v1537
        %v1540 = vadd.f32 %v1535, %v1538
        %v1541 = vstv %s772
        %v1542 = vmul.f32 %v1541, %v924
        %v1543 = vmul.f32 %v1541, %v925
        %v1544 = vadd.f32 %v1539, %v1542
        %v1545 = vadd.f32 %v1540, %v1543
        %v1546 = vstv %s773
        %v1547 = vmul.f32 %v1546, %v927
        %v1548 = vmul.f32 %v1546, %v928
        %v1549 = vadd.f32 %v1544, %v1547
        %v1550 = vadd.f32 %v1545, %v1548
        %v1551 = vstv %s774
        %v1552 = vmul.f32 %v1551, %v931
        %v1553 = vmul.f32 %v1551, %v932
        %v1554 = vadd.f32 %v1549, %v1552
        %v1555 = vadd.f32 %v1550, %v1553
        %v1556 = vstv %s775
        %v1557 = vmul.f32 %v1556, %v935
        %v1558 = vmul.f32 %v1556, %v936
        %v1559 = vadd.f32 %v1554, %v1557
        %v1560 = vadd.f32 %v1555, %v1558
        %v1561 = vstv %s776
        %v1562 = vmul.f32 %v1561, %v939
        %v1563 = vmul.f32 %v1561, %v940
        %v1564 = vadd.f32 %v1559, %v1562
        %v1565 = vadd.f32 %v1560, %v1563
        %v1566 = vstv %s777
        %v1567 = vmul.f32 %v1566, %v943
        %v1568 = vmul.f32 %v1566, %v944
        %v1569 = vadd.f32 %v1564, %v1567
        %v1570 = vadd.f32 %v1565, %v1568
        %v1571 = vstv %s778
        %v1572 = vmul.f32 %v1571, %v947
        %v1573 = vmul.f32 %v1571, %v948
        %v1574 = vadd.f32 %v1569, %v1572
        %v1575 = vadd.f32 %v1570, %v1573
        %v1576 = vstv %s864
        %v1577 = vadd.f32 %v1574, %v1576
        %v1578 = vadd.f32 %v1575, %v1576
        %v1579 = vstv %s651
        %v1580 = vmul.f32 %v1579, %v965
        %v1581 = vmul.f32 %v1579, %v966
        %v1582 = vstv %s652
        %v1583 = vmul.f32 %v1582, %v983
        %v1584 = vmul.f32 %v1582, %v984
        %v1585 = vadd.f32 %v1580, %v1583
        %v1586 = vadd.f32 %v1581, %v1584
        %v1587 = vstv %s653
        %v1588 = vmul.f32 %v1587, %v1001
        %v1589 = vmul.f32 %v1587, %v1002
        %v1590 = vadd.f32 %v1585, %v1588
        %v1591 = vadd.f32 %v1586, %v1589
        %v1592 = vstv %s654
        %v1593 = vmul.f32 %v1592, %v1019
        %v1594 = vmul.f32 %v1592, %v1020
        %v1595 = vadd.f32 %v1590, %v1593
        %v1596 = vadd.f32 %v1591, %v1594
        %v1597 = vstv %s655
        %v1598 = vmul.f32 %v1597, %v1037
        %v1599 = vmul.f32 %v1597, %v1038
        %v1600 = vadd.f32 %v1595, %v1598
        %v1601 = vadd.f32 %v1596, %v1599
        %v1602 = vstv %s656
        %v1603 = vmul.f32 %v1602, %v1055
        %v1604 = vmul.f32 %v1602, %v1056
        %v1605 = vadd.f32 %v1600, %v1603
        %v1606 = vadd.f32 %v1601, %v1604
        %v1607 = vstv %s657
        %v1608 = vmul.f32 %v1607, %v1073
        %v1609 = vmul.f32 %v1607, %v1074
        %v1610 = vadd.f32 %v1605, %v1608
        %v1611 = vadd.f32 %v1606, %v1609
        %v1612 = vstv %s658
        %v1613 = vmul.f32 %v1612, %v1091
        %v1614 = vmul.f32 %v1612, %v1092
        %v1615 = vadd.f32 %v1610, %v1613
        %v1616 = vadd.f32 %v1611, %v1614
        %v1617 = vstv %s779
        %v1618 = vmul.f32 %v1617, %v921
        %v1619 = vmul.f32 %v1617, %v922
        %v1620 = vadd.f32 %v1615, %v1618
        %v1621 = vadd.f32 %v1616, %v1619
        %v1622 = vstv %s780
        %v1623 = vmul.f32 %v1622, %v924
        %v1624 = vmul.f32 %v1622, %v925
        %v1625 = vadd.f32 %v1620, %v1623
        %v1626 = vadd.f32 %v1621, %v1624
        %v1627 = vstv %s781
        %v1628 = vmul.f32 %v1627, %v927
        %v1629 = vmul.f32 %v1627, %v928
        %v1630 = vadd.f32 %v1625, %v1628
        %v1631 = vadd.f32 %v1626, %v1629
        %v1632 = vstv %s782
        %v1633 = vmul.f32 %v1632, %v931
        %v1634 = vmul.f32 %v1632, %v932
        %v1635 = vadd.f32 %v1630, %v1633
        %v1636 = vadd.f32 %v1631, %v1634
        %v1637 = vstv %s783
        %v1638 = vmul.f32 %v1637, %v935
        %v1639 = vmul.f32 %v1637, %v936
        %v1640 = vadd.f32 %v1635, %v1638
        %v1641 = vadd.f32 %v1636, %v1639
        %v1642 = vstv %s784
        %v1643 = vmul.f32 %v1642, %v939
        %v1644 = vmul.f32 %v1642, %v940
        %v1645 = vadd.f32 %v1640, %v1643
        %v1646 = vadd.f32 %v1641, %v1644
        %v1647 = vstv %s785
        %v1648 = vmul.f32 %v1647, %v943
        %v1649 = vmul.f32 %v1647, %v944
        %v1650 = vadd.f32 %v1645, %v1648
        %v1651 = vadd.f32 %v1646, %v1649
        %v1652 = vstv %s786
        %v1653 = vmul.f32 %v1652, %v947
        %v1654 = vmul.f32 %v1652, %v948
        %v1655 = vadd.f32 %v1650, %v1653
        %v1656 = vadd.f32 %v1651, %v1654
        %v1657 = vstv %s865
        %v1658 = vadd.f32 %v1655, %v1657
        %v1659 = vadd.f32 %v1656, %v1657
        %v1660 = vstv %s659
        %v1661 = vmul.f32 %v1660, %v965
        %v1662 = vmul.f32 %v1660, %v966
        %v1663 = vstv %s660
        %v1664 = vmul.f32 %v1663, %v983
        %v1665 = vmul.f32 %v1663, %v984
        %v1666 = vadd.f32 %v1661, %v1664
        %v1667 = vadd.f32 %v1662, %v1665
        %v1668 = vstv %s661
        %v1669 = vmul.f32 %v1668, %v1001
        %v1670 = vmul.f32 %v1668, %v1002
        %v1671 = vadd.f32 %v1666, %v1669
        %v1672 = vadd.f32 %v1667, %v1670
        %v1673 = vstv %s662
        %v1674 = vmul.f32 %v1673, %v1019
        %v1675 = vmul.f32 %v1673, %v1020
        %v1676 = vadd.f32 %v1671, %v1674
        %v1677 = vadd.f32 %v1672, %v1675
        %v1678 = vstv %s663
        %v1679 = vmul.f32 %v1678, %v1037
        %v1680 = vmul.f32 %v1678, %v1038
        %v1681 = vadd.f32 %v1676, %v1679
        %v1682 = vadd.f32 %v1677, %v1680
        %v1683 = vstv %s664
        %v1684 = vmul.f32 %v1683, %v1055
        %v1685 = vmul.f32 %v1683, %v1056
        %v1686 = vadd.f32 %v1681, %v1684
        %v1687 = vadd.f32 %v1682, %v1685
        %v1688 = vstv %s665
        %v1689 = vmul.f32 %v1688, %v1073
        %v1690 = vmul.f32 %v1688, %v1074
        %v1691 = vadd.f32 %v1686, %v1689
        %v1692 = vadd.f32 %v1687, %v1690
        %v1693 = vstv %s666
        %v1694 = vmul.f32 %v1693, %v1091
        %v1695 = vmul.f32 %v1693, %v1092
        %v1696 = vadd.f32 %v1691, %v1694
        %v1697 = vadd.f32 %v1692, %v1695
        %v1698 = vstv %s787
        %v1699 = vmul.f32 %v1698, %v921
        %v1700 = vmul.f32 %v1698, %v922
        %v1701 = vadd.f32 %v1696, %v1699
        %v1702 = vadd.f32 %v1697, %v1700
        %v1703 = vstv %s788
        %v1704 = vmul.f32 %v1703, %v924
        %v1705 = vmul.f32 %v1703, %v925
        %v1706 = vadd.f32 %v1701, %v1704
        %v1707 = vadd.f32 %v1702, %v1705
        %v1708 = vstv %s789
        %v1709 = vmul.f32 %v1708, %v927
        %v1710 = vmul.f32 %v1708, %v928
        %v1711 = vadd.f32 %v1706, %v1709
        %v1712 = vadd.f32 %v1707, %v1710
        %v1713 = vstv %s790
        %v1714 = vmul.f32 %v1713, %v931
        %v1715 = vmul.f32 %v1713, %v932
        %v1716 = vadd.f32 %v1711, %v1714
        %v1717 = vadd.f32 %v1712, %v1715
        %v1718 = vstv %s791
        %v1719 = vmul.f32 %v1718, %v935
        %v1720 = vmul.f32 %v1718, %v936
        %v1721 = vadd.f32 %v1716, %v1719
        %v1722 = vadd.f32 %v1717, %v1720
        %v1723 = vstv %s792
        %v1724 = vmul.f32 %v1723, %v939
        %v1725 = vmul.f32 %v1723, %v940
        %v1726 = vadd.f32 %v1721, %v1724
        %v1727 = vadd.f32 %v1722, %v1725
        %v1728 = vstv %s793
        %v1729 = vmul.f32 %v1728, %v943
        %v1730 = vmul.f32 %v1728, %v944
        %v1731 = vadd.f32 %v1726, %v1729
        %v1732 = vadd.f32 %v1727, %v1730
        %v1733 = vstv %s794
        %v1734 = vmul.f32 %v1733, %v947
        %v1735 = vmul.f32 %v1733, %v948
        %v1736 = vadd.f32 %v1731, %v1734
        %v1737 = vadd.f32 %v1732, %v1735
        %v1738 = vstv %s866
        %v1739 = vadd.f32 %v1736, %v1738
        %v1740 = vadd.f32 %v1737, %v1738
        %v1741 = vstv %s667
        %v1742 = vmul.f32 %v1741, %v965
        %v1743 = vmul.f32 %v1741, %v966
        %v1744 = vstv %s668
        %v1745 = vmul.f32 %v1744, %v983
        %v1746 = vmul.f32 %v1744, %v984
        %v1747 = vadd.f32 %v1742, %v1745
        %v1748 = vadd.f32 %v1743, %v1746
        %v1749 = vstv %s669
        %v1750 = vmul.f32 %v1749, %v1001
        %v1751 = vmul.f32 %v1749, %v1002
        %v1752 = vadd.f32 %v1747, %v1750
        %v1753 = vadd.f32 %v1748, %v1751
        %v1754 = vstv %s670
        %v1755 = vmul.f32 %v1754, %v1019
        %v1756 = vmul.f32 %v1754, %v1020
        %v1757 = vadd.f32 %v1752, %v1755
        %v1758 = vadd.f32 %v1753, %v1756
        %v1759 = vstv %s671
        %v1760 = vmul.f32 %v1759, %v1037
        %v1761 = vmul.f32 %v1759, %v1038
        %v1762 = vadd.f32 %v1757, %v1760
        %v1763 = vadd.f32 %v1758, %v1761
        %v1764 = vstv %s672
        %v1765 = vmul.f32 %v1764, %v1055
        %v1766 = vmul.f32 %v1764, %v1056
        %v1767 = vadd.f32 %v1762, %v1765
        %v1768 = vadd.f32 %v1763, %v1766
        %v1769 = vstv %s673
        %v1770 = vmul.f32 %v1769, %v1073
        %v1771 = vmul.f32 %v1769, %v1074
        %v1772 = vadd.f32 %v1767, %v1770
        %v1773 = vadd.f32 %v1768, %v1771
        %v1774 = vstv %s674
        %v1775 = vmul.f32 %v1774, %v1091
        %v1776 = vmul.f32 %v1774, %v1092
        %v1777 = vadd.f32 %v1772, %v1775
        %v1778 = vadd.f32 %v1773, %v1776
        %v1779 = vstv %s795
        %v1780 = vmul.f32 %v1779, %v921
        %v1781 = vmul.f32 %v1779, %v922
        %v1782 = vadd.f32 %v1777, %v1780
        %v1783 = vadd.f32 %v1778, %v1781
        %v1784 = vstv %s796
        %v1785 = vmul.f32 %v1784, %v924
        %v1786 = vmul.f32 %v1784, %v925
        %v1787 = vadd.f32 %v1782, %v1785
        %v1788 = vadd.f32 %v1783, %v1786
        %v1789 = vstv %s797
        %v1790 = vmul.f32 %v1789, %v927
        %v1791 = vmul.f32 %v1789, %v928
        %v1792 = vadd.f32 %v1787, %v1790
        %v1793 = vadd.f32 %v1788, %v1791
        %v1794 = vstv %s798
        %v1795 = vmul.f32 %v1794, %v931
        %v1796 = vmul.f32 %v1794, %v932
        %v1797 = vadd.f32 %v1792, %v1795
        %v1798 = vadd.f32 %v1793, %v1796
        %v1799 = vstv %s799
        %v1800 = vmul.f32 %v1799, %v935
        %v1801 = vmul.f32 %v1799, %v936
        %v1802 = vadd.f32 %v1797, %v1800
        %v1803 = vadd.f32 %v1798, %v1801
        %v1804 = vstv %s800
        %v1805 = vmul.f32 %v1804, %v939
        %v1806 = vmul.f32 %v1804, %v940
        %v1807 = vadd.f32 %v1802, %v1805
        %v1808 = vadd.f32 %v1803, %v1806
        %v1809 = vstv %s801
        %v1810 = vmul.f32 %v1809, %v943
        %v1811 = vmul.f32 %v1809, %v944
        %v1812 = vadd.f32 %v1807, %v1810
        %v1813 = vadd.f32 %v1808, %v1811
        %v1814 = vstv %s802
        %v1815 = vmul.f32 %v1814, %v947
        %v1816 = vmul.f32 %v1814, %v948
        %v1817 = vadd.f32 %v1812, %v1815
        %v1818 = vadd.f32 %v1813, %v1816
        %v1819 = vstv %s867
        %v1820 = vadd.f32 %v1817, %v1819
        %v1821 = vadd.f32 %v1818, %v1819
        %v1822 = vstv %s675
        %v1823 = vmul.f32 %v1822, %v965
        %v1824 = vmul.f32 %v1822, %v966
        %v1825 = vstv %s676
        %v1826 = vmul.f32 %v1825, %v983
        %v1827 = vmul.f32 %v1825, %v984
        %v1828 = vadd.f32 %v1823, %v1826
        %v1829 = vadd.f32 %v1824, %v1827
        %v1830 = vstv %s677
        %v1831 = vmul.f32 %v1830, %v1001
        %v1832 = vmul.f32 %v1830, %v1002
        %v1833 = vadd.f32 %v1828, %v1831
        %v1834 = vadd.f32 %v1829, %v1832
        %v1835 = vstv %s678
        %v1836 = vmul.f32 %v1835, %v1019
        %v1837 = vmul.f32 %v1835, %v1020
        %v1838 = vadd.f32 %v1833, %v1836
        %v1839 = vadd.f32 %v1834, %v1837
        %v1840 = vstv %s679
        %v1841 = vmul.f32 %v1840, %v1037
        %v1842 = vmul.f32 %v1840, %v1038
        %v1843 = vadd.f32 %v1838, %v1841
        %v1844 = vadd.f32 %v1839, %v1842
        %v1845 = vstv %s680
        %v1846 = vmul.f32 %v1845, %v1055
        %v1847 = vmul.f32 %v1845, %v1056
        %v1848 = vadd.f32 %v1843, %v1846
        %v1849 = vadd.f32 %v1844, %v1847
        %v1850 = vstv %s681
        %v1851 = vmul.f32 %v1850, %v1073
        %v1852 = vmul.f32 %v1850, %v1074
        %v1853 = vadd.f32 %v1848, %v1851
        %v1854 = vadd.f32 %v1849, %v1852
        %v1855 = vstv %s682
        %v1856 = vmul.f32 %v1855, %v1091
        %v1857 = vmul.f32 %v1855, %v1092
        %v1858 = vadd.f32 %v1853, %v1856
        %v1859 = vadd.f32 %v1854, %v1857
        %v1860 = vstv %s803
        %v1861 = vmul.f32 %v1860, %v921
        %v1862 = vmul.f32 %v1860, %v922
        %v1863 = vadd.f32 %v1858, %v1861
        %v1864 = vadd.f32 %v1859, %v1862
        %v1865 = vstv %s804
        %v1866 = vmul.f32 %v1865, %v924
        %v1867 = vmul.f32 %v1865, %v925
        %v1868 = vadd.f32 %v1863, %v1866
        %v1869 = vadd.f32 %v1864, %v1867
        %v1870 = vstv %s805
        %v1871 = vmul.f32 %v1870, %v927
        %v1872 = vmul.f32 %v1870, %v928
        %v1873 = vadd.f32 %v1868, %v1871
        %v1874 = vadd.f32 %v1869, %v1872
        %v1875 = vstv %s806
        %v1876 = vmul.f32 %v1875, %v931
        %v1877 = vmul.f32 %v1875, %v932
        %v1878 = vadd.f32 %v1873, %v1876
        %v1879 = vadd.f32 %v1874, %v1877
        %v1880 = vstv %s807
        %v1881 = vmul.f32 %v1880, %v935
        %v1882 = vmul.f32 %v1880, %v936
        %v1883 = vadd.f32 %v1878, %v1881
        %v1884 = vadd.f32 %v1879, %v1882
        %v1885 = vstv %s808
        %v1886 = vmul.f32 %v1885, %v939
        %v1887 = vmul.f32 %v1885, %v940
        %v1888 = vadd.f32 %v1883, %v1886
        %v1889 = vadd.f32 %v1884, %v1887
        %v1890 = vstv %s809
        %v1891 = vmul.f32 %v1890, %v943
        %v1892 = vmul.f32 %v1890, %v944
        %v1893 = vadd.f32 %v1888, %v1891
        %v1894 = vadd.f32 %v1889, %v1892
        %v1895 = vstv %s810
        %v1896 = vmul.f32 %v1895, %v947
        %v1897 = vmul.f32 %v1895, %v948
        %v1898 = vadd.f32 %v1893, %v1896
        %v1899 = vadd.f32 %v1894, %v1897
        %v1900 = vstv %s868
        %v1901 = vadd.f32 %v1898, %v1900
        %v1902 = vadd.f32 %v1899, %v1900
        %v1903 = vstv %s683
        %v1904 = vmul.f32 %v1903, %v965
        %v1905 = vmul.f32 %v1903, %v966
        %v1906 = vstv %s684
        %v1907 = vmul.f32 %v1906, %v983
        %v1908 = vmul.f32 %v1906, %v984
        %v1909 = vadd.f32 %v1904, %v1907
        %v1910 = vadd.f32 %v1905, %v1908
        %v1911 = vstv %s685
        %v1912 = vmul.f32 %v1911, %v1001
        %v1913 = vmul.f32 %v1911, %v1002
        %v1914 = vadd.f32 %v1909, %v1912
        %v1915 = vadd.f32 %v1910, %v1913
        %v1916 = vstv %s686
        %v1917 = vmul.f32 %v1916, %v1019
        %v1918 = vmul.f32 %v1916, %v1020
        %v1919 = vadd.f32 %v1914, %v1917
        %v1920 = vadd.f32 %v1915, %v1918
        %v1921 = vstv %s687
        %v1922 = vmul.f32 %v1921, %v1037
        %v1923 = vmul.f32 %v1921, %v1038
        %v1924 = vadd.f32 %v1919, %v1922
        %v1925 = vadd.f32 %v1920, %v1923
        %v1926 = vstv %s688
        %v1927 = vmul.f32 %v1926, %v1055
        %v1928 = vmul.f32 %v1926, %v1056
        %v1929 = vadd.f32 %v1924, %v1927
        %v1930 = vadd.f32 %v1925, %v1928
        %v1931 = vstv %s689
        %v1932 = vmul.f32 %v1931, %v1073
        %v1933 = vmul.f32 %v1931, %v1074
        %v1934 = vadd.f32 %v1929, %v1932
        %v1935 = vadd.f32 %v1930, %v1933
        %v1936 = vstv %s690
        %v1937 = vmul.f32 %v1936, %v1091
        %v1938 = vmul.f32 %v1936, %v1092
        %v1939 = vadd.f32 %v1934, %v1937
        %v1940 = vadd.f32 %v1935, %v1938
        %v1941 = vstv %s811
        %v1942 = vmul.f32 %v1941, %v921
        %v1943 = vmul.f32 %v1941, %v922
        %v1944 = vadd.f32 %v1939, %v1942
        %v1945 = vadd.f32 %v1940, %v1943
        %v1946 = vstv %s812
        %v1947 = vmul.f32 %v1946, %v924
        %v1948 = vmul.f32 %v1946, %v925
        %v1949 = vadd.f32 %v1944, %v1947
        %v1950 = vadd.f32 %v1945, %v1948
        %v1951 = vstv %s813
        %v1952 = vmul.f32 %v1951, %v927
        %v1953 = vmul.f32 %v1951, %v928
        %v1954 = vadd.f32 %v1949, %v1952
        %v1955 = vadd.f32 %v1950, %v1953
        %v1956 = vstv %s814
        %v1957 = vmul.f32 %v1956, %v931
        %v1958 = vmul.f32 %v1956, %v932
        %v1959 = vadd.f32 %v1954, %v1957
        %v1960 = vadd.f32 %v1955, %v1958
        %v1961 = vstv %s815
        %v1962 = vmul.f32 %v1961, %v935
        %v1963 = vmul.f32 %v1961, %v936
        %v1964 = vadd.f32 %v1959, %v1962
        %v1965 = vadd.f32 %v1960, %v1963
        %v1966 = vstv %s816
        %v1967 = vmul.f32 %v1966, %v939
        %v1968 = vmul.f32 %v1966, %v940
        %v1969 = vadd.f32 %v1964, %v1967
        %v1970 = vadd.f32 %v1965, %v1968
        %v1971 = vstv %s817
        %v1972 = vmul.f32 %v1971, %v943
        %v1973 = vmul.f32 %v1971, %v944
        %v1974 = vadd.f32 %v1969, %v1972
        %v1975 = vadd.f32 %v1970, %v1973
        %v1976 = vstv %s818
        %v1977 = vmul.f32 %v1976, %v947
        %v1978 = vmul.f32 %v1976, %v948
        %v1979 = vadd.f32 %v1974, %v1977
        %v1980 = vadd.f32 %v1975, %v1978
        %v1981 = vstv %s869
        %v1982 = vadd.f32 %v1979, %v1981
        %v1983 = vadd.f32 %v1980, %v1981
        %v1984 = vstv %s691
        %v1985 = vmul.f32 %v1984, %v965
        %v1986 = vmul.f32 %v1984, %v966
        %v1987 = vstv %s692
        %v1988 = vmul.f32 %v1987, %v983
        %v1989 = vmul.f32 %v1987, %v984
        %v1990 = vadd.f32 %v1985, %v1988
        %v1991 = vadd.f32 %v1986, %v1989
        %v1992 = vstv %s693
        %v1993 = vmul.f32 %v1992, %v1001
        %v1994 = vmul.f32 %v1992, %v1002
        %v1995 = vadd.f32 %v1990, %v1993
        %v1996 = vadd.f32 %v1991, %v1994
        %v1997 = vstv %s694
        %v1998 = vmul.f32 %v1997, %v1019
        %v1999 = vmul.f32 %v1997, %v1020
        %v2000 = vadd.f32 %v1995, %v1998
        %v2001 = vadd.f32 %v1996, %v1999
        %v2002 = vstv %s695
        %v2003 = vmul.f32 %v2002, %v1037
        %v2004 = vmul.f32 %v2002, %v1038
        %v2005 = vadd.f32 %v2000, %v2003
        %v2006 = vadd.f32 %v2001, %v2004
        %v2007 = vstv %s696
        %v2008 = vmul.f32 %v2007, %v1055
        %v2009 = vmul.f32 %v2007, %v1056
        %v2010 = vadd.f32 %v2005, %v2008
        %v2011 = vadd.f32 %v2006, %v2009
        %v2012 = vstv %s697
        %v2013 = vmul.f32 %v2012, %v1073
        %v2014 = vmul.f32 %v2012, %v1074
        %v2015 = vadd.f32 %v2010, %v2013
        %v2016 = vadd.f32 %v2011, %v2014
        %v2017 = vstv %s698
        %v2018 = vmul.f32 %v2017, %v1091
        %v2019 = vmul.f32 %v2017, %v1092
        %v2020 = vadd.f32 %v2015, %v2018
        %v2021 = vadd.f32 %v2016, %v2019
        %v2022 = vstv %s819
        %v2023 = vmul.f32 %v2022, %v921
        %v2024 = vmul.f32 %v2022, %v922
        %v2025 = vadd.f32 %v2020, %v2023
        %v2026 = vadd.f32 %v2021, %v2024
        %v2027 = vstv %s820
        %v2028 = vmul.f32 %v2027, %v924
        %v2029 = vmul.f32 %v2027, %v925
        %v2030 = vadd.f32 %v2025, %v2028
        %v2031 = vadd.f32 %v2026, %v2029
        %v2032 = vstv %s821
        %v2033 = vmul.f32 %v2032, %v927
        %v2034 = vmul.f32 %v2032, %v928
        %v2035 = vadd.f32 %v2030, %v2033
        %v2036 = vadd.f32 %v2031, %v2034
        %v2037 = vstv %s822
        %v2038 = vmul.f32 %v2037, %v931
        %v2039 = vmul.f32 %v2037, %v932
        %v2040 = vadd.f32 %v2035, %v2038
        %v2041 = vadd.f32 %v2036, %v2039
        %v2042 = vstv %s823
        %v2043 = vmul.f32 %v2042, %v935
        %v2044 = vmul.f32 %v2042, %v936
        %v2045 = vadd.f32 %v2040, %v2043
        %v2046 = vadd.f32 %v2041, %v2044
        %v2047 = vstv %s824
        %v2048 = vmul.f32 %v2047, %v939
        %v2049 = vmul.f32 %v2047, %v940
        %v2050 = vadd.f32 %v2045, %v2048
        %v2051 = vadd.f32 %v2046, %v2049
        %v2052 = vstv %s825
        %v2053 = vmul.f32 %v2052, %v943
        %v2054 = vmul.f32 %v2052, %v944
        %v2055 = vadd.f32 %v2050, %v2053
        %v2056 = vadd.f32 %v2051, %v2054
        %v2057 = vstv %s826
        %v2058 = vmul.f32 %v2057, %v947
        %v2059 = vmul.f32 %v2057, %v948
        %v2060 = vadd.f32 %v2055, %v2058
        %v2061 = vadd.f32 %v2056, %v2059
        %v2062 = vstv %s870
        %v2063 = vadd.f32 %v2060, %v2062
        %v2064 = vadd.f32 %v2061, %v2062
        %v2065 = vstv %s699
        %v2066 = vmul.f32 %v2065, %v965
        %v2067 = vmul.f32 %v2065, %v966
        %v2068 = vstv %s700
        %v2069 = vmul.f32 %v2068, %v983
        %v2070 = vmul.f32 %v2068, %v984
        %v2071 = vadd.f32 %v2066, %v2069
        %v2072 = vadd.f32 %v2067, %v2070
        %v2073 = vstv %s701
        %v2074 = vmul.f32 %v2073, %v1001
        %v2075 = vmul.f32 %v2073, %v1002
        %v2076 = vadd.f32 %v2071, %v2074
        %v2077 = vadd.f32 %v2072, %v2075
        %v2078 = vstv %s702
        %v2079 = vmul.f32 %v2078, %v1019
        %v2080 = vmul.f32 %v2078, %v1020
        %v2081 = vadd.f32 %v2076, %v2079
        %v2082 = vadd.f32 %v2077, %v2080
        %v2083 = vstv %s703
        %v2084 = vmul.f32 %v2083, %v1037
        %v2085 = vmul.f32 %v2083, %v1038
        %v2086 = vadd.f32 %v2081, %v2084
        %v2087 = vadd.f32 %v2082, %v2085
        %v2088 = vstv %s704
        %v2089 = vmul.f32 %v2088, %v1055
        %v2090 = vmul.f32 %v2088, %v1056
        %v2091 = vadd.f32 %v2086, %v2089
        %v2092 = vadd.f32 %v2087, %v2090
        %v2093 = vstv %s705
        %v2094 = vmul.f32 %v2093, %v1073
        %v2095 = vmul.f32 %v2093, %v1074
        %v2096 = vadd.f32 %v2091, %v2094
        %v2097 = vadd.f32 %v2092, %v2095
        %v2098 = vstv %s706
        %v2099 = vmul.f32 %v2098, %v1091
        %v2100 = vmul.f32 %v2098, %v1092
        %v2101 = vadd.f32 %v2096, %v2099
        %v2102 = vadd.f32 %v2097, %v2100
        %v2103 = vstv %s827
        %v2104 = vmul.f32 %v2103, %v921
        %v2105 = vmul.f32 %v2103, %v922
        %v2106 = vadd.f32 %v2101, %v2104
        %v2107 = vadd.f32 %v2102, %v2105
        %v2108 = vstv %s828
        %v2109 = vmul.f32 %v2108, %v924
        %v2110 = vmul.f32 %v2108, %v925
        %v2111 = vadd.f32 %v2106, %v2109
        %v2112 = vadd.f32 %v2107, %v2110
        %v2113 = vstv %s829
        %v2114 = vmul.f32 %v2113, %v927
        %v2115 = vmul.f32 %v2113, %v928
        %v2116 = vadd.f32 %v2111, %v2114
        %v2117 = vadd.f32 %v2112, %v2115
        %v2118 = vstv %s830
        %v2119 = vmul.f32 %v2118, %v931
        %v2120 = vmul.f32 %v2118, %v932
        %v2121 = vadd.f32 %v2116, %v2119
        %v2122 = vadd.f32 %v2117, %v2120
        %v2123 = vstv %s831
        %v2124 = vmul.f32 %v2123, %v935
        %v2125 = vmul.f32 %v2123, %v936
        %v2126 = vadd.f32 %v2121, %v2124
        %v2127 = vadd.f32 %v2122, %v2125
        %v2128 = vstv %s832
        %v2129 = vmul.f32 %v2128, %v939
        %v2130 = vmul.f32 %v2128, %v940
        %v2131 = vadd.f32 %v2126, %v2129
        %v2132 = vadd.f32 %v2127, %v2130
        %v2133 = vstv %s833
        %v2134 = vmul.f32 %v2133, %v943
        %v2135 = vmul.f32 %v2133, %v944
        %v2136 = vadd.f32 %v2131, %v2134
        %v2137 = vadd.f32 %v2132, %v2135
        %v2138 = vstv %s834
        %v2139 = vmul.f32 %v2138, %v947
        %v2140 = vmul.f32 %v2138, %v948
        %v2141 = vadd.f32 %v2136, %v2139
        %v2142 = vadd.f32 %v2137, %v2140
        %v2143 = vstv %s871
        %v2144 = vadd.f32 %v2141, %v2143
        %v2145 = vadd.f32 %v2142, %v2143
        %v2146 = vstv %s707
        %v2147 = vmul.f32 %v2146, %v965
        %v2148 = vmul.f32 %v2146, %v966
        %v2149 = vstv %s708
        %v2150 = vmul.f32 %v2149, %v983
        %v2151 = vmul.f32 %v2149, %v984
        %v2152 = vadd.f32 %v2147, %v2150
        %v2153 = vadd.f32 %v2148, %v2151
        %v2154 = vstv %s709
        %v2155 = vmul.f32 %v2154, %v1001
        %v2156 = vmul.f32 %v2154, %v1002
        %v2157 = vadd.f32 %v2152, %v2155
        %v2158 = vadd.f32 %v2153, %v2156
        %v2159 = vstv %s710
        %v2160 = vmul.f32 %v2159, %v1019
        %v2161 = vmul.f32 %v2159, %v1020
        %v2162 = vadd.f32 %v2157, %v2160
        %v2163 = vadd.f32 %v2158, %v2161
        %v2164 = vstv %s711
        %v2165 = vmul.f32 %v2164, %v1037
        %v2166 = vmul.f32 %v2164, %v1038
        %v2167 = vadd.f32 %v2162, %v2165
        %v2168 = vadd.f32 %v2163, %v2166
        %v2169 = vstv %s712
        %v2170 = vmul.f32 %v2169, %v1055
        %v2171 = vmul.f32 %v2169, %v1056
        %v2172 = vadd.f32 %v2167, %v2170
        %v2173 = vadd.f32 %v2168, %v2171
        %v2174 = vstv %s713
        %v2175 = vmul.f32 %v2174, %v1073
        %v2176 = vmul.f32 %v2174, %v1074
        %v2177 = vadd.f32 %v2172, %v2175
        %v2178 = vadd.f32 %v2173, %v2176
        %v2179 = vstv %s714
        %v2180 = vmul.f32 %v2179, %v1091
        %v2181 = vmul.f32 %v2179, %v1092
        %v2182 = vadd.f32 %v2177, %v2180
        %v2183 = vadd.f32 %v2178, %v2181
        %v2184 = vstv %s835
        %v2185 = vmul.f32 %v2184, %v921
        %v2186 = vmul.f32 %v2184, %v922
        %v2187 = vadd.f32 %v2182, %v2185
        %v2188 = vadd.f32 %v2183, %v2186
        %v2189 = vstv %s836
        %v2190 = vmul.f32 %v2189, %v924
        %v2191 = vmul.f32 %v2189, %v925
        %v2192 = vadd.f32 %v2187, %v2190
        %v2193 = vadd.f32 %v2188, %v2191
        %v2194 = vstv %s837
        %v2195 = vmul.f32 %v2194, %v927
        %v2196 = vmul.f32 %v2194, %v928
        %v2197 = vadd.f32 %v2192, %v2195
        %v2198 = vadd.f32 %v2193, %v2196
        %v2199 = vstv %s838
        %v2200 = vmul.f32 %v2199, %v931
        %v2201 = vmul.f32 %v2199, %v932
        %v2202 = vadd.f32 %v2197, %v2200
        %v2203 = vadd.f32 %v2198, %v2201
        %v2204 = vstv %s839
        %v2205 = vmul.f32 %v2204, %v935
        %v2206 = vmul.f32 %v2204, %v936
        %v2207 = vadd.f32 %v2202, %v2205
        %v2208 = vadd.f32 %v2203, %v2206
        %v2209 = vstv %s840
        %v2210 = vmul.f32 %v2209, %v939
        %v2211 = vmul.f32 %v2209, %v940
        %v2212 = vadd.f32 %v2207, %v2210
        %v2213 = vadd.f32 %v2208, %v2211
        %v2214 = vstv %s841
        %v2215 = vmul.f32 %v2214, %v943
        %v2216 = vmul.f32 %v2214, %v944
        %v2217 = vadd.f32 %v2212, %v2215
        %v2218 = vadd.f32 %v2213, %v2216
        %v2219 = vstv %s842
        %v2220 = vmul.f32 %v2219, %v947
        %v2221 = vmul.f32 %v2219, %v948
        %v2222 = vadd.f32 %v2217, %v2220
        %v2223 = vadd.f32 %v2218, %v2221
        %v2224 = vstv %s872
        %v2225 = vadd.f32 %v2222, %v2224
        %v2226 = vadd.f32 %v2223, %v2224
        %v2227 = vstv %s715
        %v2228 = vmul.f32 %v2227, %v965
        %v2229 = vmul.f32 %v2227, %v966
        %v2230 = vstv %s716
        %v2231 = vmul.f32 %v2230, %v983
        %v2232 = vmul.f32 %v2230, %v984
        %v2233 = vadd.f32 %v2228, %v2231
        %v2234 = vadd.f32 %v2229, %v2232
        %v2235 = vstv %s717
        %v2236 = vmul.f32 %v2235, %v1001
        %v2237 = vmul.f32 %v2235, %v1002
        %v2238 = vadd.f32 %v2233, %v2236
        %v2239 = vadd.f32 %v2234, %v2237
        %v2240 = vstv %s718
        %v2241 = vmul.f32 %v2240, %v1019
        %v2242 = vmul.f32 %v2240, %v1020
        %v2243 = vadd.f32 %v2238, %v2241
        %v2244 = vadd.f32 %v2239, %v2242
        %v2245 = vstv %s719
        %v2246 = vmul.f32 %v2245, %v1037
        %v2247 = vmul.f32 %v2245, %v1038
        %v2248 = vadd.f32 %v2243, %v2246
        %v2249 = vadd.f32 %v2244, %v2247
        %v2250 = vstv %s720
        %v2251 = vmul.f32 %v2250, %v1055
        %v2252 = vmul.f32 %v2250, %v1056
        %v2253 = vadd.f32 %v2248, %v2251
        %v2254 = vadd.f32 %v2249, %v2252
        %v2255 = vstv %s721
        %v2256 = vmul.f32 %v2255, %v1073
        %v2257 = vmul.f32 %v2255, %v1074
        %v2258 = vadd.f32 %v2253, %v2256
        %v2259 = vadd.f32 %v2254, %v2257
        %v2260 = vstv %s722
        %v2261 = vmul.f32 %v2260, %v1091
        %v2262 = vmul.f32 %v2260, %v1092
        %v2263 = vadd.f32 %v2258, %v2261
        %v2264 = vadd.f32 %v2259, %v2262
        %v2265 = vstv %s843
        %v2266 = vmul.f32 %v2265, %v921
        %v2267 = vmul.f32 %v2265, %v922
        %v2268 = vadd.f32 %v2263, %v2266
        %v2269 = vadd.f32 %v2264, %v2267
        %v2270 = vstv %s844
        %v2271 = vmul.f32 %v2270, %v924
        %v2272 = vmul.f32 %v2270, %v925
        %v2273 = vadd.f32 %v2268, %v2271
        %v2274 = vadd.f32 %v2269, %v2272
        %v2275 = vstv %s845
        %v2276 = vmul.f32 %v2275, %v927
        %v2277 = vmul.f32 %v2275, %v928
        %v2278 = vadd.f32 %v2273, %v2276
        %v2279 = vadd.f32 %v2274, %v2277
        %v2280 = vstv %s846
        %v2281 = vmul.f32 %v2280, %v931
        %v2282 = vmul.f32 %v2280, %v932
        %v2283 = vadd.f32 %v2278, %v2281
        %v2284 = vadd.f32 %v2279, %v2282
        %v2285 = vstv %s847
        %v2286 = vmul.f32 %v2285, %v935
        %v2287 = vmul.f32 %v2285, %v936
        %v2288 = vadd.f32 %v2283, %v2286
        %v2289 = vadd.f32 %v2284, %v2287
        %v2290 = vstv %s848
        %v2291 = vmul.f32 %v2290, %v939
        %v2292 = vmul.f32 %v2290, %v940
        %v2293 = vadd.f32 %v2288, %v2291
        %v2294 = vadd.f32 %v2289, %v2292
        %v2295 = vstv %s849
        %v2296 = vmul.f32 %v2295, %v943
        %v2297 = vmul.f32 %v2295, %v944
        %v2298 = vadd.f32 %v2293, %v2296
        %v2299 = vadd.f32 %v2294, %v2297
        %v2300 = vstv %s850
        %v2301 = vmul.f32 %v2300, %v947
        %v2302 = vmul.f32 %v2300, %v948
        %v2303 = vadd.f32 %v2298, %v2301
        %v2304 = vadd.f32 %v2299, %v2302
        %v2305 = vstv %s873
        %v2306 = vadd.f32 %v2303, %v2305
        %v2307 = vadd.f32 %v2304, %v2305
        %v2308 = vstv %s723
        %v2309 = vmul.f32 %v2308, %v965
        %v2310 = vmul.f32 %v2308, %v966
        %v2311 = vstv %s724
        %v2312 = vmul.f32 %v2311, %v983
        %v2313 = vmul.f32 %v2311, %v984
        %v2314 = vadd.f32 %v2309, %v2312
        %v2315 = vadd.f32 %v2310, %v2313
        %v2316 = vstv %s725
        %v2317 = vmul.f32 %v2316, %v1001
        %v2318 = vmul.f32 %v2316, %v1002
        %v2319 = vadd.f32 %v2314, %v2317
        %v2320 = vadd.f32 %v2315, %v2318
        %v2321 = vstv %s726
        %v2322 = vmul.f32 %v2321, %v1019
        %v2323 = vmul.f32 %v2321, %v1020
        %v2324 = vadd.f32 %v2319, %v2322
        %v2325 = vadd.f32 %v2320, %v2323
        %v2326 = vstv %s727
        %v2327 = vmul.f32 %v2326, %v1037
        %v2328 = vmul.f32 %v2326, %v1038
        %v2329 = vadd.f32 %v2324, %v2327
        %v2330 = vadd.f32 %v2325, %v2328
        %v2331 = vstv %s728
        %v2332 = vmul.f32 %v2331, %v1055
        %v2333 = vmul.f32 %v2331, %v1056
        %v2334 = vadd.f32 %v2329, %v2332
        %v2335 = vadd.f32 %v2330, %v2333
        %v2336 = vstv %s729
        %v2337 = vmul.f32 %v2336, %v1073
        %v2338 = vmul.f32 %v2336, %v1074
        %v2339 = vadd.f32 %v2334, %v2337
        %v2340 = vadd.f32 %v2335, %v2338
        %v2341 = vstv %s730
        %v2342 = vmul.f32 %v2341, %v1091
        %v2343 = vmul.f32 %v2341, %v1092
        %v2344 = vadd.f32 %v2339, %v2342
        %v2345 = vadd.f32 %v2340, %v2343
        %v2346 = vstv %s851
        %v2347 = vmul.f32 %v2346, %v921
        %v2348 = vmul.f32 %v2346, %v922
        %v2349 = vadd.f32 %v2344, %v2347
        %v2350 = vadd.f32 %v2345, %v2348
        %v2351 = vstv %s852
        %v2352 = vmul.f32 %v2351, %v924
        %v2353 = vmul.f32 %v2351, %v925
        %v2354 = vadd.f32 %v2349, %v2352
        %v2355 = vadd.f32 %v2350, %v2353
        %v2356 = vstv %s853
        %v2357 = vmul.f32 %v2356, %v927
        %v2358 = vmul.f32 %v2356, %v928
        %v2359 = vadd.f32 %v2354, %v2357
        %v2360 = vadd.f32 %v2355, %v2358
        %v2361 = vstv %s854
        %v2362 = vmul.f32 %v2361, %v931
        %v2363 = vmul.f32 %v2361, %v932
        %v2364 = vadd.f32 %v2359, %v2362
        %v2365 = vadd.f32 %v2360, %v2363
        %v2366 = vstv %s855
        %v2367 = vmul.f32 %v2366, %v935
        %v2368 = vmul.f32 %v2366, %v936
        %v2369 = vadd.f32 %v2364, %v2367
        %v2370 = vadd.f32 %v2365, %v2368
        %v2371 = vstv %s856
        %v2372 = vmul.f32 %v2371, %v939
        %v2373 = vmul.f32 %v2371, %v940
        %v2374 = vadd.f32 %v2369, %v2372
        %v2375 = vadd.f32 %v2370, %v2373
        %v2376 = vstv %s857
        %v2377 = vmul.f32 %v2376, %v943
        %v2378 = vmul.f32 %v2376, %v944
        %v2379 = vadd.f32 %v2374, %v2377
        %v2380 = vadd.f32 %v2375, %v2378
        %v2381 = vstv %s858
        %v2382 = vmul.f32 %v2381, %v947
        %v2383 = vmul.f32 %v2381, %v948
        %v2384 = vadd.f32 %v2379, %v2382
        %v2385 = vadd.f32 %v2380, %v2383
        %v2386 = vstv %s874
        %v2387 = vadd.f32 %v2384, %v2386
        %v2388 = vadd.f32 %v2385, %v2386
        %v2389 = vxor.u32 %v1172, 2147483648
        %v2390 = vxor.u32 %v1173, 2147483648
        %v2391 = vmul.f32 %v2389, 1.442695
        %v2392 = vpow.pop %v2391
        %v2393 = vmul.f32 %v2390, 1.442695
        %v2394 = vpow.pop %v2393
        %v2395 = vadd.f32 %v2392, 1.0
        %v2396 = vadd.f32 %v2394, 1.0
        %v2397 = vrcp.pop %v2395
        %v2398 = vmul.f32 1.0, %v2397
        %v2399 = vrcp.pop %v2396
        %v2400 = vmul.f32 1.0, %v2399
        %v2401 = vtanh.pop %v1820
        %v2402 = vtanh.pop %v1821
        %v2403 = vsub.f32 %v2401, %v921
        %v2404 = vsub.f32 %v2402, %v922
        %v2405 = vmul.f32 %v2398, %v2403
        %v2406 = vmul.f32 %v2400, %v2404
        %v2407 = vadd.f32 %v921, %v2405
        %v2408 = vadd.f32 %v922, %v2406
        %2409 = vst [vmem:[#allocation2] sm:$0xff] %v2407
        %2410 = vst [vmem:[#allocation2 + $0x8] sm:$0xff] %v2408
        %v2411 = vxor.u32 %v1253, 2147483648
        %v2412 = vxor.u32 %v1254, 2147483648
        %v2413 = vmul.f32 %v2411, 1.442695
        %v2414 = vpow.pop %v2413
        %v2415 = vmul.f32 %v2412, 1.442695
        %v2416 = vpow.pop %v2415
        %v2417 = vadd.f32 %v2414, 1.0
        %v2418 = vadd.f32 %v2416, 1.0
        %v2419 = vrcp.pop %v2417
        %v2420 = vmul.f32 1.0, %v2419
        %v2421 = vrcp.pop %v2418
        %v2422 = vmul.f32 1.0, %v2421
        %v2423 = vtanh.pop %v1901
        %v2424 = vtanh.pop %v1902
        %v2425 = vsub.f32 %v2423, %v924
        %v2426 = vsub.f32 %v2424, %v925
        %v2427 = vmul.f32 %v2420, %v2425
        %v2428 = vmul.f32 %v2422, %v2426
        %v2429 = vadd.f32 %v924, %v2427
        %v2430 = vadd.f32 %v925, %v2428
        %2431 = vst [vmem:[%s923] sm:$0xff] %v2429
        %2432 = vst [vmem:[%s923 + $0x8] sm:$0xff] %v2430
        %v2433 = vxor.u32 %v1334, 2147483648
        %v2434 = vxor.u32 %v1335, 2147483648
        %v2435 = vmul.f32 %v2433, 1.442695
        %v2436 = vpow.pop %v2435
        %v2437 = vmul.f32 %v2434, 1.442695
        %v2438 = vpow.pop %v2437
        %v2439 = vadd.f32 %v2436, 1.0
        %v2440 = vadd.f32 %v2438, 1.0
        %v2441 = vrcp.pop %v2439
        %v2442 = vmul.f32 1.0, %v2441
        %v2443 = vrcp.pop %v2440
        %v2444 = vmul.f32 1.0, %v2443
        %v2445 = vtanh.pop %v1982
        %v2446 = vtanh.pop %v1983
        %v2447 = vsub.f32 %v2445, %v927
        %v2448 = vsub.f32 %v2446, %v928
        %v2449 = vmul.f32 %v2442, %v2447
        %v2450 = vmul.f32 %v2444, %v2448
        %v2451 = vadd.f32 %v927, %v2449
        %v2452 = vadd.f32 %v928, %v2450
        %2453 = vst [vmem:[%s926] sm:$0xff] %v2451
        %2454 = vst [vmem:[%s926 + $0x8] sm:$0xff] %v2452
        %v2455 = vxor.u32 %v1415, 2147483648
        %v2456 = vxor.u32 %v1416, 2147483648
        %v2457 = vmul.f32 %v2455, 1.442695
        %v2458 = vpow.pop %v2457
        %v2459 = vmul.f32 %v2456, 1.442695
        %v2460 = vpow.pop %v2459
        %v2461 = vadd.f32 %v2458, 1.0
        %v2462 = vadd.f32 %v2460, 1.0
        %v2463 = vrcp.pop %v2461
        %v2464 = vmul.f32 1.0, %v2463
        %v2465 = vrcp.pop %v2462
        %v2466 = vmul.f32 1.0, %v2465
        %v2467 = vtanh.pop %v2063
        %v2468 = vtanh.pop %v2064
        %v2469 = vsub.f32 %v2467, %v931
        %v2470 = vsub.f32 %v2468, %v932
        %v2471 = vmul.f32 %v2464, %v2469
        %v2472 = vmul.f32 %v2466, %v2470
        %v2473 = vadd.f32 %v931, %v2471
        %v2474 = vadd.f32 %v932, %v2472
        %2475 = vst [vmem:[%s930] sm:$0xff] %v2473
        %2476 = vst [vmem:[%s930 + $0x8] sm:$0xff] %v2474
        %v2477 = vxor.u32 %v1496, 2147483648
        %v2478 = vxor.u32 %v1497, 2147483648
        %v2479 = vmul.f32 %v2477, 1.442695
        %v2480 = vpow.pop %v2479
        %v2481 = vmul.f32 %v2478, 1.442695
        %v2482 = vpow.pop %v2481
        %v2483 = vadd.f32 %v2480, 1.0
        %v2484 = vadd.f32 %v2482, 1.0
        %v2485 = vrcp.pop %v2483
        %v2486 = vmul.f32 1.0, %v2485
        %v2487 = vrcp.pop %v2484
        %v2488 = vmul.f32 1.0, %v2487
        %v2489 = vtanh.pop %v2144
        %v2490 = vtanh.pop %v2145
        %v2491 = vsub.f32 %v2489, %v935
        %v2492 = vsub.f32 %v2490, %v936
        %v2493 = vmul.f32 %v2486, %v2491
        %v2494 = vmul.f32 %v2488, %v2492
        %v2495 = vadd.f32 %v935, %v2493
        %v2496 = vadd.f32 %v936, %v2494
        %2497 = vst [vmem:[%s934] sm:$0xff] %v2495
        %2498 = vst [vmem:[%s934 + $0x8] sm:$0xff] %v2496
        %v2499 = vxor.u32 %v1577, 2147483648
        %v2500 = vxor.u32 %v1578, 2147483648
        %v2501 = vmul.f32 %v2499, 1.442695
        %v2502 = vpow.pop %v2501
        %v2503 = vmul.f32 %v2500, 1.442695
        %v2504 = vpow.pop %v2503
        %v2505 = vadd.f32 %v2502, 1.0
        %v2506 = vadd.f32 %v2504, 1.0
        %v2507 = vrcp.pop %v2505
        %v2508 = vmul.f32 1.0, %v2507
        %v2509 = vrcp.pop %v2506
        %v2510 = vmul.f32 1.0, %v2509
        %v2511 = vtanh.pop %v2225
        %v2512 = vtanh.pop %v2226
        %v2513 = vsub.f32 %v2511, %v939
        %v2514 = vsub.f32 %v2512, %v940
        %v2515 = vmul.f32 %v2508, %v2513
        %v2516 = vmul.f32 %v2510, %v2514
        %v2517 = vadd.f32 %v939, %v2515
        %v2518 = vadd.f32 %v940, %v2516
        %2519 = vst [vmem:[%s938] sm:$0xff] %v2517
        %2520 = vst [vmem:[%s938 + $0x8] sm:$0xff] %v2518
        %v2521 = vxor.u32 %v1658, 2147483648
        %v2522 = vxor.u32 %v1659, 2147483648
        %v2523 = vmul.f32 %v2521, 1.442695
        %v2524 = vpow.pop %v2523
        %v2525 = vmul.f32 %v2522, 1.442695
        %v2526 = vpow.pop %v2525
        %v2527 = vadd.f32 %v2524, 1.0
        %v2528 = vadd.f32 %v2526, 1.0
        %v2529 = vrcp.pop %v2527
        %v2530 = vmul.f32 1.0, %v2529
        %v2531 = vrcp.pop %v2528
        %v2532 = vmul.f32 1.0, %v2531
        %v2533 = vtanh.pop %v2306
        %v2534 = vtanh.pop %v2307
        %v2535 = vsub.f32 %v2533, %v943
        %v2536 = vsub.f32 %v2534, %v944
        %v2537 = vmul.f32 %v2530, %v2535
        %v2538 = vmul.f32 %v2532, %v2536
        %v2539 = vadd.f32 %v943, %v2537
        %v2540 = vadd.f32 %v944, %v2538
        %2541 = vst [vmem:[%s942] sm:$0xff] %v2539
        %2542 = vst [vmem:[%s942 + $0x8] sm:$0xff] %v2540
        %v2543 = vxor.u32 %v1739, 2147483648
        %v2544 = vxor.u32 %v1740, 2147483648
        %v2545 = vmul.f32 %v2543, 1.442695
        %v2546 = vpow.pop %v2545
        %v2547 = vmul.f32 %v2544, 1.442695
        %v2548 = vpow.pop %v2547
        %v2549 = vadd.f32 %v2546, 1.0
        %v2550 = vadd.f32 %v2548, 1.0
        %v2551 = vrcp.pop %v2549
        %v2552 = vmul.f32 1.0, %v2551
        %v2553 = vrcp.pop %v2550
        %v2554 = vmul.f32 1.0, %v2553
        %v2555 = vtanh.pop %v2387
        %v2556 = vtanh.pop %v2388
        %v2557 = vsub.f32 %v2555, %v947
        %v2558 = vsub.f32 %v2556, %v948
        %v2559 = vmul.f32 %v2552, %v2557
        %v2560 = vmul.f32 %v2554, %v2558
        %v2561 = vadd.f32 %v947, %v2559
        %v2562 = vadd.f32 %v948, %v2560
        %2563 = vst [vmem:[%s946] sm:$0xff] %v2561
        %2564 = vst [vmem:[%s946 + $0x8] sm:$0xff] %v2562
        %v2565 = vstv %s875
        %v2566 = vmul.f32 %v2565, %v2407
        %v2567 = vmul.f32 %v2565, %v2408
        %v2568 = vstv %s876
        %v2569 = vmul.f32 %v2568, %v2429
        %v2570 = vmul.f32 %v2568, %v2430
        %v2571 = vadd.f32 %v2566, %v2569
        %v2572 = vadd.f32 %v2567, %v2570
        %v2573 = vstv %s877
        %v2574 = vmul.f32 %v2573, %v2451
        %v2575 = vmul.f32 %v2573, %v2452
        %v2576 = vadd.f32 %v2571, %v2574
        %v2577 = vadd.f32 %v2572, %v2575
        %v2578 = vstv %s878
        %v2579 = vmul.f32 %v2578, %v2473
        %v2580 = vmul.f32 %v2578, %v2474
        %v2581 = vadd.f32 %v2576, %v2579
        %v2582 = vadd.f32 %v2577, %v2580
        %v2583 = vstv %s879
        %v2584 = vmul.f32 %v2583, %v2495
        %v2585 = vmul.f32 %v2583, %v2496
        %v2586 = vadd.f32 %v2581, %v2584
        %v2587 = vadd.f32 %v2582, %v2585
        %v2588 = vstv %s880
        %v2589 = vmul.f32 %v2588, %v2517
        %v2590 = vmul.f32 %v2588, %v2518
        %v2591 = vadd.f32 %v2586, %v2589
        %v2592 = vadd.f32 %v2587, %v2590
        %v2593 = vstv %s881
        %v2594 = vmul.f32 %v2593, %v2539
        %v2595 = vmul.f32 %v2593, %v2540
        %v2596 = vadd.f32 %v2591, %v2594
        %v2597 = vadd.f32 %v2592, %v2595
        %v2598 = vstv %s882
        %v2599 = vmul.f32 %v2598, %v2561
        %v2600 = vmul.f32 %v2598, %v2562
        %v2601 = vadd.f32 %v2596, %v2599
        %v2602 = vadd.f32 %v2597, %v2600
        %v2603 = vstv %s907
        %v2604 = vadd.f32 %v2601, %v2603
        %v2605 = vadd.f32 %v2602, %v2603
        %v2606 = vxor.u32 %v2604, 2147483648
        %v2607 = vxor.u32 %v2605, 2147483648
        %v2608 = vmul.f32 %v2606, 1.442695
        %v2609 = vpow.pop %v2608
        %v2610 = vmul.f32 %v2607, 1.442695
        %v2611 = vpow.pop %v2610
        %v2612 = vadd.f32 %v2609, 1.0
        %v2613 = vadd.f32 %v2611, 1.0
        %v2614 = vrcp.pop %v2612
        %v2615 = vmul.f32 1.0, %v2614
        %v2616 = vrcp.pop %v2613
        %v2617 = vmul.f32 1.0, %v2616
        %v2618 = vstv %s883
        %v2619 = vmul.f32 %v2618, %v2407
        %v2620 = vmul.f32 %v2618, %v2408
        %v2621 = vstv %s884
        %v2622 = vmul.f32 %v2621, %v2429
        %v2623 = vmul.f32 %v2621, %v2430
        %v2624 = vadd.f32 %v2619, %v2622
        %v2625 = vadd.f32 %v2620, %v2623
        %v2626 = vstv %s885
        %v2627 = vmul.f32 %v2626, %v2451
        %v2628 = vmul.f32 %v2626, %v2452
        %v2629 = vadd.f32 %v2624, %v2627
        %v2630 = vadd.f32 %v2625, %v2628
        %v2631 = vstv %s886
        %v2632 = vmul.f32 %v2631, %v2473
        %v2633 = vmul.f32 %v2631, %v2474
        %v2634 = vadd.f32 %v2629, %v2632
        %v2635 = vadd.f32 %v2630, %v2633
        %v2636 = vstv %s887
        %v2637 = vmul.f32 %v2636, %v2495
        %v2638 = vmul.f32 %v2636, %v2496
        %v2639 = vadd.f32 %v2634, %v2637
        %v2640 = vadd.f32 %v2635, %v2638
        %v2641 = vstv %s888
        %v2642 = vmul.f32 %v2641, %v2517
        %v2643 = vmul.f32 %v2641, %v2518
        %v2644 = vadd.f32 %v2639, %v2642
        %v2645 = vadd.f32 %v2640, %v2643
        %v2646 = vstv %s889
        %v2647 = vmul.f32 %v2646, %v2539
        %v2648 = vmul.f32 %v2646, %v2540
        %v2649 = vadd.f32 %v2644, %v2647
        %v2650 = vadd.f32 %v2645, %v2648
        %v2651 = vstv %s890
        %v2652 = vmul.f32 %v2651, %v2561
        %v2653 = vmul.f32 %v2651, %v2562
        %v2654 = vadd.f32 %v2649, %v2652
        %v2655 = vadd.f32 %v2650, %v2653
        %v2656 = vstv %s908
        %v2657 = vadd.f32 %v2654, %v2656
        %v2658 = vadd.f32 %v2655, %v2656
        %v2659 = vxor.u32 %v2657, 2147483648
        %v2660 = vxor.u32 %v2658, 2147483648
        %v2661 = vmul.f32 %v2659, 1.442695
        %v2662 = vpow.pop %v2661
        %v2663 = vmul.f32 %v2660, 1.442695
        %v2664 = vpow.pop %v2663
        %v2665 = vadd.f32 %v2662, 1.0
        %v2666 = vadd.f32 %v2664, 1.0
        %v2667 = vrcp.pop %v2665
        %v2668 = vmul.f32 1.0, %v2667
        %v2669 = vrcp.pop %v2666
        %v2670 = vmul.f32 1.0, %v2669
        %v2671 = vstv %s891
        %v2672 = vmul.f32 %v2671, %v2407
        %v2673 = vmul.f32 %v2671, %v2408
        %v2674 = vstv %s892
        %v2675 = vmul.f32 %v2674, %v2429
        %v2676 = vmul.f32 %v2674, %v2430
        %v2677 = vadd.f32 %v2672, %v2675
        %v2678 = vadd.f32 %v2673, %v2676
        %v2679 = vstv %s893
        %v2680 = vmul.f32 %v2679, %v2451
        %v2681 = vmul.f32 %v2679, %v2452
        %v2682 = vadd.f32 %v2677, %v2680
        %v2683 = vadd.f32 %v2678, %v2681
        %v2684 = vstv %s894
        %v2685 = vmul.f32 %v2684, %v2473
        %v2686 = vmul.f32 %v2684, %v2474
        %v2687 = vadd.f32 %v2682, %v2685
        %v2688 = vadd.f32 %v2683, %v2686
        %v2689 = vstv %s895
        %v2690 = vmul.f32 %v2689, %v2495
        %v2691 = vmul.f32 %v2689, %v2496
        %v2692 = vadd.f32 %v2687, %v2690
        %v2693 = vadd.f32 %v2688, %v2691
        %v2694 = vstv %s896
        %v2695 = vmul.f32 %v2694, %v2517
        %v2696 = vmul.f32 %v2694, %v2518
        %v2697 = vadd.f32 %v2692, %v2695
        %v2698 = vadd.f32 %v2693, %v2696
        %v2699 = vstv %s897
        %v2700 = vmul.f32 %v2699, %v2539
        %v2701 = vmul.f32 %v2699, %v2540
        %v2702 = vadd.f32 %v2697, %v2700
        %v2703 = vadd.f32 %v2698, %v2701
        %v2704 = vstv %s898
        %v2705 = vmul.f32 %v2704, %v2561
        %v2706 = vmul.f32 %v2704, %v2562
        %v2707 = vadd.f32 %v2702, %v2705
        %v2708 = vadd.f32 %v2703, %v2706
        %v2709 = vstv %s909
        %v2710 = vadd.f32 %v2707, %v2709
        %v2711 = vadd.f32 %v2708, %v2709
        %v2712 = vxor.u32 %v2710, 2147483648
        %v2713 = vxor.u32 %v2711, 2147483648
        %v2714 = vmul.f32 %v2712, 1.442695
        %v2715 = vpow.pop %v2714
        %v2716 = vmul.f32 %v2713, 1.442695
        %v2717 = vpow.pop %v2716
        %v2718 = vadd.f32 %v2715, 1.0
        %v2719 = vadd.f32 %v2717, 1.0
        %v2720 = vrcp.pop %v2718
        %v2721 = vmul.f32 1.0, %v2720
        %v2722 = vrcp.pop %v2719
        %v2723 = vmul.f32 1.0, %v2722
        %v2724 = vstv %s899
        %v2725 = vmul.f32 %v2724, %v2407
        %v2726 = vmul.f32 %v2724, %v2408
        %v2727 = vstv %s900
        %v2728 = vmul.f32 %v2727, %v2429
        %v2729 = vmul.f32 %v2727, %v2430
        %v2730 = vadd.f32 %v2725, %v2728
        %v2731 = vadd.f32 %v2726, %v2729
        %v2732 = vstv %s901
        %v2733 = vmul.f32 %v2732, %v2451
        %v2734 = vmul.f32 %v2732, %v2452
        %v2735 = vadd.f32 %v2730, %v2733
        %v2736 = vadd.f32 %v2731, %v2734
        %v2737 = vstv %s902
        %v2738 = vmul.f32 %v2737, %v2473
        %v2739 = vmul.f32 %v2737, %v2474
        %v2740 = vadd.f32 %v2735, %v2738
        %v2741 = vadd.f32 %v2736, %v2739
        %v2742 = vstv %s903
        %v2743 = vmul.f32 %v2742, %v2495
        %v2744 = vmul.f32 %v2742, %v2496
        %v2745 = vadd.f32 %v2740, %v2743
        %v2746 = vadd.f32 %v2741, %v2744
        %v2747 = vstv %s904
        %v2748 = vmul.f32 %v2747, %v2517
        %v2749 = vmul.f32 %v2747, %v2518
        %v2750 = vadd.f32 %v2745, %v2748
        %v2751 = vadd.f32 %v2746, %v2749
        %v2752 = vstv %s905
        %v2753 = vmul.f32 %v2752, %v2539
        %v2754 = vmul.f32 %v2752, %v2540
        %v2755 = vadd.f32 %v2750, %v2753
        %v2756 = vadd.f32 %v2751, %v2754
        %v2757 = vstv %s906
        %v2758 = vmul.f32 %v2757, %v2561
        %v2759 = vmul.f32 %v2757, %v2562
        %v2760 = vadd.f32 %v2755, %v2758
        %v2761 = vadd.f32 %v2756, %v2759
        %v2762 = vstv %s910
        %v2763 = vadd.f32 %v2760, %v2762
        %v2764 = vadd.f32 %v2761, %v2762
        %v2765 = vxor.u32 %v2763, 2147483648
        %v2766 = vxor.u32 %v2764, 2147483648
        %v2767 = vmul.f32 %v2765, 1.442695
        %v2768 = vpow.pop %v2767
        %v2769 = vmul.f32 %v2766, 1.442695
        %v2770 = vpow.pop %v2769
        %v2771 = vadd.f32 %v2768, 1.0
        %v2772 = vadd.f32 %v2770, 1.0
        %v2773 = vrcp.pop %v2771
        %v2774 = vmul.f32 1.0, %v2773
        %v2775 = vrcp.pop %v2772
        %v2776 = vmul.f32 1.0, %v2775
        %v2777 = vpack.c.bf16 %v2617, %v2615
        %v2779 = vunpack.c.l.b16 %v2777
        %v2780 = vunpack.c.h.b16 %v2777
        %v2781 = vpack.c.b16 %v2779, %v2779
        %v2782 = vpack.c.b16 %v2780, %v2780
        %2785 = vst [vmem:[%s532] sm:$0xf] %v2781
        %2786 = vst [vmem:[%s532 + $0x4] sm:$0xf] %v2782
        %v2787 = vpack.c.bf16 %v2670, %v2668
        %v2789 = vunpack.c.l.b16 %v2787
        %v2790 = vunpack.c.h.b16 %v2787
        %v2791 = vpack.c.b16 %v2789, %v2789
        %v2792 = vpack.c.b16 %v2790, %v2790
        %s2795 = sadd.s32 0, 2
        %s2796 = smul.addr %s2795, 4
        %s2797 = scalar_lea.vmem %s532, %s2796 [#allocation19]
        %2798 = vst [vmem:[%s2797] sm:$0xf] %v2791
        %2799 = vst [vmem:[%s2797 + $0x4] sm:$0xf] %v2792
        %v2800 = vpack.c.bf16 %v2723, %v2721
        %v2802 = vunpack.c.l.b16 %v2800
        %v2803 = vunpack.c.h.b16 %v2800
        %v2804 = vpack.c.b16 %v2802, %v2802
        %v2805 = vpack.c.b16 %v2803, %v2803
        %s2808 = sadd.s32 0, 4
        %s2809 = smul.addr %s2808, 4
        %s2810 = scalar_lea.vmem %s532, %s2809 [#allocation19]
        %2811 = vst [vmem:[%s2810] sm:$0xf] %v2804
        %2812 = vst [vmem:[%s2810 + $0x4] sm:$0xf] %v2805
        %v2813 = vpack.c.bf16 %v2776, %v2774
        %v2815 = vunpack.c.l.b16 %v2813
        %v2816 = vunpack.c.h.b16 %v2813
        %v2817 = vpack.c.b16 %v2815, %v2815
        %v2818 = vpack.c.b16 %v2816, %v2816
        %2821 = vst [vmem:[%s539] sm:$0xf] %v2817
        %2822 = vst [vmem:[%s539 + $0x4] sm:$0xf] %v2818
        %vm2823 = vcmp.gt.f32.partialorder %v2774, 0.0
        %vm2824 = vcmp.gt.f32.partialorder %v2776, 0.0
        %v2825 = vsel %vm2823, 1, 0
        %v2826 = vsel %vm2824, 1, 0
        %v2827 = vcvt.s32.f32 %v2825
        %v2828 = vcvt.s32.f32 %v2826
        %v2829 = vmul.f32 %v2615, %v2827
        %v2830 = vmul.f32 %v2617, %v2828
        %v2831 = vpack.c.bf16 %v2830, %v2829
        %v2833 = vunpack.c.l.b16 %v2831
        %v2834 = vunpack.c.h.b16 %v2831
        %v2835 = vpack.c.b16 %v2833, %v2833
        %v2836 = vpack.c.b16 %v2834, %v2834
        %2839 = vst [vmem:[%s546] sm:$0xf] %v2835
        %2840 = vst [vmem:[%s546 + $0x4] sm:$0xf] %v2836
        %v2841 = vmul.f32 %v2668, %v2827
        %v2842 = vmul.f32 %v2670, %v2828
        %v2843 = vpack.c.bf16 %v2842, %v2841
        %v2845 = vunpack.c.l.b16 %v2843
        %v2846 = vunpack.c.h.b16 %v2843
        %v2847 = vpack.c.b16 %v2845, %v2845
        %v2848 = vpack.c.b16 %v2846, %v2846
        %s2851 = smul.addr %s2795, 4
        %s2852 = scalar_lea.vmem %s546, %s2851 [#allocation22]
        %2853 = vst [vmem:[%s2852] sm:$0xf] %v2847
        %2854 = vst [vmem:[%s2852 + $0x4] sm:$0xf] %v2848
        %v2855 = vmul.f32 %v2721, %v2827
        %v2856 = vmul.f32 %v2723, %v2828
        %v2857 = vpack.c.bf16 %v2856, %v2855
        %v2859 = vunpack.c.l.b16 %v2857
        %v2860 = vunpack.c.h.b16 %v2857
        %v2861 = vpack.c.b16 %v2859, %v2859
        %v2862 = vpack.c.b16 %v2860, %v2860
        %s2865 = smul.addr %s2808, 4
        %s2866 = scalar_lea.vmem %s546, %s2865 [#allocation22]
        %2867 = vst [vmem:[%s2866] sm:$0xf] %v2861
        %2868 = vst [vmem:[%s2866 + $0x4] sm:$0xf] %v2862
        %s2869 = sadd.s32 0, 6
        %s2870 = smul.addr %s2869, 4
        %s2871 = scalar_lea.vmem %s546, %s2870 [#allocation22]
        %2872 = vst [vmem:[%s2871] sm:$0xf] %v2817
        %2873 = vst [vmem:[%s2871 + $0x4] sm:$0xf] %v2818
        %s2874 = sand.u32 %s255, 1
        %s2875 = scalar_lea.sflag [#allocation5], %s2874
        %s2876 = sand.u32 %s255, 1
        %s2877 = smul.addr %s2876, 24
        %s2878 = scalar_lea.vmem [#allocation19], %s2877
        %s2879 = sand.u32 %s37, 1
        %s2880 = scalar_lea.sflag [#allocation21], %s2879
        %s2881 = sand.u32 %s283, 1
        %s2882 = smul.addr %s2881, 8
        %s2883 = scalar_lea.vmem [#allocation20], %s2882
        %s2884 = sand.u32 %s37, 1
        %s2885 = scalar_lea.sflag [#allocation21], %s2884
        %s2886 = sand.u32 %s311, 1
        %s2887 = smul.addr %s2886, 32
        %s2888 = scalar_lea.vmem [#allocation22], %s2887
        // Predicated region
        $region97: #{_run_matting_kernel.1} parent=55 // pred_check
          %p2889 = pneg %p265
        $region98: #{_run_matting_kernel.1} parent=55 // pred_check_branch
          %2891 = sbr.rel (%p2889) target = $region100
        $region99: #{_run_matting_kernel.1} parent=55 // pred_region
          %s2892 = smul.u32 2, %s41
          %s2894 = ssub.s32 384, 384
          %2895 = vsyncadd %s2875, %s2894
          %s2896 = smul.addr %s42, 6
          %s2897 = sadd.s32 %s2892, %s2896
          %s2898 = smul.addr %s2897, 64
          %s2899 = scalar_lea.hbm %s9, %s2898
          %s2900 = sshll.u32 %s2878, 4
          %s2901 = int_to_ptr.vmem [resolvable:$true] %s2900
          %2906 = dma.vmem_to_hbm [thread:$0]  %s2901, 384, %s2899, %s2875, 64, 64, 4
        $region100: #{_run_matting_kernel.1} parent=55 // pred_fallthru
          _
        // Predicated region
        $region101: #{_run_matting_kernel.1} parent=55 // pred_check
          %p2907 = pneg %p293
        $region102: #{_run_matting_kernel.1} parent=55 // pred_check_branch
          %2909 = sbr.rel (%p2907) target = $region104
        $region103: #{_run_matting_kernel.1} parent=55 // pred_region
          %s2910 = smul.u32 2, %s41
          %s2912 = ssub.s32 128, 128
          %2913 = vsyncadd %s2880, %s2912
          %s2914 = smul.addr %s42, 2
          %s2915 = sadd.s32 %s2910, %s2914
          %s2916 = smul.addr %s2915, 64
          %s2917 = scalar_lea.hbm %s10, %s2916
          %s2918 = sshll.u32 %s2883, 4
          %s2919 = int_to_ptr.vmem [resolvable:$true] %s2918
          %2924 = dma.vmem_to_hbm [thread:$0]  %s2919, 128, %s2917, %s2880, 64, 64, 4
        $region104: #{_run_matting_kernel.1} parent=55 // pred_fallthru
          _
        // Predicated region
        $region105: #{_run_matting_kernel.1} parent=55 // pred_check
          %p2925 = pneg %p321
        $region106: #{_run_matting_kernel.1} parent=55 // pred_check_branch
          %2927 = sbr.rel (%p2925) target = $region108
        $region107: #{_run_matting_kernel.1} parent=55 // pred_region
          %s2928 = smul.u32 2, %s41
          %s2930 = ssub.s32 512, 512
          %2931 = vsyncadd %s2885, %s2930
          %s2932 = smul.addr %s42, 8
          %s2933 = sadd.s32 %s2928, %s2932
          %s2934 = smul.addr %s2933, 64
          %s2935 = scalar_lea.hbm %s11, %s2934
          %s2936 = sshll.u32 %s2888, 4
          %s2937 = int_to_ptr.vmem [resolvable:$true] %s2936
          %2942 = dma.vmem_to_hbm [thread:$0]  %s2937, 512, %s2935, %s2885, 64, 64, 4
        $region108: #{_run_matting_kernel.1} parent=55 // pred_fallthru
          _
      $region56: #{_run_matting_kernel.1} parent=5 // pred_fallthru
        _
      %p2943 = scmp.le.s32.totalorder 2, %s32
      // Predicated region
      $region109: #{_run_matting_kernel.1} parent=5 // pred_check
        %p2944 = pneg %p2943
      $region110: #{_run_matting_kernel.1} parent=5 // pred_check_branch
        %2946 = sbr.rel (%p2944) target = $region112
      $region111: #{_run_matting_kernel.1} parent=5 // pred_region
        %s2947 = ssub.s32 %s32, 2
        // Predicated region
        $region113: #{_run_matting_kernel.1} parent=111 // pred_check
          %p2948 = pneg %p271
        $region114: #{_run_matting_kernel.1} parent=111 // pred_check_branch
          %2950 = sbr.rel (%p2948) target = $region116
        $region115: #{_run_matting_kernel.1} parent=111 // pred_region
          %s2951 = sand.u32 %s256, 1
          %s2952 = scalar_lea.sflag [#allocation5], %s2951
          %s2953 = sand.u32 %s256, 1
          %s2954 = smul.addr %s2953, 24
          %s2955 = scalar_lea.vmem [#allocation19], %s2954
          %2956 = dma.done %s2952, 384
        $region116: #{_run_matting_kernel.1} parent=111 // pred_fallthru
          _
        // Predicated region
        $region117: #{_run_matting_kernel.1} parent=111 // pred_check
          %p2957 = pneg %p299
        $region118: #{_run_matting_kernel.1} parent=111 // pred_check_branch
          %2959 = sbr.rel (%p2957) target = $region120
        $region119: #{_run_matting_kernel.1} parent=111 // pred_region
          %s2960 = sand.u32 %s38, 1
          %s2961 = scalar_lea.sflag [#allocation21], %s2960
          %s2962 = sand.u32 %s284, 1
          %s2963 = smul.addr %s2962, 8
          %s2964 = scalar_lea.vmem [#allocation20], %s2963
          %2965 = dma.done %s2961, 128
        $region120: #{_run_matting_kernel.1} parent=111 // pred_fallthru
          _
        // Predicated region
        $region121: #{_run_matting_kernel.1} parent=111 // pred_check
          %p2966 = pneg %p327
        $region122: #{_run_matting_kernel.1} parent=111 // pred_check_branch
          %2968 = sbr.rel (%p2966) target = $region124
        $region123: #{_run_matting_kernel.1} parent=111 // pred_region
          %s2969 = sand.u32 %s38, 1
          %s2970 = scalar_lea.sflag [#allocation21], %s2969
          %s2971 = sand.u32 %s312, 1
          %s2972 = smul.addr %s2971, 32
          %s2973 = scalar_lea.vmem [#allocation22], %s2972
          %2974 = dma.done %s2970, 512
        $region124: #{_run_matting_kernel.1} parent=111 // pred_fallthru
          _
      $region112: #{_run_matting_kernel.1} parent=5 // pred_fallthru
        _
    $region6: #{_run_matting_kernel.1} parent=1 // loop_footer
      %s36 = sadd.s32 1, %s32
    $region7: #{_run_matting_kernel.1} parent=1 // loop_footer_branch
      %31 = sbr.rel target = $region3
    $region8: #{_run_matting_kernel.1} parent=1 // loop_exit
      _
    %2975 = vsyncpa [#allocation4], 1
    %s2976 = scalar_lea.sflag [#allocation4], 1
    %2977 = vsyncpa %s2976, 1
    %2978 = vsyncpa [#allocation5], 1
    %s2979 = scalar_lea.sflag [#allocation5], 1
    %2980 = vsyncpa %s2979, 1
    %2981 = vsyncpa [#allocation21], 1
    %s2982 = scalar_lea.sflag [#allocation21], 1
    %2983 = vsyncpa %s2982, 1
    %2984 = vsyncpa [#allocation6], 1
    %s2985 = scalar_lea.sflag [#allocation6], 1
    %2986 = vsyncpa %s2985, 1
    %2987 = vsyncpa [#allocation9], 1
    %2988 = vsyncpa [#allocation12], 1
    %2989 = vsyncpa [#allocation15], 1
    %2990 = vsyncpa [#allocation18], 1

</llo_original>
